<compile_context>
chip_gen: v7x
topology: tpu7x:2x2x1
jax: 0.10.0
libtpu: 0.0.40
codegen_flags: <defaults>
</compile_context>

<pallas_src>
import math
import jax
import jax.numpy as jnp
from jax import lax
from jax.experimental import pallas as pl
from jax.experimental.pallas import tpu as pltpu

HIDDEN = 256           # self.hidden
HEADS = 2              # self.heads
D_K = HIDDEN // HEADS  # 128
FF = HIDDEN * 4        # feed-forward hidden
KSIZE = 5              # conv kernel size
EPS = 1e-9             # LayerNorm eps (added to *std*, not var)
MXU_ROWS = 256         # target M rows per grid step


# ---------------------------------------------------------------------------
# in-kernel helpers
# ---------------------------------------------------------------------------
def _layer_norm(x, w, b):
    # Matches the module's custom LayerNorm exactly:
    #   mean over last dim, torch.std (unbiased, N-1), divide by (std + eps).
    n = x.shape[-1]
    mean = jnp.mean(x, axis=-1, keepdims=True)
    d = x - mean
    var = jnp.sum(d * d, axis=-1, keepdims=True) * (1.0 / (n - 1))
    inv = pl.reciprocal(jnp.sqrt(var) + EPS, approx=True)   # EUP, frees VALU
    return w * d * inv + b


def _gelu(x):
    # tanh-approximation GELU, as in the module's GELU class
    return 0.5 * x * (1.0 + jnp.tanh(math.sqrt(2.0 / math.pi) *
                                     (x + 0.044715 * x ** 3)))


# ---------------------------------------------------------------------------
# Single fused kernel: conv (im2col matmul) -> LN -> TransformerBlock -> heads
# ---------------------------------------------------------------------------
def fused_kernel(xi_ref,                      # (bt, L, K*C) im2col conv input
                 wconv, bconv,                # (K*C, C), (1, C)
                 ln1w, ln1b,
                 wqkv, bqkv,                  # (C, 3C), (1, 3C)
                 wo, bo,                      # (C, C),  (1, C)
                 lnAw, lnAb,
                 w1, b1, w2, b2,              # FFN
                 lnBw, lnBb,
                 ln2w, ln2b,
                 whead, bhead,                # (C, 256) = [fc1 | linear1]
                 wfc2, bfc2,                  # (1, 128), (1, 1)
                 wl2, bl2,                    # (1, 128), (1, 1)
                 out_ref):                    # (1, 2, bt*L)  row0=y, row1=s
    bt, L, kc = xi_ref.shape
    M = bt * L

    # --- Conv1d(k=5, replicate pad) as one big matmul over im2col features ---
    xi = xi_ref[...].reshape(M, kc)
    conv = jnp.dot(xi, wconv[...], preferred_element_type=jnp.float32) + bconv[...]

    # x = dropout(layer_norm(conv_out))             (dropout = identity)
    x0 = _layer_norm(conv, ln1w[...], ln1b[...])

    # --- MultiHeadedAttention(x0, x0, x0, mask=None), fused QKV projection ---
    qkv = jnp.dot(x0, wqkv[...], preferred_element_type=jnp.float32) + bqkv[...]
    scale = 1.0 / math.sqrt(D_K)

    attn = bo[...]                              # (1, C) -> broadcasts on first add
    for h in range(HEADS):
        qh = qkv[:, h * D_K:(h + 1) * D_K].reshape(bt, L, D_K)
        kh = qkv[:, HIDDEN + h * D_K:HIDDEN + (h + 1) * D_K].reshape(bt, L, D_K)
        vh = qkv[:, 2 * HIDDEN + h * D_K:2 * HIDDEN + (h + 1) * D_K].reshape(bt, L, D_K)

        # scores: contract last dims (no kh.T relayout), batched over bt
        sc = lax.dot_general(qh, kh, (((2,), (2,)), ((0,), (0,))),
                             preferred_element_type=jnp.float32) * scale
        sc = sc - jnp.max(sc, axis=-1, keepdims=True)
        e = jnp.exp(sc)
        p = e * pl.reciprocal(jnp.sum(e, axis=-1, keepdims=True), approx=True)

        oh = lax.dot_general(p, vh, (((2,), (1,)), ((0,), (0,))),
                             preferred_element_type=jnp.float32)     # (bt, L, D_K)

        # output projection accumulated per head (no lane-concat of heads)
        attn = attn + jnp.dot(oh.reshape(M, D_K), wo[h * D_K:(h + 1) * D_K, :],
                              preferred_element_type=jnp.float32)

    # input_sublayer: layer_norm(x + attn)
    x1 = _layer_norm(x0 + attn, lnAw[...], lnAb[...])

    # feed-forward: w2(gelu(w1(x)))
    h1 = _gelu(jnp.dot(x1, w1[...], preferred_element_type=jnp.float32) + b1[...])
    ffn = jnp.dot(h1, w2[...], preferred_element_type=jnp.float32) + b2[...]

    # output_sublayer: layer_norm(x + ffn)     (block dropout = identity)
    x2 = _layer_norm(x1 + ffn, lnBw[...], lnBb[...])

    # x = dropout2(layer_norm2(x))
    x3 = _layer_norm(x2, ln2w[...], ln2b[...])

    # fused fc1 / linear1:  hh[:, :128] -> fc path,  hh[:, 128:] -> y path
    hh = jnp.dot(x3, whead[...], preferred_element_type=jnp.float32) + bhead[...]
    hfc = jnp.maximum(hh[:, :D_K], 0.0)
    yh = jnp.tanh(hh[:, D_K:])

    # Final 128->1 projections computed as (1,128)x(M,128) -> (1, M) rows,
    # so the stores are lane-dense (M on the lane axis) with no transpose.
    s_row = jax.nn.sigmoid(
        lax.dot_general(wfc2[...], hfc, (((1,), (1,)), ((), ())),
                        preferred_element_type=jnp.float32) + bfc2[...])
    y_row = (lax.dot_general(wl2[...], yh, (((1,), (1,)), ((), ())),
                             preferred_element_type=jnp.float32) + bl2[...]) * s_row

    out_ref[0] = jnp.concatenate([y_row, s_row], axis=0)    # (2, M)


# ---------------------------------------------------------------------------
# wrappers / glue
# ---------------------------------------------------------------------------
def _full_spec(arr):
    nd = arr.ndim
    return pl.BlockSpec(arr.shape, lambda i, _n=nd: (0,) * _n)


def _pick_batch_tile(B, L):
    # Pack rows into the MXU M dimension (target bt*L >= MXU_ROWS), but keep
    # at least 2 grid steps when possible so v7x's 2 TensorCores both get work.
    bt = max(1, min(B, max(1, MXU_ROWS // max(L, 1))))
    if B >= 2:
        bt = min(bt, -(-B // 2))
    return bt


def cnn_network_forward(params, sequence):
    # sequence: (B, C, L) -- same NCW convention as the PyTorch Conv1d input
    B, C, L = sequence.shape
    assert C == HIDDEN

    x = jnp.transpose(sequence, (0, 2, 1))                       # (B, L, C)
    xp = jnp.pad(x, ((0, 0), (2, 2), (0, 0)), mode="edge")       # replicate pad
    # im2col: tap-major feature ordering -> (B, L, K*C); conv becomes 1 matmul
    xi = jnp.concatenate([xp[:, k:k + L, :] for k in range(KSIZE)], axis=-1)

    bt = _pick_batch_tile(B, L)
    nb = -(-B // bt)
    b_pad = nb * bt
    if b_pad != B:
        xi = jnp.pad(xi, ((0, b_pad - B), (0, 0), (0, 0)))

    t = jnp.transpose                     # (out,in) -> (in,out): kernel does x @ W
    r = lambda v: v.reshape(1, -1)

    # conv weight -> im2col layout (K*Cin, Cout), tap-major rows
    wconv = jnp.concatenate([params["conv_w"][:, :, k].T for k in range(KSIZE)],
                            axis=0)
    # fused QKV projection
    wqkv = jnp.concatenate([t(params["wq"]), t(params["wk"]), t(params["wv"])],
                           axis=1)
    bqkv = jnp.concatenate([params["bq"], params["bk"], params["bv"]]).reshape(1, -1)
    # fused fc1 / linear1 (both consume x3)
    whead = jnp.concatenate([t(params["wfc1"]), t(params["wl1"])], axis=1)
    bhead = jnp.concatenate([params["bfc1"], params["bl1"]]).reshape(1, -1)

    inputs = [
        xi,
        wconv, r(params["conv_b"]),
        r(params["ln1_w"]), r(params["ln1_b"]),
        wqkv, bqkv,
        t(params["wo"]), r(params["bo"]),
        r(params["lnA_w"]), r(params["lnA_b"]),
        t(params["w1"]), r(params["b1"]),
        t(params["w2"]), r(params["b2"]),
        r(params["lnB_w"]), r(params["lnB_b"]),
        r(params["ln2_w"]), r(params["ln2_b"]),
        whead, bhead,
        params["wfc2"], params["bfc2"].reshape(1, 1),
        params["wl2"], params["bl2"].reshape(1, 1),
    ]

    m_blk = bt * L
    in_specs = [pl.BlockSpec((bt, L, KSIZE * C), lambda i: (i, 0, 0))] + [
        _full_spec(a) for a in inputs[1:]
    ]

    out = pl.pallas_call(
        fused_kernel,
        out_shape=jax.ShapeDtypeStruct((nb, 2, m_blk), jnp.float32),
        grid=(nb,),
        in_specs=in_specs,
        out_specs=pl.BlockSpec((1, 2, m_blk), lambda i: (i, 0, 0)),
        compiler_params=pltpu.CompilerParams(
            dimension_semantics=("parallel",),
            vmem_limit_bytes=48 * 1024 * 1024,   # headroom beyond v5e's 16 MiB default,
        ),                                       # still under v7x's 64 MiB physical
    )(*inputs)

    # out[i, 0, :] = y rows, out[i, 1, :] = s rows, flattened as (bt, L)
    ys = out.reshape(nb, 2, bt, L)
    y = ys[:, 0].reshape(b_pad, L)[:B].reshape(B, L, 1)
    s = ys[:, 1].reshape(b_pad, L)[:B].reshape(B, L, 1)
    return y, s


# ---------------------------------------------------------------------------
# deterministic parameter init (truncated normal, std=0.02, +/- 2 std — same
# family as the module's truncated_normal_init; LayerNorm params stay 1/0)
# ---------------------------------------------------------------------------
def init_params(key):
    keys = iter(jax.random.split(key, 32))

    def tn(shape):
        return 0.02 * jax.random.truncated_normal(next(keys), -2.0, 2.0,
                                                  shape, jnp.float32)

    p = {}
    p["conv_w"] = tn((HIDDEN, HIDDEN, KSIZE)); p["conv_b"] = tn((HIDDEN,))
    p["ln1_w"] = jnp.ones((HIDDEN,), jnp.float32)
    p["ln1_b"] = jnp.zeros((HIDDEN,), jnp.float32)
    for name in ("q", "k", "v", "o"):
        p[f"w{name}"] = tn((HIDDEN, HIDDEN)); p[f"b{name}"] = tn((HIDDEN,))
    p["lnA_w"] = jnp.ones((HIDDEN,), jnp.float32)
    p["lnA_b"] = jnp.zeros((HIDDEN,), jnp.float32)
    p["lnB_w"] = jnp.ones((HIDDEN,), jnp.float32)
    p["lnB_b"] = jnp.zeros((HIDDEN,), jnp.float32)
    p["w1"] = tn((FF, HIDDEN)); p["b1"] = tn((FF,))
    p["w2"] = tn((HIDDEN, FF)); p["b2"] = tn((HIDDEN,))
    p["ln2_w"] = jnp.ones((HIDDEN,), jnp.float32)
    p["ln2_b"] = jnp.zeros((HIDDEN,), jnp.float32)
    p["wfc1"] = tn((128, HIDDEN)); p["bfc1"] = tn((128,))
    p["wfc2"] = tn((1, 128));      p["bfc2"] = tn((1,))
    p["wl1"] = tn((128, HIDDEN));  p["bl1"] = tn((128,))
    p["wl2"] = tn((1, 128));       p["bl2"] = tn((1,))
    return p


if __name__ == "__main__":
    key = jax.random.PRNGKey(0)
    pkey, xkey = jax.random.split(key)
    params = init_params(pkey)

    B, L = 2, 16  # small window_size
    sequence = jax.random.normal(xkey, (B, HIDDEN, L), jnp.float32)  # NCW, like Conv1d

    fwd = jax.jit(cnn_network_forward)
    y, s = fwd(params, sequence)
    jax.block_until_ready((y, s))
    assert y.shape == (B, L, 1) and s.shape == (B, L, 1)
    print("KERNEL_OK")
</pallas_src>

<mosaic_0001>
module attributes {stable_mosaic.version = 11 : i64} {
  func.func @fused_kernel(%arg0: i32, %arg1: memref<1x16x1280xf32, #tpu.memory_space<vmem>>, %arg2: memref<1280x256xf32, #tpu.memory_space<vmem>>, %arg3: memref<1x256xf32, #tpu.memory_space<vmem>>, %arg4: memref<1x256xf32, #tpu.memory_space<vmem>>, %arg5: memref<1x256xf32, #tpu.memory_space<vmem>>, %arg6: memref<256x768xf32, #tpu.memory_space<vmem>>, %arg7: memref<1x768xf32, #tpu.memory_space<vmem>>, %arg8: memref<256x256xf32, #tpu.memory_space<vmem>>, %arg9: memref<1x256xf32, #tpu.memory_space<vmem>>, %arg10: memref<1x256xf32, #tpu.memory_space<vmem>>, %arg11: memref<1x256xf32, #tpu.memory_space<vmem>>, %arg12: memref<256x1024xf32, #tpu.memory_space<vmem>>, %arg13: memref<1x1024xf32, #tpu.memory_space<vmem>>, %arg14: memref<1024x256xf32, #tpu.memory_space<vmem>>, %arg15: memref<1x256xf32, #tpu.memory_space<vmem>>, %arg16: memref<1x256xf32, #tpu.memory_space<vmem>>, %arg17: memref<1x256xf32, #tpu.memory_space<vmem>>, %arg18: memref<1x256xf32, #tpu.memory_space<vmem>>, %arg19: memref<1x256xf32, #tpu.memory_space<vmem>>, %arg20: memref<256x256xf32, #tpu.memory_space<vmem>>, %arg21: memref<1x256xf32, #tpu.memory_space<vmem>>, %arg22: memref<1x128xf32, #tpu.memory_space<vmem>>, %arg23: memref<1x1xf32, #tpu.memory_space<vmem>>, %arg24: memref<1x128xf32, #tpu.memory_space<vmem>>, %arg25: memref<1x1xf32, #tpu.memory_space<vmem>>, %arg26: memref<1x2x16xf32, #tpu.memory_space<vmem>>) attributes {dimension_semantics = [#tpu.dimension_semantics<parallel>], iteration_bounds = array<i64: 2>, scalar_prefetch = 0 : i64, scratch_operands = 0 : i64, tpu.core_type = #tpu.core_type<tc>, window_params = [{transform_indices = @transform_0, window_bounds = array<i64: 1, 16, 1280>}, {pipeline_mode = #tpu.pipeline_mode<synchronous>, transform_indices = @transform_1, window_bounds = array<i64: 1280, 256>}, {pipeline_mode = #tpu.pipeline_mode<synchronous>, transform_indices = @transform_2, window_bounds = array<i64: 1, 256>}, {pipeline_mode = #tpu.pipeline_mode<synchronous>, transform_indices = @transform_3, window_bounds = array<i64: 1, 256>}, {pipeline_mode = #tpu.pipeline_mode<synchronous>, transform_indices = @transform_4, window_bounds = array<i64: 1, 256>}, {pipeline_mode = #tpu.pipeline_mode<synchronous>, transform_indices = @transform_5, window_bounds = array<i64: 256, 768>}, {pipeline_mode = #tpu.pipeline_mode<synchronous>, transform_indices = @transform_6, window_bounds = array<i64: 1, 768>}, {pipeline_mode = #tpu.pipeline_mode<synchronous>, transform_indices = @transform_7, window_bounds = array<i64: 256, 256>}, {pipeline_mode = #tpu.pipeline_mode<synchronous>, transform_indices = @transform_8, window_bounds = array<i64: 1, 256>}, {pipeline_mode = #tpu.pipeline_mode<synchronous>, transform_indices = @transform_9, window_bounds = array<i64: 1, 256>}, {pipeline_mode = #tpu.pipeline_mode<synchronous>, transform_indices = @transform_10, window_bounds = array<i64: 1, 256>}, {pipeline_mode = #tpu.pipeline_mode<synchronous>, transform_indices = @transform_11, window_bounds = array<i64: 256, 1024>}, {pipeline_mode = #tpu.pipeline_mode<synchronous>, transform_indices = @transform_12, window_bounds = array<i64: 1, 1024>}, {pipeline_mode = #tpu.pipeline_mode<synchronous>, transform_indices = @transform_13, window_bounds = array<i64: 1024, 256>}, {pipeline_mode = #tpu.pipeline_mode<synchronous>, transform_indices = @transform_14, window_bounds = array<i64: 1, 256>}, {pipeline_mode = #tpu.pipeline_mode<synchronous>, transform_indices = @transform_15, window_bounds = array<i64: 1, 256>}, {pipeline_mode = #tpu.pipeline_mode<synchronous>, transform_indices = @transform_16, window_bounds = array<i64: 1, 256>}, {pipeline_mode = #tpu.pipeline_mode<synchronous>, transform_indices = @transform_17, window_bounds = array<i64: 1, 256>}, {pipeline_mode = #tpu.pipeline_mode<synchronous>, transform_indices = @transform_18, window_bounds = array<i64: 1, 256>}, {pipeline_mode = #tpu.pipeline_mode<synchronous>, transform_indices = @transform_19, window_bounds = array<i64: 256, 256>}, {pipeline_mode = #tpu.pipeline_mode<synchronous>, transform_indices = @transform_20, window_bounds = array<i64: 1, 256>}, {pipeline_mode = #tpu.pipeline_mode<synchronous>, transform_indices = @transform_21, window_bounds = array<i64: 1, 128>}, {pipeline_mode = #tpu.pipeline_mode<synchronous>, transform_indices = @transform_22, window_bounds = array<i64: 1, 1>}, {pipeline_mode = #tpu.pipeline_mode<synchronous>, transform_indices = @transform_23, window_bounds = array<i64: 1, 128>}, {pipeline_mode = #tpu.pipeline_mode<synchronous>, transform_indices = @transform_24, window_bounds = array<i64: 1, 1>}, {transform_indices = @transform_25, window_bounds = array<i64: 1, 2, 16>}]} {
    %c0 = arith.constant 0 : index
    %c0_0 = arith.constant 0 : index
    %c0_1 = arith.constant 0 : index
    %0 = vector.load %arg1[%c0, %c0_0, %c0_1] : memref<1x16x1280xf32, #tpu.memory_space<vmem>>, vector<1x16x1280xf32>
    %1 = vector.shape_cast %0 : vector<1x16x1280xf32> to vector<16x1280xf32>
    %c0_2 = arith.constant 0 : index
    %c0_3 = arith.constant 0 : index
    %2 = vector.load %arg2[%c0_2, %c0_3] : memref<1280x256xf32, #tpu.memory_space<vmem>>, vector<1280x256xf32>
    %cst = arith.constant dense<0.000000e+00> : vector<16x256xf32>
    %3 = tpu.matmul %1, %2, %cst {dimension_numbers = #tpu.dot_dimension_numbers<[1], [0], [0], [1], [0, 0, 1, 1], [], []>} : vector<16x1280xf32>, vector<1280x256xf32>, vector<16x256xf32> -> vector<16x256xf32>
    %c0_4 = arith.constant 0 : index
    %c0_5 = arith.constant 0 : index
    %4 = vector.load %arg3[%c0_4, %c0_5] : memref<1x256xf32, #tpu.memory_space<vmem>>, vector<1x256xf32>
    %5 = vector.broadcast %4 : vector<1x256xf32> to vector<16x256xf32>
    %6 = arith.addf %3, %5 : vector<16x256xf32>
    %c0_6 = arith.constant 0 : index
    %c0_7 = arith.constant 0 : index
    %7 = vector.load %arg4[%c0_6, %c0_7] : memref<1x256xf32, #tpu.memory_space<vmem>>, vector<1x256xf32>
    %c0_8 = arith.constant 0 : index
    %c0_9 = arith.constant 0 : index
    %8 = vector.load %arg5[%c0_8, %c0_9] : memref<1x256xf32, #tpu.memory_space<vmem>>, vector<1x256xf32>
    %cst_10 = arith.constant dense<0.000000e+00> : vector<16xf32>
    %9 = vector.multi_reduction <add>, %6, %cst_10 [1] : vector<16x256xf32> to vector<16xf32>
    %10 = vector.shape_cast %9 : vector<16xf32> to vector<16x1xf32>
    %cst_11 = arith.constant 2.560000e+02 : f32
    %11 = vector.broadcast %cst_11 : f32 to vector<16x1xf32>
    %12 = arith.divf %10, %11 : vector<16x1xf32>
    %13 = vector.broadcast %12 : vector<16x1xf32> to vector<16x256xf32>
    %14 = arith.subf %6, %13 : vector<16x256xf32>
    %15 = arith.mulf %14, %14 : vector<16x256xf32>
    %cst_12 = arith.constant dense<0.000000e+00> : vector<16xf32>
    %16 = vector.multi_reduction <add>, %15, %cst_12 [1] : vector<16x256xf32> to vector<16xf32>
    %17 = vector.shape_cast %16 : vector<16xf32> to vector<16x1xf32>
    %cst_13 = arith.constant 0.00392156886 : f32
    %18 = vector.broadcast %cst_13 : f32 to vector<16x1xf32>
    %19 = arith.mulf %17, %18 : vector<16x1xf32>
    %20 = math.sqrt %19 : vector<16x1xf32>
    %cst_14 = arith.constant 9.99999971E-10 : f32
    %21 = vector.broadcast %cst_14 : f32 to vector<16x1xf32>
    %22 = arith.addf %20, %21 : vector<16x1xf32>
    %23 = tpu.reciprocal %22 {approx = true} : vector<16x1xf32> -> vector<16x1xf32>
    %24 = vector.broadcast %7 : vector<1x256xf32> to vector<16x256xf32>
    %25 = arith.mulf %24, %14 : vector<16x256xf32>
    %26 = vector.broadcast %23 : vector<16x1xf32> to vector<16x256xf32>
    %27 = arith.mulf %25, %26 : vector<16x256xf32>
    %28 = vector.broadcast %8 : vector<1x256xf32> to vector<16x256xf32>
    %29 = arith.addf %27, %28 : vector<16x256xf32>
    %c0_15 = arith.constant 0 : index
    %c0_16 = arith.constant 0 : index
    %30 = vector.load %arg6[%c0_15, %c0_16] : memref<256x768xf32, #tpu.memory_space<vmem>>, vector<256x768xf32>
    %cst_17 = arith.constant dense<0.000000e+00> : vector<16x768xf32>
    %31 = tpu.matmul %29, %30, %cst_17 {dimension_numbers = #tpu.dot_dimension_numbers<[1], [0], [0], [1], [0, 0, 1, 1], [], []>} : vector<16x256xf32>, vector<256x768xf32>, vector<16x768xf32> -> vector<16x768xf32>
    %c0_18 = arith.constant 0 : index
    %c0_19 = arith.constant 0 : index
    %32 = vector.load %arg7[%c0_18, %c0_19] : memref<1x768xf32, #tpu.memory_space<vmem>>, vector<1x768xf32>
    %33 = vector.broadcast %32 : vector<1x768xf32> to vector<16x768xf32>
    %34 = arith.addf %31, %33 : vector<16x768xf32>
    %c0_20 = arith.constant 0 : index
    %c0_21 = arith.constant 0 : index
    %35 = vector.load %arg9[%c0_20, %c0_21] : memref<1x256xf32, #tpu.memory_space<vmem>>, vector<1x256xf32>
    %36 = vector.extract_strided_slice %34 {offsets = [0, 0], sizes = [16, 128], strides = [1, 1]} : vector<16x768xf32> to vector<16x128xf32>
    %37 = vector.shape_cast %36 : vector<16x128xf32> to vector<1x16x128xf32>
    %38 = vector.extract_strided_slice %34 {offsets = [0, 256], sizes = [16, 128], strides = [1, 1]} : vector<16x768xf32> to vector<16x128xf32>
    %39 = vector.shape_cast %38 : vector<16x128xf32> to vector<1x16x128xf32>
    %40 = vector.extract_strided_slice %34 {offsets = [0, 512], sizes = [16, 128], strides = [1, 1]} : vector<16x768xf32> to vector<16x128xf32>
    %41 = vector.shape_cast %40 : vector<16x128xf32> to vector<1x16x128xf32>
    %cst_22 = arith.constant dense<0.000000e+00> : vector<1x16x16xf32>
    %42 = tpu.matmul %37, %39, %cst_22 {dimension_numbers = #tpu.dot_dimension_numbers<[2], [2], [1], [1], [0, 0, 0, 1, 1, 1], [0], [0]>} : vector<1x16x128xf32>, vector<1x16x128xf32>, vector<1x16x16xf32> -> vector<1x16x16xf32>
    %cst_23 = arith.constant 0.0883883461 : f32
    %43 = vector.broadcast %cst_23 : f32 to vector<1x16x16xf32>
    %44 = arith.mulf %42, %43 : vector<1x16x16xf32>
    %cst_24 = arith.constant dense<0xFF800000> : vector<1x16xf32>
    %45 = vector.multi_reduction <maximumf>, %44, %cst_24 [2] : vector<1x16x16xf32> to vector<1x16xf32>
    %46 = vector.shape_cast %45 : vector<1x16xf32> to vector<1x16x1xf32>
    %47 = vector.broadcast %46 : vector<1x16x1xf32> to vector<1x16x16xf32>
    %48 = arith.subf %44, %47 : vector<1x16x16xf32>
    %49 = math.exp %48 : vector<1x16x16xf32>
    %cst_25 = arith.constant dense<0.000000e+00> : vector<1x16xf32>
    %50 = vector.multi_reduction <add>, %49, %cst_25 [2] : vector<1x16x16xf32> to vector<1x16xf32>
    %51 = vector.shape_cast %50 : vector<1x16xf32> to vector<1x16x1xf32>
    %52 = tpu.reciprocal %51 {approx = true} : vector<1x16x1xf32> -> vector<1x16x1xf32>
    %53 = vector.broadcast %52 : vector<1x16x1xf32> to vector<1x16x16xf32>
    %54 = arith.mulf %49, %53 : vector<1x16x16xf32>
    %cst_26 = arith.constant dense<0.000000e+00> : vector<1x16x128xf32>
    %55 = tpu.matmul %54, %41, %cst_26 {dimension_numbers = #tpu.dot_dimension_numbers<[2], [1], [1], [2], [0, 0, 0, 1, 1, 2], [0], [0]>} : vector<1x16x16xf32>, vector<1x16x128xf32>, vector<1x16x128xf32> -> vector<1x16x128xf32>
    %56 = vector.shape_cast %55 : vector<1x16x128xf32> to vector<16x128xf32>
    %c0_27 = arith.constant 0 : index
    %c0_28 = arith.constant 0 : index
    %57 = vector.load %arg8[%c0_27, %c0_28] : memref<256x256xf32, #tpu.memory_space<vmem>>, vector<128x256xf32>
    %cst_29 = arith.constant dense<0.000000e+00> : vector<16x256xf32>
    %58 = tpu.matmul %56, %57, %cst_29 {dimension_numbers = #tpu.dot_dimension_numbers<[1], [0], [0], [1], [0, 0, 1, 1], [], []>} : vector<16x128xf32>, vector<128x256xf32>, vector<16x256xf32> -> vector<16x256xf32>
    %59 = vector.broadcast %35 : vector<1x256xf32> to vector<16x256xf32>
    %60 = arith.addf %59, %58 : vector<16x256xf32>
    %61 = vector.extract_strided_slice %34 {offsets = [0, 128], sizes = [16, 128], strides = [1, 1]} : vector<16x768xf32> to vector<16x128xf32>
    %62 = vector.shape_cast %61 : vector<16x128xf32> to vector<1x16x128xf32>
    %63 = vector.extract_strided_slice %34 {offsets = [0, 384], sizes = [16, 128], strides = [1, 1]} : vector<16x768xf32> to vector<16x128xf32>
    %64 = vector.shape_cast %63 : vector<16x128xf32> to vector<1x16x128xf32>
    %65 = vector.extract_strided_slice %34 {offsets = [0, 640], sizes = [16, 128], strides = [1, 1]} : vector<16x768xf32> to vector<16x128xf32>
    %66 = vector.shape_cast %65 : vector<16x128xf32> to vector<1x16x128xf32>
    %cst_30 = arith.constant dense<0.000000e+00> : vector<1x16x16xf32>
    %67 = tpu.matmul %62, %64, %cst_30 {dimension_numbers = #tpu.dot_dimension_numbers<[2], [2], [1], [1], [0, 0, 0, 1, 1, 1], [0], [0]>} : vector<1x16x128xf32>, vector<1x16x128xf32>, vector<1x16x16xf32> -> vector<1x16x16xf32>
    %cst_31 = arith.constant 0.0883883461 : f32
    %68 = vector.broadcast %cst_31 : f32 to vector<1x16x16xf32>
    %69 = arith.mulf %67, %68 : vector<1x16x16xf32>
    %cst_32 = arith.constant dense<0xFF800000> : vector<1x16xf32>
    %70 = vector.multi_reduction <maximumf>, %69, %cst_32 [2] : vector<1x16x16xf32> to vector<1x16xf32>
    %71 = vector.shape_cast %70 : vector<1x16xf32> to vector<1x16x1xf32>
    %72 = vector.broadcast %71 : vector<1x16x1xf32> to vector<1x16x16xf32>
    %73 = arith.subf %69, %72 : vector<1x16x16xf32>
    %74 = math.exp %73 : vector<1x16x16xf32>
    %cst_33 = arith.constant dense<0.000000e+00> : vector<1x16xf32>
    %75 = vector.multi_reduction <add>, %74, %cst_33 [2] : vector<1x16x16xf32> to vector<1x16xf32>
    %76 = vector.shape_cast %75 : vector<1x16xf32> to vector<1x16x1xf32>
    %77 = tpu.reciprocal %76 {approx = true} : vector<1x16x1xf32> -> vector<1x16x1xf32>
    %78 = vector.broadcast %77 : vector<1x16x1xf32> to vector<1x16x16xf32>
    %79 = arith.mulf %74, %78 : vector<1x16x16xf32>
    %cst_34 = arith.constant dense<0.000000e+00> : vector<1x16x128xf32>
    %80 = tpu.matmul %79, %66, %cst_34 {dimension_numbers = #tpu.dot_dimension_numbers<[2], [1], [1], [2], [0, 0, 0, 1, 1, 2], [0], [0]>} : vector<1x16x16xf32>, vector<1x16x128xf32>, vector<1x16x128xf32> -> vector<1x16x128xf32>
    %81 = vector.shape_cast %80 : vector<1x16x128xf32> to vector<16x128xf32>
    %c128 = arith.constant 128 : index
    %c0_35 = arith.constant 0 : index
    %82 = vector.load %arg8[%c128, %c0_35] : memref<256x256xf32, #tpu.memory_space<vmem>>, vector<128x256xf32>
    %cst_36 = arith.constant dense<0.000000e+00> : vector<16x256xf32>
    %83 = tpu.matmul %81, %82, %cst_36 {dimension_numbers = #tpu.dot_dimension_numbers<[1], [0], [0], [1], [0, 0, 1, 1], [], []>} : vector<16x128xf32>, vector<128x256xf32>, vector<16x256xf32> -> vector<16x256xf32>
    %84 = arith.addf %60, %83 : vector<16x256xf32>
    %85 = arith.addf %29, %84 : vector<16x256xf32>
    %c0_37 = arith.constant 0 : index
    %c0_38 = arith.constant 0 : index
    %86 = vector.load %arg10[%c0_37, %c0_38] : memref<1x256xf32, #tpu.memory_space<vmem>>, vector<1x256xf32>
    %c0_39 = arith.constant 0 : index
    %c0_40 = arith.constant 0 : index
    %87 = vector.load %arg11[%c0_39, %c0_40] : memref<1x256xf32, #tpu.memory_space<vmem>>, vector<1x256xf32>
    %cst_41 = arith.constant dense<0.000000e+00> : vector<16xf32>
    %88 = vector.multi_reduction <add>, %85, %cst_41 [1] : vector<16x256xf32> to vector<16xf32>
    %89 = vector.shape_cast %88 : vector<16xf32> to vector<16x1xf32>
    %cst_42 = arith.constant 2.560000e+02 : f32
    %90 = vector.broadcast %cst_42 : f32 to vector<16x1xf32>
    %91 = arith.divf %89, %90 : vector<16x1xf32>
    %92 = vector.broadcast %91 : vector<16x1xf32> to vector<16x256xf32>
    %93 = arith.subf %85, %92 : vector<16x256xf32>
    %94 = arith.mulf %93, %93 : vector<16x256xf32>
    %cst_43 = arith.constant dense<0.000000e+00> : vector<16xf32>
    %95 = vector.multi_reduction <add>, %94, %cst_43 [1] : vector<16x256xf32> to vector<16xf32>
    %96 = vector.shape_cast %95 : vector<16xf32> to vector<16x1xf32>
    %cst_44 = arith.constant 0.00392156886 : f32
    %97 = vector.broadcast %cst_44 : f32 to vector<16x1xf32>
    %98 = arith.mulf %96, %97 : vector<16x1xf32>
    %99 = math.sqrt %98 : vector<16x1xf32>
    %cst_45 = arith.constant 9.99999971E-10 : f32
    %100 = vector.broadcast %cst_45 : f32 to vector<16x1xf32>
    %101 = arith.addf %99, %100 : vector<16x1xf32>
    %102 = tpu.reciprocal %101 {approx = true} : vector<16x1xf32> -> vector<16x1xf32>
    %103 = vector.broadcast %86 : vector<1x256xf32> to vector<16x256xf32>
    %104 = arith.mulf %103, %93 : vector<16x256xf32>
    %105 = vector.broadcast %102 : vector<16x1xf32> to vector<16x256xf32>
    %106 = arith.mulf %104, %105 : vector<16x256xf32>
    %107 = vector.broadcast %87 : vector<1x256xf32> to vector<16x256xf32>
    %108 = arith.addf %106, %107 : vector<16x256xf32>
    %c0_46 = arith.constant 0 : index
    %c0_47 = arith.constant 0 : index
    %109 = vector.load %arg12[%c0_46, %c0_47] : memref<256x1024xf32, #tpu.memory_space<vmem>>, vector<256x1024xf32>
    %cst_48 = arith.constant dense<0.000000e+00> : vector<16x1024xf32>
    %110 = tpu.matmul %108, %109, %cst_48 {dimension_numbers = #tpu.dot_dimension_numbers<[1], [0], [0], [1], [0, 0, 1, 1], [], []>} : vector<16x256xf32>, vector<256x1024xf32>, vector<16x1024xf32> -> vector<16x1024xf32>
    %c0_49 = arith.constant 0 : index
    %c0_50 = arith.constant 0 : index
    %111 = vector.load %arg13[%c0_49, %c0_50] : memref<1x1024xf32, #tpu.memory_space<vmem>>, vector<1x1024xf32>
    %112 = vector.broadcast %111 : vector<1x1024xf32> to vector<16x1024xf32>
    %113 = arith.addf %110, %112 : vector<16x1024xf32>
    %cst_51 = arith.constant 5.000000e-01 : f32
    %114 = vector.broadcast %cst_51 : f32 to vector<16x1024xf32>
    %115 = arith.mulf %114, %113 : vector<16x1024xf32>
    %116 = arith.mulf %113, %113 : vector<16x1024xf32>
    %117 = arith.mulf %113, %116 : vector<16x1024xf32>
    %cst_52 = arith.constant 4.471500e-02 : f32
    %118 = vector.broadcast %cst_52 : f32 to vector<16x1024xf32>
    %119 = arith.mulf %118, %117 : vector<16x1024xf32>
    %120 = arith.addf %113, %119 : vector<16x1024xf32>
    %cst_53 = arith.constant 0.797884583 : f32
    %121 = vector.broadcast %cst_53 : f32 to vector<16x1024xf32>
    %122 = arith.mulf %121, %120 : vector<16x1024xf32>
    %123 = math.tanh %122 : vector<16x1024xf32>
    %cst_54 = arith.constant 1.000000e+00 : f32
    %124 = vector.broadcast %cst_54 : f32 to vector<16x1024xf32>
    %125 = arith.addf %124, %123 : vector<16x1024xf32>
    %126 = arith.mulf %115, %125 : vector<16x1024xf32>
    %c0_55 = arith.constant 0 : index
    %c0_56 = arith.constant 0 : index
    %127 = vector.load %arg14[%c0_55, %c0_56] : memref<1024x256xf32, #tpu.memory_space<vmem>>, vector<1024x256xf32>
    %cst_57 = arith.constant dense<0.000000e+00> : vector<16x256xf32>
    %128 = tpu.matmul %126, %127, %cst_57 {dimension_numbers = #tpu.dot_dimension_numbers<[1], [0], [0], [1], [0, 0, 1, 1], [], []>} : vector<16x1024xf32>, vector<1024x256xf32>, vector<16x256xf32> -> vector<16x256xf32>
    %c0_58 = arith.constant 0 : index
    %c0_59 = arith.constant 0 : index
    %129 = vector.load %arg15[%c0_58, %c0_59] : memref<1x256xf32, #tpu.memory_space<vmem>>, vector<1x256xf32>
    %130 = vector.broadcast %129 : vector<1x256xf32> to vector<16x256xf32>
    %131 = arith.addf %128, %130 : vector<16x256xf32>
    %132 = arith.addf %108, %131 : vector<16x256xf32>
    %c0_60 = arith.constant 0 : index
    %c0_61 = arith.constant 0 : index
    %133 = vector.load %arg16[%c0_60, %c0_61] : memref<1x256xf32, #tpu.memory_space<vmem>>, vector<1x256xf32>
    %c0_62 = arith.constant 0 : index
    %c0_63 = arith.constant 0 : index
    %134 = vector.load %arg17[%c0_62, %c0_63] : memref<1x256xf32, #tpu.memory_space<vmem>>, vector<1x256xf32>
    %cst_64 = arith.constant dense<0.000000e+00> : vector<16xf32>
    %135 = vector.multi_reduction <add>, %132, %cst_64 [1] : vector<16x256xf32> to vector<16xf32>
    %136 = vector.shape_cast %135 : vector<16xf32> to vector<16x1xf32>
    %cst_65 = arith.constant 2.560000e+02 : f32
    %137 = vector.broadcast %cst_65 : f32 to vector<16x1xf32>
    %138 = arith.divf %136, %137 : vector<16x1xf32>
    %139 = vector.broadcast %138 : vector<16x1xf32> to vector<16x256xf32>
    %140 = arith.subf %132, %139 : vector<16x256xf32>
    %141 = arith.mulf %140, %140 : vector<16x256xf32>
    %cst_66 = arith.constant dense<0.000000e+00> : vector<16xf32>
    %142 = vector.multi_reduction <add>, %141, %cst_66 [1] : vector<16x256xf32> to vector<16xf32>
    %143 = vector.shape_cast %142 : vector<16xf32> to vector<16x1xf32>
    %cst_67 = arith.constant 0.00392156886 : f32
    %144 = vector.broadcast %cst_67 : f32 to vector<16x1xf32>
    %145 = arith.mulf %143, %144 : vector<16x1xf32>
    %146 = math.sqrt %145 : vector<16x1xf32>
    %cst_68 = arith.constant 9.99999971E-10 : f32
    %147 = vector.broadcast %cst_68 : f32 to vector<16x1xf32>
    %148 = arith.addf %146, %147 : vector<16x1xf32>
    %149 = tpu.reciprocal %148 {approx = true} : vector<16x1xf32> -> vector<16x1xf32>
    %150 = vector.broadcast %133 : vector<1x256xf32> to vector<16x256xf32>
    %151 = arith.mulf %150, %140 : vector<16x256xf32>
    %152 = vector.broadcast %149 : vector<16x1xf32> to vector<16x256xf32>
    %153 = arith.mulf %151, %152 : vector<16x256xf32>
    %154 = vector.broadcast %134 : vector<1x256xf32> to vector<16x256xf32>
    %155 = arith.addf %153, %154 : vector<16x256xf32>
    %c0_69 = arith.constant 0 : index
    %c0_70 = arith.constant 0 : index
    %156 = vector.load %arg18[%c0_69, %c0_70] : memref<1x256xf32, #tpu.memory_space<vmem>>, vector<1x256xf32>
    %c0_71 = arith.constant 0 : index
    %c0_72 = arith.constant 0 : index
    %157 = vector.load %arg19[%c0_71, %c0_72] : memref<1x256xf32, #tpu.memory_space<vmem>>, vector<1x256xf32>
    %cst_73 = arith.constant dense<0.000000e+00> : vector<16xf32>
    %158 = vector.multi_reduction <add>, %155, %cst_73 [1] : vector<16x256xf32> to vector<16xf32>
    %159 = vector.shape_cast %158 : vector<16xf32> to vector<16x1xf32>
    %cst_74 = arith.constant 2.560000e+02 : f32
    %160 = vector.broadcast %cst_74 : f32 to vector<16x1xf32>
    %161 = arith.divf %159, %160 : vector<16x1xf32>
    %162 = vector.broadcast %161 : vector<16x1xf32> to vector<16x256xf32>
    %163 = arith.subf %155, %162 : vector<16x256xf32>
    %164 = arith.mulf %163, %163 : vector<16x256xf32>
    %cst_75 = arith.constant dense<0.000000e+00> : vector<16xf32>
    %165 = vector.multi_reduction <add>, %164, %cst_75 [1] : vector<16x256xf32> to vector<16xf32>
    %166 = vector.shape_cast %165 : vector<16xf32> to vector<16x1xf32>
    %cst_76 = arith.constant 0.00392156886 : f32
    %167 = vector.broadcast %cst_76 : f32 to vector<16x1xf32>
    %168 = arith.mulf %166, %167 : vector<16x1xf32>
    %169 = math.sqrt %168 : vector<16x1xf32>
    %cst_77 = arith.constant 9.99999971E-10 : f32
    %170 = vector.broadcast %cst_77 : f32 to vector<16x1xf32>
    %171 = arith.addf %169, %170 : vector<16x1xf32>
    %172 = tpu.reciprocal %171 {approx = true} : vector<16x1xf32> -> vector<16x1xf32>
    %173 = vector.broadcast %156 : vector<1x256xf32> to vector<16x256xf32>
    %174 = arith.mulf %173, %163 : vector<16x256xf32>
    %175 = vector.broadcast %172 : vector<16x1xf32> to vector<16x256xf32>
    %176 = arith.mulf %174, %175 : vector<16x256xf32>
    %177 = vector.broadcast %157 : vector<1x256xf32> to vector<16x256xf32>
    %178 = arith.addf %176, %177 : vector<16x256xf32>
    %c0_78 = arith.constant 0 : index
    %c0_79 = arith.constant 0 : index
    %179 = vector.load %arg20[%c0_78, %c0_79] : memref<256x256xf32, #tpu.memory_space<vmem>>, vector<256x256xf32>
    %cst_80 = arith.constant dense<0.000000e+00> : vector<16x256xf32>
    %180 = tpu.matmul %178, %179, %cst_80 {dimension_numbers = #tpu.dot_dimension_numbers<[1], [0], [0], [1], [0, 0, 1, 1], [], []>} : vector<16x256xf32>, vector<256x256xf32>, vector<16x256xf32> -> vector<16x256xf32>
    %c0_81 = arith.constant 0 : index
    %c0_82 = arith.constant 0 : index
    %181 = vector.load %arg21[%c0_81, %c0_82] : memref<1x256xf32, #tpu.memory_space<vmem>>, vector<1x256xf32>
    %182 = vector.broadcast %181 : vector<1x256xf32> to vector<16x256xf32>
    %183 = arith.addf %180, %182 : vector<16x256xf32>
    %184 = vector.extract_strided_slice %183 {offsets = [0, 0], sizes = [16, 128], strides = [1, 1]} : vector<16x256xf32> to vector<16x128xf32>
    %cst_83 = arith.constant 0.000000e+00 : f32
    %185 = vector.broadcast %cst_83 : f32 to vector<16x128xf32>
    %186 = arith.maximumf %184, %185 : vector<16x128xf32>
    %187 = vector.extract_strided_slice %183 {offsets = [0, 128], sizes = [16, 128], strides = [1, 1]} : vector<16x256xf32> to vector<16x128xf32>
    %188 = math.tanh %187 : vector<16x128xf32>
    %c0_84 = arith.constant 0 : index
    %c0_85 = arith.constant 0 : index
    %189 = vector.load %arg22[%c0_84, %c0_85] : memref<1x128xf32, #tpu.memory_space<vmem>>, vector<1x128xf32>
    %cst_86 = arith.constant dense<0.000000e+00> : vector<1x16xf32>
    %190 = tpu.matmul %189, %186, %cst_86 {dimension_numbers = #tpu.dot_dimension_numbers<[1], [1], [0], [0], [0, 0, 1, 0], [], []>} : vector<1x128xf32>, vector<16x128xf32>, vector<1x16xf32> -> vector<1x16xf32>
    %c0_87 = arith.constant 0 : index
    %c0_88 = arith.constant 0 : index
    %191 = vector.load %arg23[%c0_87, %c0_88] : memref<1x1xf32, #tpu.memory_space<vmem>>, vector<1x1xf32>
    %192 = vector.broadcast %191 : vector<1x1xf32> to vector<1x16xf32>
    %193 = arith.addf %190, %192 : vector<1x16xf32>
    %194 = arith.negf %193 : vector<1x16xf32>
    %195 = math.exp %194 : vector<1x16xf32>
    %cst_89 = arith.constant 1.000000e+00 : f32
    %196 = vector.broadcast %cst_89 : f32 to vector<1x16xf32>
    %197 = arith.addf %196, %195 : vector<1x16xf32>
    %198 = arith.divf %196, %197 : vector<1x16xf32>
    %c0_90 = arith.constant 0 : index
    %c0_91 = arith.constant 0 : index
    %199 = vector.load %arg24[%c0_90, %c0_91] : memref<1x128xf32, #tpu.memory_space<vmem>>, vector<1x128xf32>
    %cst_92 = arith.constant dense<0.000000e+00> : vector<1x16xf32>
    %200 = tpu.matmul %199, %188, %cst_92 {dimension_numbers = #tpu.dot_dimension_numbers<[1], [1], [0], [0], [0, 0, 1, 0], [], []>} : vector<1x128xf32>, vector<16x128xf32>, vector<1x16xf32> -> vector<1x16xf32>
    %c0_93 = arith.constant 0 : index
    %c0_94 = arith.constant 0 : index
    %201 = vector.load %arg25[%c0_93, %c0_94] : memref<1x1xf32, #tpu.memory_space<vmem>>, vector<1x1xf32>
    %202 = vector.broadcast %201 : vector<1x1xf32> to vector<1x16xf32>
    %203 = arith.addf %200, %202 : vector<1x16xf32>
    %204 = arith.mulf %203, %198 : vector<1x16xf32>
    %205 = tpu.concatenate %204, %198 in 0 : vector<1x16xf32>, vector<1x16xf32> -> vector<2x16xf32>
    %c0_95 = arith.constant 0 : index
    %c0_96 = arith.constant 0 : index
    %c0_97 = arith.constant 0 : index
    %206 = vector.load %arg26[%c0_95, %c0_96, %c0_97] : memref<1x2x16xf32, #tpu.memory_space<vmem>>, vector<1x2x16xf32>
    %207 = vector.shape_cast %206 : vector<1x2x16xf32> to vector<2x16xf32>
    %208 = vector.shape_cast %205 : vector<2x16xf32> to vector<1x2x16xf32>
    tpu.vector_store %arg26[%c0_95, %c0_96, %c0_97], %208 {strides = array<i32>} : memref<1x2x16xf32, #tpu.memory_space<vmem>>, vector<1x2x16xf32>,
    return
  }
  func.func @transform_0(%arg0: i32) -> (i32, i32, i32) {
    %c0_i32 = arith.constant 0 : i32
    %c0_i32_0 = arith.constant 0 : i32
    %c0_i32_1 = arith.constant 0 : i32
    return %arg0, %c0_i32, %c0_i32_0 : i32, i32, i32
  }
  func.func @transform_1(%arg0: i32) -> (i32, i32) {
    %c0_i32 = arith.constant 0 : i32
    %c0_i32_0 = arith.constant 0 : i32
    %c0_i32_1 = arith.constant 0 : i32
    return %c0_i32, %c0_i32_0 : i32, i32
  }
  func.func @transform_2(%arg0: i32) -> (i32, i32) {
    %c0_i32 = arith.constant 0 : i32
    %c0_i32_0 = arith.constant 0 : i32
    %c0_i32_1 = arith.constant 0 : i32
    return %c0_i32, %c0_i32_0 : i32, i32
  }
  func.func @transform_3(%arg0: i32) -> (i32, i32) {
    %c0_i32 = arith.constant 0 : i32
    %c0_i32_0 = arith.constant 0 : i32
    %c0_i32_1 = arith.constant 0 : i32
    return %c0_i32, %c0_i32_0 : i32, i32
  }
  func.func @transform_4(%arg0: i32) -> (i32, i32) {
    %c0_i32 = arith.constant 0 : i32
    %c0_i32_0 = arith.constant 0 : i32
    %c0_i32_1 = arith.constant 0 : i32
    return %c0_i32, %c0_i32_0 : i32, i32
  }
  func.func @transform_5(%arg0: i32) -> (i32, i32) {
    %c0_i32 = arith.constant 0 : i32
    %c0_i32_0 = arith.constant 0 : i32
    %c0_i32_1 = arith.constant 0 : i32
    return %c0_i32, %c0_i32_0 : i32, i32
  }
  func.func @transform_6(%arg0: i32) -> (i32, i32) {
    %c0_i32 = arith.constant 0 : i32
    %c0_i32_0 = arith.constant 0 : i32
    %c0_i32_1 = arith.constant 0 : i32
    return %c0_i32, %c0_i32_0 : i32, i32
  }
  func.func @transform_7(%arg0: i32) -> (i32, i32) {
    %c0_i32 = arith.constant 0 : i32
    %c0_i32_0 = arith.constant 0 : i32
    %c0_i32_1 = arith.constant 0 : i32
    return %c0_i32, %c0_i32_0 : i32, i32
  }
  func.func @transform_8(%arg0: i32) -> (i32, i32) {
    %c0_i32 = arith.constant 0 : i32
    %c0_i32_0 = arith.constant 0 : i32
    %c0_i32_1 = arith.constant 0 : i32
    return %c0_i32, %c0_i32_0 : i32, i32
  }
  func.func @transform_9(%arg0: i32) -> (i32, i32) {
    %c0_i32 = arith.constant 0 : i32
    %c0_i32_0 = arith.constant 0 : i32
    %c0_i32_1 = arith.constant 0 : i32
    return %c0_i32, %c0_i32_0 : i32, i32
  }
  func.func @transform_10(%arg0: i32) -> (i32, i32) {
    %c0_i32 = arith.constant 0 : i32
    %c0_i32_0 = arith.constant 0 : i32
    %c0_i32_1 = arith.constant 0 : i32
    return %c0_i32, %c0_i32_0 : i32, i32
  }
  func.func @transform_11(%arg0: i32) -> (i32, i32) {
    %c0_i32 = arith.constant 0 : i32
    %c0_i32_0 = arith.constant 0 : i32
    %c0_i32_1 = arith.constant 0 : i32
    return %c0_i32, %c0_i32_0 : i32, i32
  }
  func.func @transform_12(%arg0: i32) -> (i32, i32) {
    %c0_i32 = arith.constant 0 : i32
    %c0_i32_0 = arith.constant 0 : i32
    %c0_i32_1 = arith.constant 0 : i32
    return %c0_i32, %c0_i32_0 : i32, i32
  }
  func.func @transform_13(%arg0: i32) -> (i32, i32) {
    %c0_i32 = arith.constant 0 : i32
    %c0_i32_0 = arith.constant 0 : i32
    %c0_i32_1 = arith.constant 0 : i32
    return %c0_i32, %c0_i32_0 : i32, i32
  }
  func.func @transform_14(%arg0: i32) -> (i32, i32) {
    %c0_i32 = arith.constant 0 : i32
    %c0_i32_0 = arith.constant 0 : i32
    %c0_i32_1 = arith.constant 0 : i32
    return %c0_i32, %c0_i32_0 : i32, i32
  }
  func.func @transform_15(%arg0: i32) -> (i32, i32) {
    %c0_i32 = arith.constant 0 : i32
    %c0_i32_0 = arith.constant 0 : i32
    %c0_i32_1 = arith.constant 0 : i32
    return %c0_i32, %c0_i32_0 : i32, i32
  }
  func.func @transform_16(%arg0: i32) -> (i32, i32) {
    %c0_i32 = arith.constant 0 : i32
    %c0_i32_0 = arith.constant 0 : i32
    %c0_i32_1 = arith.constant 0 : i32
    return %c0_i32, %c0_i32_0 : i32, i32
  }
  func.func @transform_17(%arg0: i32) -> (i32, i32) {
    %c0_i32 = arith.constant 0 : i32
    %c0_i32_0 = arith.constant 0 : i32
    %c0_i32_1 = arith.constant 0 : i32
    return %c0_i32, %c0_i32_0 : i32, i32
  }
  func.func @transform_18(%arg0: i32) -> (i32, i32) {
    %c0_i32 = arith.constant 0 : i32
    %c0_i32_0 = arith.constant 0 : i32
    %c0_i32_1 = arith.constant 0 : i32
    return %c0_i32, %c0_i32_0 : i32, i32
  }
  func.func @transform_19(%arg0: i32) -> (i32, i32) {
    %c0_i32 = arith.constant 0 : i32
    %c0_i32_0 = arith.constant 0 : i32
    %c0_i32_1 = arith.constant 0 : i32
    return %c0_i32, %c0_i32_0 : i32, i32
  }
  func.func @transform_20(%arg0: i32) -> (i32, i32) {
    %c0_i32 = arith.constant 0 : i32
    %c0_i32_0 = arith.constant 0 : i32
    %c0_i32_1 = arith.constant 0 : i32
    return %c0_i32, %c0_i32_0 : i32, i32
  }
  func.func @transform_21(%arg0: i32) -> (i32, i32) {
    %c0_i32 = arith.constant 0 : i32
    %c0_i32_0 = arith.constant 0 : i32
    %c0_i32_1 = arith.constant 0 : i32
    return %c0_i32, %c0_i32_0 : i32, i32
  }
  func.func @transform_22(%arg0: i32) -> (i32, i32) {
    %c0_i32 = arith.constant 0 : i32
    %c0_i32_0 = arith.constant 0 : i32
    %c0_i32_1 = arith.constant 0 : i32
    return %c0_i32, %c0_i32_0 : i32, i32
  }
  func.func @transform_23(%arg0: i32) -> (i32, i32) {
    %c0_i32 = arith.constant 0 : i32
    %c0_i32_0 = arith.constant 0 : i32
    %c0_i32_1 = arith.constant 0 : i32
    return %c0_i32, %c0_i32_0 : i32, i32
  }
  func.func @transform_24(%arg0: i32) -> (i32, i32) {
    %c0_i32 = arith.constant 0 : i32
    %c0_i32_0 = arith.constant 0 : i32
    %c0_i32_1 = arith.constant 0 : i32
    return %c0_i32, %c0_i32_0 : i32, i32
  }
  func.func @transform_25(%arg0: i32) -> (i32, i32, i32) {
    %c0_i32 = arith.constant 0 : i32
    %c0_i32_0 = arith.constant 0 : i32
    %c0_i32_1 = arith.constant 0 : i32
    return %arg0, %c0_i32, %c0_i32_0 : i32, i32, i32
  }
}

</mosaic_0001>

<llo_original>
// kernel: cnn_network_forward.1
$region0: #{cnn_network_forward.1}
  #allocation0 [shape = 'u32[]', space=smem, size = 0x4, offset = 0x4, fixed_abs, tag = 'smem constant byte address 0x4 - core index']
  #allocation1 [shape = 'u32[144,128]{1,0:T(1,128)}', space=vmem, size = 0x12000, scoped, tag = 'internal scratch']
  #allocation2 [shape = 'f32[1,1]{1,0:T(1,128)S(1)}', space=vmem, size = 0x200, scoped, tag = 'scoped memory for cnn_network_forward.1']
  #allocation3 [shape = 'f32[1,1]{1,0:T(1,128)S(1)}', space=vmem, size = 0x200, scoped, tag = 'scoped memory for cnn_network_forward.1']
  %s0 = inlined_call_operand.vmem [shape: f32[2,16,1280], index: 0, kind: input, shape index: {}]
  %s1 = inlined_call_operand.vmem [shape: f32[1280,256], index: 1, kind: input, shape index: {}]
  %s2 = inlined_call_operand.vmem [shape: f32[1,256], index: 2, kind: input, shape index: {}]
  %s3 = inlined_call_operand.vmem [shape: f32[1,256], index: 3, kind: input, shape index: {}]
  %s4 = inlined_call_operand.vmem [shape: f32[1,256], index: 4, kind: input, shape index: {}]
  %s5 = inlined_call_operand.vmem [shape: f32[256,768], index: 5, kind: input, shape index: {}]
  %s6 = inlined_call_operand.vmem [shape: f32[1,768], index: 6, kind: input, shape index: {}]
  %s7 = inlined_call_operand.vmem [shape: f32[256,256], index: 7, kind: input, shape index: {}]
  %s8 = inlined_call_operand.vmem [shape: f32[1,256], index: 8, kind: input, shape index: {}]
  %s9 = inlined_call_operand.vmem [shape: f32[1,256], index: 9, kind: input, shape index: {}]
  %s10 = inlined_call_operand.vmem [shape: f32[1,256], index: 10, kind: input, shape index: {}]
  %s11 = inlined_call_operand.vmem [shape: f32[256,1024], index: 11, kind: input, shape index: {}]
  %s12 = inlined_call_operand.vmem [shape: f32[1,1024], index: 12, kind: input, shape index: {}]
  %s13 = inlined_call_operand.vmem [shape: f32[1024,256], index: 13, kind: input, shape index: {}]
  %s14 = inlined_call_operand.vmem [shape: f32[1,256], index: 14, kind: input, shape index: {}]
  %s15 = inlined_call_operand.vmem [shape: f32[1,256], index: 15, kind: input, shape index: {}]
  %s16 = inlined_call_operand.vmem [shape: f32[1,256], index: 16, kind: input, shape index: {}]
  %s17 = inlined_call_operand.vmem [shape: f32[1,256], index: 17, kind: input, shape index: {}]
  %s18 = inlined_call_operand.vmem [shape: f32[1,256], index: 18, kind: input, shape index: {}]
  %s19 = inlined_call_operand.vmem [shape: f32[256,256], index: 19, kind: input, shape index: {}]
  %s20 = inlined_call_operand.vmem [shape: f32[1,256], index: 20, kind: input, shape index: {}]
  %s21 = inlined_call_operand.vmem [shape: f32[1,128], index: 21, kind: input, shape index: {}]
  %s22 = inlined_call_operand.<no memory space> [shape: f32[1,1], index: 22, kind: input, shape index: {}]
  %s23 = inlined_call_operand.vmem [shape: f32[1,128], index: 23, kind: input, shape index: {}]
  %s24 = inlined_call_operand.<no memory space> [shape: f32[1,1], index: 24, kind: input, shape index: {}]
  %s25 = inlined_call_operand.vmem [shape: f32[2,2,16], index: 25, kind: output, shape index: {}]
  %s26 = sld [smem:[#allocation0]]
  $region133: #{cnn_network_forward.1} parent=0
    _
  %s28 = ssub.s32 1, %s26
  %s29 = scalar_select 0, %s28, %s26
  %v30 = vstv %s22
  %31 = vst [vmem:[#allocation2] sm:$0x1] %v30
  %v32 = vstv %s24
  %33 = vst [vmem:[#allocation3] sm:$0x1] %v32
  loop: start=0, step=1, limit=4
  $region2: #{cnn_network_forward.1} parent=0 // loop_pre_header
    _
  $region3: #{cnn_network_forward.1} parent=0 // loop_header
    %s35 = sphi 0, %s39
    %p36 = scmp.ge.s32.totalorder %s35, 4
    %s45 = sphi 0, %s47
    %s48 = sphi 0, %s45
    %s49 = sphi 0, %s48
    %s65 = sphi 0, %s49
    %s69 = sphi 0, %s69
    %s71 = sphi 0, %s69
    %s72 = sphi 0, %s71
    %s86 = sphi 0, %s72
    %s90 = sphi 0, %s90
    %s92 = sphi 0, %s90
    %s93 = sphi 0, %s92
    %s107 = sphi 0, %s93
    %s111 = sphi 0, %s111
    %s113 = sphi 0, %s111
    %s114 = sphi 0, %s113
    %s128 = sphi 0, %s114
    %s132 = sphi 0, %s132
    %s134 = sphi 0, %s132
    %s135 = sphi 0, %s134
    %s149 = sphi 0, %s135
    %s153 = sphi 0, %s153
    %s155 = sphi 0, %s153
    %s156 = sphi 0, %s155
    %s170 = sphi 0, %s156
    %s174 = sphi 0, %s174
    %s176 = sphi 0, %s174
    %s177 = sphi 0, %s176
    %s191 = sphi 0, %s177
    %s195 = sphi 0, %s195
    %s197 = sphi 0, %s195
    %s198 = sphi 0, %s197
    %s212 = sphi 0, %s198
    %s216 = sphi 0, %s216
    %s218 = sphi 0, %s216
    %s219 = sphi 0, %s218
    %s233 = sphi 0, %s219
    %s237 = sphi 0, %s237
    %s239 = sphi 0, %s237
    %s240 = sphi 0, %s239
    %s254 = sphi 0, %s240
    %s258 = sphi 0, %s258
    %s260 = sphi 0, %s258
    %s261 = sphi 0, %s260
    %s275 = sphi 0, %s261
    %s279 = sphi 0, %s279
    %s281 = sphi 0, %s279
    %s282 = sphi 0, %s281
    %s296 = sphi 0, %s282
    %s300 = sphi 0, %s300
    %s302 = sphi 0, %s300
    %s303 = sphi 0, %s302
    %s317 = sphi 0, %s303
    %s321 = sphi 0, %s321
    %s323 = sphi 0, %s321
    %s324 = sphi 0, %s323
    %s338 = sphi 0, %s324
    %s342 = sphi 0, %s342
    %s344 = sphi 0, %s342
    %s345 = sphi 0, %s344
    %s359 = sphi 0, %s345
    %s363 = sphi 0, %s363
    %s365 = sphi 0, %s363
    %s366 = sphi 0, %s365
    %s380 = sphi 0, %s366
    %s384 = sphi 0, %s384
    %s386 = sphi 0, %s384
    %s387 = sphi 0, %s386
    %s401 = sphi 0, %s387
    %s405 = sphi 0, %s405
    %s407 = sphi 0, %s405
    %s408 = sphi 0, %s407
    %s422 = sphi 0, %s408
    %s426 = sphi 0, %s426
    %s428 = sphi 0, %s426
    %s429 = sphi 0, %s428
    %s443 = sphi 0, %s429
    %s447 = sphi 0, %s447
    %s449 = sphi 0, %s447
    %s450 = sphi 0, %s449
    %s464 = sphi 0, %s450
    %s468 = sphi 0, %s468
    %s470 = sphi 0, %s468
    %s471 = sphi 0, %s470
    %s485 = sphi 0, %s471
    %s489 = sphi 0, %s489
    %s491 = sphi 0, %s489
    %s492 = sphi 0, %s491
    %s506 = sphi 0, %s492
    %s510 = sphi 0, %s510
    %s512 = sphi 0, %s510
    %s513 = sphi 0, %s512
    %s527 = sphi 0, %s513
    %s531 = sphi 0, %s531
    %s533 = sphi 0, %s531
    %s534 = sphi 0, %s533
    %s548 = sphi 0, %s534
    %s552 = sphi 0, %s552
    %s554 = sphi 0, %s552
    %s555 = sphi 0, %s554
    %s569 = sphi 0, %s555
    %s575 = sphi 0, %s577
    %s578 = sphi 0, %s575
    %s579 = sphi 0, %s578
    %s595 = sphi 0, %s579
  $region4: #{cnn_network_forward.1} parent=0 // loop_header_branch
    %38 = sbr.rel (%p36) target = $region8
  $region5: #{cnn_network_forward.1} parent=0 // loop_body
    %s40 = ssub.s32 %s35, 1
    %s41 = ssub.s32 %s35, 2
    %s42 = sadd.s32 %s35, 1
    %s43 = ssub.s32 %s35, %s42
    %p44 = scmp.eq.s32.totalorder %s43, 0
    %s46 = sadd.s32 %s45, 1
    %s47 = scalar_select %p44, %s45, %s46
    %p50 = pneg %p44
    %p51 = scmp.eq.s32.totalorder %s35, 1
    %p52 = por %p50, %p51
    %p53 = scmp.ne.s32.totalorder %s45, %s48
    %p54 = scmp.eq.s32.totalorder %s35, 0
    %p55 = por %p53, %p54
    %p56 = scmp.ne.s32.totalorder %s45, %s48
    %p57 = scmp.eq.s32.totalorder %s40, 1
    %p58 = por %p56, %p57
    %p59 = scmp.ne.s32.totalorder %s48, %s49
    %p60 = scmp.eq.s32.totalorder %s40, 0
    %p61 = por %p59, %p60
    %p62 = scmp.ne.s32.totalorder %s48, %s49
    %p63 = scmp.eq.s32.totalorder %s41, 1
    %p64 = por %p62, %p63
    %p66 = scmp.ne.s32.totalorder %s49, %s65
    %p67 = scmp.eq.s32.totalorder %s41, 0
    %p68 = por %p66, %p67
    %s70 = sadd.s32 %s69, 1
    %p73 = scmp.eq.s32.totalorder %s35, 1
    %p74 = scmp.ne.s32.totalorder %s69, %s71
    %p75 = scmp.eq.s32.totalorder %s35, 0
    %p76 = por %p74, %p75
    %p77 = scmp.ne.s32.totalorder %s69, %s71
    %p78 = scmp.eq.s32.totalorder %s40, 1
    %p79 = por %p77, %p78
    %p80 = scmp.ne.s32.totalorder %s71, %s72
    %p81 = scmp.eq.s32.totalorder %s40, 0
    %p82 = por %p80, %p81
    %p83 = scmp.ne.s32.totalorder %s71, %s72
    %p84 = scmp.eq.s32.totalorder %s41, 1
    %p85 = por %p83, %p84
    %p87 = scmp.ne.s32.totalorder %s72, %s86
    %p88 = scmp.eq.s32.totalorder %s41, 0
    %p89 = por %p87, %p88
    %s91 = sadd.s32 %s90, 1
    %p94 = scmp.eq.s32.totalorder %s35, 1
    %p95 = scmp.ne.s32.totalorder %s90, %s92
    %p96 = scmp.eq.s32.totalorder %s35, 0
    %p97 = por %p95, %p96
    %p98 = scmp.ne.s32.totalorder %s90, %s92
    %p99 = scmp.eq.s32.totalorder %s40, 1
    %p100 = por %p98, %p99
    %p101 = scmp.ne.s32.totalorder %s92, %s93
    %p102 = scmp.eq.s32.totalorder %s40, 0
    %p103 = por %p101, %p102
    %p104 = scmp.ne.s32.totalorder %s92, %s93
    %p105 = scmp.eq.s32.totalorder %s41, 1
    %p106 = por %p104, %p105
    %p108 = scmp.ne.s32.totalorder %s93, %s107
    %p109 = scmp.eq.s32.totalorder %s41, 0
    %p110 = por %p108, %p109
    %s112 = sadd.s32 %s111, 1
    %p115 = scmp.eq.s32.totalorder %s35, 1
    %p116 = scmp.ne.s32.totalorder %s111, %s113
    %p117 = scmp.eq.s32.totalorder %s35, 0
    %p118 = por %p116, %p117
    %p119 = scmp.ne.s32.totalorder %s111, %s113
    %p120 = scmp.eq.s32.totalorder %s40, 1
    %p121 = por %p119, %p120
    %p122 = scmp.ne.s32.totalorder %s113, %s114
    %p123 = scmp.eq.s32.totalorder %s40, 0
    %p124 = por %p122, %p123
    %p125 = scmp.ne.s32.totalorder %s113, %s114
    %p126 = scmp.eq.s32.totalorder %s41, 1
    %p127 = por %p125, %p126
    %p129 = scmp.ne.s32.totalorder %s114, %s128
    %p130 = scmp.eq.s32.totalorder %s41, 0
    %p131 = por %p129, %p130
    %s133 = sadd.s32 %s132, 1
    %p136 = scmp.eq.s32.totalorder %s35, 1
    %p137 = scmp.ne.s32.totalorder %s132, %s134
    %p138 = scmp.eq.s32.totalorder %s35, 0
    %p139 = por %p137, %p138
    %p140 = scmp.ne.s32.totalorder %s132, %s134
    %p141 = scmp.eq.s32.totalorder %s40, 1
    %p142 = por %p140, %p141
    %p143 = scmp.ne.s32.totalorder %s134, %s135
    %p144 = scmp.eq.s32.totalorder %s40, 0
    %p145 = por %p143, %p144
    %p146 = scmp.ne.s32.totalorder %s134, %s135
    %p147 = scmp.eq.s32.totalorder %s41, 1
    %p148 = por %p146, %p147
    %p150 = scmp.ne.s32.totalorder %s135, %s149
    %p151 = scmp.eq.s32.totalorder %s41, 0
    %p152 = por %p150, %p151
    %s154 = sadd.s32 %s153, 1
    %p157 = scmp.eq.s32.totalorder %s35, 1
    %p158 = scmp.ne.s32.totalorder %s153, %s155
    %p159 = scmp.eq.s32.totalorder %s35, 0
    %p160 = por %p158, %p159
    %p161 = scmp.ne.s32.totalorder %s153, %s155
    %p162 = scmp.eq.s32.totalorder %s40, 1
    %p163 = por %p161, %p162
    %p164 = scmp.ne.s32.totalorder %s155, %s156
    %p165 = scmp.eq.s32.totalorder %s40, 0
    %p166 = por %p164, %p165
    %p167 = scmp.ne.s32.totalorder %s155, %s156
    %p168 = scmp.eq.s32.totalorder %s41, 1
    %p169 = por %p167, %p168
    %p171 = scmp.ne.s32.totalorder %s156, %s170
    %p172 = scmp.eq.s32.totalorder %s41, 0
    %p173 = por %p171, %p172
    %s175 = sadd.s32 %s174, 1
    %p178 = scmp.eq.s32.totalorder %s35, 1
    %p179 = scmp.ne.s32.totalorder %s174, %s176
    %p180 = scmp.eq.s32.totalorder %s35, 0
    %p181 = por %p179, %p180
    %p182 = scmp.ne.s32.totalorder %s174, %s176
    %p183 = scmp.eq.s32.totalorder %s40, 1
    %p184 = por %p182, %p183
    %p185 = scmp.ne.s32.totalorder %s176, %s177
    %p186 = scmp.eq.s32.totalorder %s40, 0
    %p187 = por %p185, %p186
    %p188 = scmp.ne.s32.totalorder %s176, %s177
    %p189 = scmp.eq.s32.totalorder %s41, 1
    %p190 = por %p188, %p189
    %p192 = scmp.ne.s32.totalorder %s177, %s191
    %p193 = scmp.eq.s32.totalorder %s41, 0
    %p194 = por %p192, %p193
    %s196 = sadd.s32 %s195, 1
    %p199 = scmp.eq.s32.totalorder %s35, 1
    %p200 = scmp.ne.s32.totalorder %s195, %s197
    %p201 = scmp.eq.s32.totalorder %s35, 0
    %p202 = por %p200, %p201
    %p203 = scmp.ne.s32.totalorder %s195, %s197
    %p204 = scmp.eq.s32.totalorder %s40, 1
    %p205 = por %p203, %p204
    %p206 = scmp.ne.s32.totalorder %s197, %s198
    %p207 = scmp.eq.s32.totalorder %s40, 0
    %p208 = por %p206, %p207
    %p209 = scmp.ne.s32.totalorder %s197, %s198
    %p210 = scmp.eq.s32.totalorder %s41, 1
    %p211 = por %p209, %p210
    %p213 = scmp.ne.s32.totalorder %s198, %s212
    %p214 = scmp.eq.s32.totalorder %s41, 0
    %p215 = por %p213, %p214
    %s217 = sadd.s32 %s216, 1
    %p220 = scmp.eq.s32.totalorder %s35, 1
    %p221 = scmp.ne.s32.totalorder %s216, %s218
    %p222 = scmp.eq.s32.totalorder %s35, 0
    %p223 = por %p221, %p222
    %p224 = scmp.ne.s32.totalorder %s216, %s218
    %p225 = scmp.eq.s32.totalorder %s40, 1
    %p226 = por %p224, %p225
    %p227 = scmp.ne.s32.totalorder %s218, %s219
    %p228 = scmp.eq.s32.totalorder %s40, 0
    %p229 = por %p227, %p228
    %p230 = scmp.ne.s32.totalorder %s218, %s219
    %p231 = scmp.eq.s32.totalorder %s41, 1
    %p232 = por %p230, %p231
    %p234 = scmp.ne.s32.totalorder %s219, %s233
    %p235 = scmp.eq.s32.totalorder %s41, 0
    %p236 = por %p234, %p235
    %s238 = sadd.s32 %s237, 1
    %p241 = scmp.eq.s32.totalorder %s35, 1
    %p242 = scmp.ne.s32.totalorder %s237, %s239
    %p243 = scmp.eq.s32.totalorder %s35, 0
    %p244 = por %p242, %p243
    %p245 = scmp.ne.s32.totalorder %s237, %s239
    %p246 = scmp.eq.s32.totalorder %s40, 1
    %p247 = por %p245, %p246
    %p248 = scmp.ne.s32.totalorder %s239, %s240
    %p249 = scmp.eq.s32.totalorder %s40, 0
    %p250 = por %p248, %p249
    %p251 = scmp.ne.s32.totalorder %s239, %s240
    %p252 = scmp.eq.s32.totalorder %s41, 1
    %p253 = por %p251, %p252
    %p255 = scmp.ne.s32.totalorder %s240, %s254
    %p256 = scmp.eq.s32.totalorder %s41, 0
    %p257 = por %p255, %p256
    %s259 = sadd.s32 %s258, 1
    %p262 = scmp.eq.s32.totalorder %s35, 1
    %p263 = scmp.ne.s32.totalorder %s258, %s260
    %p264 = scmp.eq.s32.totalorder %s35, 0
    %p265 = por %p263, %p264
    %p266 = scmp.ne.s32.totalorder %s258, %s260
    %p267 = scmp.eq.s32.totalorder %s40, 1
    %p268 = por %p266, %p267
    %p269 = scmp.ne.s32.totalorder %s260, %s261
    %p270 = scmp.eq.s32.totalorder %s40, 0
    %p271 = por %p269, %p270
    %p272 = scmp.ne.s32.totalorder %s260, %s261
    %p273 = scmp.eq.s32.totalorder %s41, 1
    %p274 = por %p272, %p273
    %p276 = scmp.ne.s32.totalorder %s261, %s275
    %p277 = scmp.eq.s32.totalorder %s41, 0
    %p278 = por %p276, %p277
    %s280 = sadd.s32 %s279, 1
    %p283 = scmp.eq.s32.totalorder %s35, 1
    %p284 = scmp.ne.s32.totalorder %s279, %s281
    %p285 = scmp.eq.s32.totalorder %s35, 0
    %p286 = por %p284, %p285
    %p287 = scmp.ne.s32.totalorder %s279, %s281
    %p288 = scmp.eq.s32.totalorder %s40, 1
    %p289 = por %p287, %p288
    %p290 = scmp.ne.s32.totalorder %s281, %s282
    %p291 = scmp.eq.s32.totalorder %s40, 0
    %p292 = por %p290, %p291
    %p293 = scmp.ne.s32.totalorder %s281, %s282
    %p294 = scmp.eq.s32.totalorder %s41, 1
    %p295 = por %p293, %p294
    %p297 = scmp.ne.s32.totalorder %s282, %s296
    %p298 = scmp.eq.s32.totalorder %s41, 0
    %p299 = por %p297, %p298
    %s301 = sadd.s32 %s300, 1
    %p304 = scmp.eq.s32.totalorder %s35, 1
    %p305 = scmp.ne.s32.totalorder %s300, %s302
    %p306 = scmp.eq.s32.totalorder %s35, 0
    %p307 = por %p305, %p306
    %p308 = scmp.ne.s32.totalorder %s300, %s302
    %p309 = scmp.eq.s32.totalorder %s40, 1
    %p310 = por %p308, %p309
    %p311 = scmp.ne.s32.totalorder %s302, %s303
    %p312 = scmp.eq.s32.totalorder %s40, 0
    %p313 = por %p311, %p312
    %p314 = scmp.ne.s32.totalorder %s302, %s303
    %p315 = scmp.eq.s32.totalorder %s41, 1
    %p316 = por %p314, %p315
    %p318 = scmp.ne.s32.totalorder %s303, %s317
    %p319 = scmp.eq.s32.totalorder %s41, 0
    %p320 = por %p318, %p319
    %s322 = sadd.s32 %s321, 1
    %p325 = scmp.eq.s32.totalorder %s35, 1
    %p326 = scmp.ne.s32.totalorder %s321, %s323
    %p327 = scmp.eq.s32.totalorder %s35, 0
    %p328 = por %p326, %p327
    %p329 = scmp.ne.s32.totalorder %s321, %s323
    %p330 = scmp.eq.s32.totalorder %s40, 1
    %p331 = por %p329, %p330
    %p332 = scmp.ne.s32.totalorder %s323, %s324
    %p333 = scmp.eq.s32.totalorder %s40, 0
    %p334 = por %p332, %p333
    %p335 = scmp.ne.s32.totalorder %s323, %s324
    %p336 = scmp.eq.s32.totalorder %s41, 1
    %p337 = por %p335, %p336
    %p339 = scmp.ne.s32.totalorder %s324, %s338
    %p340 = scmp.eq.s32.totalorder %s41, 0
    %p341 = por %p339, %p340
    %s343 = sadd.s32 %s342, 1
    %p346 = scmp.eq.s32.totalorder %s35, 1
    %p347 = scmp.ne.s32.totalorder %s342, %s344
    %p348 = scmp.eq.s32.totalorder %s35, 0
    %p349 = por %p347, %p348
    %p350 = scmp.ne.s32.totalorder %s342, %s344
    %p351 = scmp.eq.s32.totalorder %s40, 1
    %p352 = por %p350, %p351
    %p353 = scmp.ne.s32.totalorder %s344, %s345
    %p354 = scmp.eq.s32.totalorder %s40, 0
    %p355 = por %p353, %p354
    %p356 = scmp.ne.s32.totalorder %s344, %s345
    %p357 = scmp.eq.s32.totalorder %s41, 1
    %p358 = por %p356, %p357
    %p360 = scmp.ne.s32.totalorder %s345, %s359
    %p361 = scmp.eq.s32.totalorder %s41, 0
    %p362 = por %p360, %p361
    %s364 = sadd.s32 %s363, 1
    %p367 = scmp.eq.s32.totalorder %s35, 1
    %p368 = scmp.ne.s32.totalorder %s363, %s365
    %p369 = scmp.eq.s32.totalorder %s35, 0
    %p370 = por %p368, %p369
    %p371 = scmp.ne.s32.totalorder %s363, %s365
    %p372 = scmp.eq.s32.totalorder %s40, 1
    %p373 = por %p371, %p372
    %p374 = scmp.ne.s32.totalorder %s365, %s366
    %p375 = scmp.eq.s32.totalorder %s40, 0
    %p376 = por %p374, %p375
    %p377 = scmp.ne.s32.totalorder %s365, %s366
    %p378 = scmp.eq.s32.totalorder %s41, 1
    %p379 = por %p377, %p378
    %p381 = scmp.ne.s32.totalorder %s366, %s380
    %p382 = scmp.eq.s32.totalorder %s41, 0
    %p383 = por %p381, %p382
    %s385 = sadd.s32 %s384, 1
    %p388 = scmp.eq.s32.totalorder %s35, 1
    %p389 = scmp.ne.s32.totalorder %s384, %s386
    %p390 = scmp.eq.s32.totalorder %s35, 0
    %p391 = por %p389, %p390
    %p392 = scmp.ne.s32.totalorder %s384, %s386
    %p393 = scmp.eq.s32.totalorder %s40, 1
    %p394 = por %p392, %p393
    %p395 = scmp.ne.s32.totalorder %s386, %s387
    %p396 = scmp.eq.s32.totalorder %s40, 0
    %p397 = por %p395, %p396
    %p398 = scmp.ne.s32.totalorder %s386, %s387
    %p399 = scmp.eq.s32.totalorder %s41, 1
    %p400 = por %p398, %p399
    %p402 = scmp.ne.s32.totalorder %s387, %s401
    %p403 = scmp.eq.s32.totalorder %s41, 0
    %p404 = por %p402, %p403
    %s406 = sadd.s32 %s405, 1
    %p409 = scmp.eq.s32.totalorder %s35, 1
    %p410 = scmp.ne.s32.totalorder %s405, %s407
    %p411 = scmp.eq.s32.totalorder %s35, 0
    %p412 = por %p410, %p411
    %p413 = scmp.ne.s32.totalorder %s405, %s407
    %p414 = scmp.eq.s32.totalorder %s40, 1
    %p415 = por %p413, %p414
    %p416 = scmp.ne.s32.totalorder %s407, %s408
    %p417 = scmp.eq.s32.totalorder %s40, 0
    %p418 = por %p416, %p417
    %p419 = scmp.ne.s32.totalorder %s407, %s408
    %p420 = scmp.eq.s32.totalorder %s41, 1
    %p421 = por %p419, %p420
    %p423 = scmp.ne.s32.totalorder %s408, %s422
    %p424 = scmp.eq.s32.totalorder %s41, 0
    %p425 = por %p423, %p424
    %s427 = sadd.s32 %s426, 1
    %p430 = scmp.eq.s32.totalorder %s35, 1
    %p431 = scmp.ne.s32.totalorder %s426, %s428
    %p432 = scmp.eq.s32.totalorder %s35, 0
    %p433 = por %p431, %p432
    %p434 = scmp.ne.s32.totalorder %s426, %s428
    %p435 = scmp.eq.s32.totalorder %s40, 1
    %p436 = por %p434, %p435
    %p437 = scmp.ne.s32.totalorder %s428, %s429
    %p438 = scmp.eq.s32.totalorder %s40, 0
    %p439 = por %p437, %p438
    %p440 = scmp.ne.s32.totalorder %s428, %s429
    %p441 = scmp.eq.s32.totalorder %s41, 1
    %p442 = por %p440, %p441
    %p444 = scmp.ne.s32.totalorder %s429, %s443
    %p445 = scmp.eq.s32.totalorder %s41, 0
    %p446 = por %p444, %p445
    %s448 = sadd.s32 %s447, 1
    %p451 = scmp.eq.s32.totalorder %s35, 1
    %p452 = scmp.ne.s32.totalorder %s447, %s449
    %p453 = scmp.eq.s32.totalorder %s35, 0
    %p454 = por %p452, %p453
    %p455 = scmp.ne.s32.totalorder %s447, %s449
    %p456 = scmp.eq.s32.totalorder %s40, 1
    %p457 = por %p455, %p456
    %p458 = scmp.ne.s32.totalorder %s449, %s450
    %p459 = scmp.eq.s32.totalorder %s40, 0
    %p460 = por %p458, %p459
    %p461 = scmp.ne.s32.totalorder %s449, %s450
    %p462 = scmp.eq.s32.totalorder %s41, 1
    %p463 = por %p461, %p462
    %p465 = scmp.ne.s32.totalorder %s450, %s464
    %p466 = scmp.eq.s32.totalorder %s41, 0
    %p467 = por %p465, %p466
    %s469 = sadd.s32 %s468, 1
    %p472 = scmp.eq.s32.totalorder %s35, 1
    %p473 = scmp.ne.s32.totalorder %s468, %s470
    %p474 = scmp.eq.s32.totalorder %s35, 0
    %p475 = por %p473, %p474
    %p476 = scmp.ne.s32.totalorder %s468, %s470
    %p477 = scmp.eq.s32.totalorder %s40, 1
    %p478 = por %p476, %p477
    %p479 = scmp.ne.s32.totalorder %s470, %s471
    %p480 = scmp.eq.s32.totalorder %s40, 0
    %p481 = por %p479, %p480
    %p482 = scmp.ne.s32.totalorder %s470, %s471
    %p483 = scmp.eq.s32.totalorder %s41, 1
    %p484 = por %p482, %p483
    %p486 = scmp.ne.s32.totalorder %s471, %s485
    %p487 = scmp.eq.s32.totalorder %s41, 0
    %p488 = por %p486, %p487
    %s490 = sadd.s32 %s489, 1
    %p493 = scmp.eq.s32.totalorder %s35, 1
    %p494 = scmp.ne.s32.totalorder %s489, %s491
    %p495 = scmp.eq.s32.totalorder %s35, 0
    %p496 = por %p494, %p495
    %p497 = scmp.ne.s32.totalorder %s489, %s491
    %p498 = scmp.eq.s32.totalorder %s40, 1
    %p499 = por %p497, %p498
    %p500 = scmp.ne.s32.totalorder %s491, %s492
    %p501 = scmp.eq.s32.totalorder %s40, 0
    %p502 = por %p500, %p501
    %p503 = scmp.ne.s32.totalorder %s491, %s492
    %p504 = scmp.eq.s32.totalorder %s41, 1
    %p505 = por %p503, %p504
    %p507 = scmp.ne.s32.totalorder %s492, %s506
    %p508 = scmp.eq.s32.totalorder %s41, 0
    %p509 = por %p507, %p508
    %s511 = sadd.s32 %s510, 1
    %p514 = scmp.eq.s32.totalorder %s35, 1
    %p515 = scmp.ne.s32.totalorder %s510, %s512
    %p516 = scmp.eq.s32.totalorder %s35, 0
    %p517 = por %p515, %p516
    %p518 = scmp.ne.s32.totalorder %s510, %s512
    %p519 = scmp.eq.s32.totalorder %s40, 1
    %p520 = por %p518, %p519
    %p521 = scmp.ne.s32.totalorder %s512, %s513
    %p522 = scmp.eq.s32.totalorder %s40, 0
    %p523 = por %p521, %p522
    %p524 = scmp.ne.s32.totalorder %s512, %s513
    %p525 = scmp.eq.s32.totalorder %s41, 1
    %p526 = por %p524, %p525
    %p528 = scmp.ne.s32.totalorder %s513, %s527
    %p529 = scmp.eq.s32.totalorder %s41, 0
    %p530 = por %p528, %p529
    %s532 = sadd.s32 %s531, 1
    %p535 = scmp.eq.s32.totalorder %s35, 1
    %p536 = scmp.ne.s32.totalorder %s531, %s533
    %p537 = scmp.eq.s32.totalorder %s35, 0
    %p538 = por %p536, %p537
    %p539 = scmp.ne.s32.totalorder %s531, %s533
    %p540 = scmp.eq.s32.totalorder %s40, 1
    %p541 = por %p539, %p540
    %p542 = scmp.ne.s32.totalorder %s533, %s534
    %p543 = scmp.eq.s32.totalorder %s40, 0
    %p544 = por %p542, %p543
    %p545 = scmp.ne.s32.totalorder %s533, %s534
    %p546 = scmp.eq.s32.totalorder %s41, 1
    %p547 = por %p545, %p546
    %p549 = scmp.ne.s32.totalorder %s534, %s548
    %p550 = scmp.eq.s32.totalorder %s41, 0
    %p551 = por %p549, %p550
    %s553 = sadd.s32 %s552, 1
    %p556 = scmp.eq.s32.totalorder %s35, 1
    %p557 = scmp.ne.s32.totalorder %s552, %s554
    %p558 = scmp.eq.s32.totalorder %s35, 0
    %p559 = por %p557, %p558
    %p560 = scmp.ne.s32.totalorder %s552, %s554
    %p561 = scmp.eq.s32.totalorder %s40, 1
    %p562 = por %p560, %p561
    %p563 = scmp.ne.s32.totalorder %s554, %s555
    %p564 = scmp.eq.s32.totalorder %s40, 0
    %p565 = por %p563, %p564
    %p566 = scmp.ne.s32.totalorder %s554, %s555
    %p567 = scmp.eq.s32.totalorder %s41, 1
    %p568 = por %p566, %p567
    %p570 = scmp.ne.s32.totalorder %s555, %s569
    %p571 = scmp.eq.s32.totalorder %s41, 0
    %p572 = por %p570, %p571
    %s573 = ssub.s32 %s35, %s42
    %p574 = scmp.eq.s32.totalorder %s573, 0
    %s576 = sadd.s32 %s575, 1
    %s577 = scalar_select %p574, %s575, %s576
    %p580 = pneg %p574
    %p581 = scmp.eq.s32.totalorder %s35, 1
    %p582 = por %p580, %p581
    %p583 = scmp.ne.s32.totalorder %s575, %s578
    %p584 = scmp.eq.s32.totalorder %s35, 0
    %p585 = por %p583, %p584
    %p586 = scmp.ne.s32.totalorder %s575, %s578
    %p587 = scmp.eq.s32.totalorder %s40, 1
    %p588 = por %p586, %p587
    %p589 = scmp.ne.s32.totalorder %s578, %s579
    %p590 = scmp.eq.s32.totalorder %s40, 0
    %p591 = por %p589, %p590
    %p592 = scmp.ne.s32.totalorder %s578, %s579
    %p593 = scmp.eq.s32.totalorder %s41, 1
    %p594 = por %p592, %p593
    %p596 = scmp.ne.s32.totalorder %s579, %s595
    %p597 = scmp.eq.s32.totalorder %s41, 0
    %p598 = por %p596, %p597
    %p599 = scmp.le.s32.totalorder 1, %s35
    %p600 = scmp.lt.s32.totalorder %s35, 3
    %p601 = pnand %p599, %p600
    %p602 = pneg %p601
    // Predicated region
    $region9: #{cnn_network_forward.1} parent=5 // pred_check
      _
    $region10: #{cnn_network_forward.1} parent=5 // pred_check_branch
      %604 = sbr.rel (%p601) target = $region12
    $region11: #{cnn_network_forward.1} parent=5 // pred_region
      %s605 = ssub.s32 %s35, 1
      // Predicated region
      $region13: #{cnn_network_forward.1} parent=11 // pred_check
        %p606 = pneg %p82
      $region14: #{cnn_network_forward.1} parent=11 // pred_check_branch
        %608 = sbr.rel (%p606) target = $region16
      $region15: #{cnn_network_forward.1} parent=11 // pred_region
        _
      $region16: #{cnn_network_forward.1} parent=11 // pred_fallthru
        _
      // Predicated region
      $region17: #{cnn_network_forward.1} parent=11 // pred_check
        %p609 = pneg %p103
      $region18: #{cnn_network_forward.1} parent=11 // pred_check_branch
        %611 = sbr.rel (%p609) target = $region20
      $region19: #{cnn_network_forward.1} parent=11 // pred_region
        _
      $region20: #{cnn_network_forward.1} parent=11 // pred_fallthru
        _
      // Predicated region
      $region21: #{cnn_network_forward.1} parent=11 // pred_check
        %p612 = pneg %p124
      $region22: #{cnn_network_forward.1} parent=11 // pred_check_branch
        %614 = sbr.rel (%p612) target = $region24
      $region23: #{cnn_network_forward.1} parent=11 // pred_region
        _
      $region24: #{cnn_network_forward.1} parent=11 // pred_fallthru
        _
      // Predicated region
      $region25: #{cnn_network_forward.1} parent=11 // pred_check
        %p615 = pneg %p145
      $region26: #{cnn_network_forward.1} parent=11 // pred_check_branch
        %617 = sbr.rel (%p615) target = $region28
      $region27: #{cnn_network_forward.1} parent=11 // pred_region
        _
      $region28: #{cnn_network_forward.1} parent=11 // pred_fallthru
        _
      // Predicated region
      $region29: #{cnn_network_forward.1} parent=11 // pred_check
        %p618 = pneg %p166
      $region30: #{cnn_network_forward.1} parent=11 // pred_check_branch
        %620 = sbr.rel (%p618) target = $region32
      $region31: #{cnn_network_forward.1} parent=11 // pred_region
        _
      $region32: #{cnn_network_forward.1} parent=11 // pred_fallthru
        _
      // Predicated region
      $region33: #{cnn_network_forward.1} parent=11 // pred_check
        %p621 = pneg %p187
      $region34: #{cnn_network_forward.1} parent=11 // pred_check_branch
        %623 = sbr.rel (%p621) target = $region36
      $region35: #{cnn_network_forward.1} parent=11 // pred_region
        _
      $region36: #{cnn_network_forward.1} parent=11 // pred_fallthru
        _
      // Predicated region
      $region37: #{cnn_network_forward.1} parent=11 // pred_check
        %p624 = pneg %p208
      $region38: #{cnn_network_forward.1} parent=11 // pred_check_branch
        %626 = sbr.rel (%p624) target = $region40
      $region39: #{cnn_network_forward.1} parent=11 // pred_region
        _
      $region40: #{cnn_network_forward.1} parent=11 // pred_fallthru
        _
      // Predicated region
      $region41: #{cnn_network_forward.1} parent=11 // pred_check
        %p627 = pneg %p229
      $region42: #{cnn_network_forward.1} parent=11 // pred_check_branch
        %629 = sbr.rel (%p627) target = $region44
      $region43: #{cnn_network_forward.1} parent=11 // pred_region
        _
      $region44: #{cnn_network_forward.1} parent=11 // pred_fallthru
        _
      // Predicated region
      $region45: #{cnn_network_forward.1} parent=11 // pred_check
        %p630 = pneg %p250
      $region46: #{cnn_network_forward.1} parent=11 // pred_check_branch
        %632 = sbr.rel (%p630) target = $region48
      $region47: #{cnn_network_forward.1} parent=11 // pred_region
        _
      $region48: #{cnn_network_forward.1} parent=11 // pred_fallthru
        _
      // Predicated region
      $region49: #{cnn_network_forward.1} parent=11 // pred_check
        %p633 = pneg %p271
      $region50: #{cnn_network_forward.1} parent=11 // pred_check_branch
        %635 = sbr.rel (%p633) target = $region52
      $region51: #{cnn_network_forward.1} parent=11 // pred_region
        _
      $region52: #{cnn_network_forward.1} parent=11 // pred_fallthru
        _
      // Predicated region
      $region53: #{cnn_network_forward.1} parent=11 // pred_check
        %p636 = pneg %p292
      $region54: #{cnn_network_forward.1} parent=11 // pred_check_branch
        %638 = sbr.rel (%p636) target = $region56
      $region55: #{cnn_network_forward.1} parent=11 // pred_region
        _
      $region56: #{cnn_network_forward.1} parent=11 // pred_fallthru
        _
      // Predicated region
      $region57: #{cnn_network_forward.1} parent=11 // pred_check
        %p639 = pneg %p313
      $region58: #{cnn_network_forward.1} parent=11 // pred_check_branch
        %641 = sbr.rel (%p639) target = $region60
      $region59: #{cnn_network_forward.1} parent=11 // pred_region
        _
      $region60: #{cnn_network_forward.1} parent=11 // pred_fallthru
        _
      // Predicated region
      $region61: #{cnn_network_forward.1} parent=11 // pred_check
        %p642 = pneg %p334
      $region62: #{cnn_network_forward.1} parent=11 // pred_check_branch
        %644 = sbr.rel (%p642) target = $region64
      $region63: #{cnn_network_forward.1} parent=11 // pred_region
        _
      $region64: #{cnn_network_forward.1} parent=11 // pred_fallthru
        _
      // Predicated region
      $region65: #{cnn_network_forward.1} parent=11 // pred_check
        %p645 = pneg %p355
      $region66: #{cnn_network_forward.1} parent=11 // pred_check_branch
        %647 = sbr.rel (%p645) target = $region68
      $region67: #{cnn_network_forward.1} parent=11 // pred_region
        _
      $region68: #{cnn_network_forward.1} parent=11 // pred_fallthru
        _
      // Predicated region
      $region69: #{cnn_network_forward.1} parent=11 // pred_check
        %p648 = pneg %p376
      $region70: #{cnn_network_forward.1} parent=11 // pred_check_branch
        %650 = sbr.rel (%p648) target = $region72
      $region71: #{cnn_network_forward.1} parent=11 // pred_region
        _
      $region72: #{cnn_network_forward.1} parent=11 // pred_fallthru
        _
      // Predicated region
      $region73: #{cnn_network_forward.1} parent=11 // pred_check
        %p651 = pneg %p397
      $region74: #{cnn_network_forward.1} parent=11 // pred_check_branch
        %653 = sbr.rel (%p651) target = $region76
      $region75: #{cnn_network_forward.1} parent=11 // pred_region
        _
      $region76: #{cnn_network_forward.1} parent=11 // pred_fallthru
        _
      // Predicated region
      $region77: #{cnn_network_forward.1} parent=11 // pred_check
        %p654 = pneg %p418
      $region78: #{cnn_network_forward.1} parent=11 // pred_check_branch
        %656 = sbr.rel (%p654) target = $region80
      $region79: #{cnn_network_forward.1} parent=11 // pred_region
        _
      $region80: #{cnn_network_forward.1} parent=11 // pred_fallthru
        _
      // Predicated region
      $region81: #{cnn_network_forward.1} parent=11 // pred_check
        %p657 = pneg %p439
      $region82: #{cnn_network_forward.1} parent=11 // pred_check_branch
        %659 = sbr.rel (%p657) target = $region84
      $region83: #{cnn_network_forward.1} parent=11 // pred_region
        _
      $region84: #{cnn_network_forward.1} parent=11 // pred_fallthru
        _
      // Predicated region
      $region85: #{cnn_network_forward.1} parent=11 // pred_check
        %p660 = pneg %p460
      $region86: #{cnn_network_forward.1} parent=11 // pred_check_branch
        %662 = sbr.rel (%p660) target = $region88
      $region87: #{cnn_network_forward.1} parent=11 // pred_region
        _
      $region88: #{cnn_network_forward.1} parent=11 // pred_fallthru
        _
      // Predicated region
      $region89: #{cnn_network_forward.1} parent=11 // pred_check
        %p663 = pneg %p481
      $region90: #{cnn_network_forward.1} parent=11 // pred_check_branch
        %665 = sbr.rel (%p663) target = $region92
      $region91: #{cnn_network_forward.1} parent=11 // pred_region
        _
      $region92: #{cnn_network_forward.1} parent=11 // pred_fallthru
        _
      // Predicated region
      $region93: #{cnn_network_forward.1} parent=11 // pred_check
        %p666 = pneg %p502
      $region94: #{cnn_network_forward.1} parent=11 // pred_check_branch
        %668 = sbr.rel (%p666) target = $region96
      $region95: #{cnn_network_forward.1} parent=11 // pred_region
        _
      $region96: #{cnn_network_forward.1} parent=11 // pred_fallthru
        _
      // Predicated region
      $region97: #{cnn_network_forward.1} parent=11 // pred_check
        %p669 = pneg %p523
      $region98: #{cnn_network_forward.1} parent=11 // pred_check_branch
        %671 = sbr.rel (%p669) target = $region100
      $region99: #{cnn_network_forward.1} parent=11 // pred_region
        _
      $region100: #{cnn_network_forward.1} parent=11 // pred_fallthru
        _
      // Predicated region
      $region101: #{cnn_network_forward.1} parent=11 // pred_check
        %p672 = pneg %p544
      $region102: #{cnn_network_forward.1} parent=11 // pred_check_branch
        %674 = sbr.rel (%p672) target = $region104
      $region103: #{cnn_network_forward.1} parent=11 // pred_region
        _
      $region104: #{cnn_network_forward.1} parent=11 // pred_fallthru
        _
      // Predicated region
      $region105: #{cnn_network_forward.1} parent=11 // pred_check
        %p675 = pneg %p565
      $region106: #{cnn_network_forward.1} parent=11 // pred_check_branch
        %677 = sbr.rel (%p675) target = $region108
      $region107: #{cnn_network_forward.1} parent=11 // pred_region
        _
      $region108: #{cnn_network_forward.1} parent=11 // pred_fallthru
        _
    $region12: #{cnn_network_forward.1} parent=5 // pred_fallthru
      _
    %p678 = scmp.lt.s32.totalorder %s35, 2
    // Predicated region
    $region109: #{cnn_network_forward.1} parent=5 // pred_check
      %p679 = pneg %p678
    $region110: #{cnn_network_forward.1} parent=5 // pred_check_branch
      %681 = sbr.rel (%p679) target = $region112
    $region111: #{cnn_network_forward.1} parent=5 // pred_region
      // Predicated region
      $region113: #{cnn_network_forward.1} parent=111 // pred_check
        %p682 = pneg %p55
      $region114: #{cnn_network_forward.1} parent=111 // pred_check_branch
        %684 = sbr.rel (%p682) target = $region116
      $region115: #{cnn_network_forward.1} parent=111 // pred_region
        %p685 = scmp.lt.s32.totalorder %s35, 1
        %s686 = scalar_select %p685, %s35, 1
        %s687 = smul.addr %s686, 20
        %s688 = smul.addr %s687, 8
        %s689 = scalar_lea.vmem %s0, %s688
      $region116: #{cnn_network_forward.1} parent=111 // pred_fallthru
        _
    $region112: #{cnn_network_forward.1} parent=5 // pred_fallthru
      _
    %p690 = scmp.le.s32.totalorder 1, %s35
    %p691 = scmp.lt.s32.totalorder %s35, 3
    %p692 = pnand %p690, %p691
    %p693 = pneg %p692
    // Predicated region
    $region117: #{cnn_network_forward.1} parent=5 // pred_check
      _
    $region118: #{cnn_network_forward.1} parent=5 // pred_check_branch
      %695 = sbr.rel (%p692) target = $region120
    $region119: #{cnn_network_forward.1} parent=5 // pred_region
      %s696 = ssub.s32 %s35, 1
      %p697 = scmp.lt.s32.totalorder %s40, 1
      %s698 = scalar_select %p697, %s40, 1
      %s699 = smul.addr %s698, 20
      %s700 = smul.addr %s699, 8
      %s701 = scalar_lea.vmem %s0, %s700
      %p702 = pneg %p61
      %p703 = pneg %p58
      %p704 = pneg %p82
      %p705 = pneg %p79
      %p706 = pneg %p103
      %p707 = pneg %p100
      %p708 = pneg %p124
      %p709 = pneg %p121
      %p710 = pneg %p145
      %p711 = pneg %p142
      %p712 = pneg %p166
      %p713 = pneg %p163
      %p714 = pneg %p187
      %p715 = pneg %p184
      %p716 = pneg %p208
      %p717 = pneg %p205
      %p718 = pneg %p229
      %p719 = pneg %p226
      %p720 = pneg %p250
      %p721 = pneg %p247
      %p722 = pneg %p271
      %p723 = pneg %p268
      %p724 = pneg %p292
      %p725 = pneg %p289
      %p726 = pneg %p313
      %p727 = pneg %p310
      %p728 = pneg %p334
      %p729 = pneg %p331
      %p730 = pneg %p355
      %p731 = pneg %p352
      %p732 = pneg %p376
      %p733 = pneg %p373
      %p734 = pneg %p397
      %p735 = pneg %p394
      %p736 = pneg %p418
      %p737 = pneg %p415
      %p738 = pneg %p439
      %p739 = pneg %p436
      %p740 = pneg %p460
      %p741 = pneg %p457
      %p742 = pneg %p481
      %p743 = pneg %p478
      %p744 = pneg %p502
      %p745 = pneg %p499
      %p746 = pneg %p523
      %p747 = pneg %p520
      %p748 = pneg %p544
      %p749 = pneg %p541
      %p750 = pneg %p565
      %p751 = pneg %p562
      %p752 = pneg %p591
      %p753 = pneg %p588
      %p754 = scmp.lt.s32.totalorder %s40, 1
      %s755 = scalar_select %p754, %s40, 1
      %s756 = smul.addr %s755, 2
      %s757 = scalar_lea.vmem %s25, %s756
      %p758 = scmp.lt.s32.totalorder %s40, 1
      %s759 = scalar_select %p758, %s40, 1
      %s760 = smul.addr %s759, 20
      %s761 = smul.addr %s760, 8
      %s762 = scalar_lea.vmem %s0, %s761
      %p763 = scmp.lt.s32.totalorder %s40, 1
      %s764 = scalar_select %p763, %s40, 1
      %s765 = smul.addr %s764, 2
      %s766 = scalar_lea.vmem %s25, %s765
      %v767 = vld [vmem:[%s762] sm:$0xff]
      %v768 = vld [vmem:[%s762 + $0x8] sm:$0xff]
      %v769 = vld [vmem:[%s762 + $0x10] sm:$0xff]
      %v770 = vld [vmem:[%s762 + $0x18] sm:$0xff]
      %v771 = vld [vmem:[%s762 + $0x20] sm:$0xff]
      %v772 = vld [vmem:[%s762 + $0x28] sm:$0xff]
      %v773 = vld [vmem:[%s762 + $0x30] sm:$0xff]
      %v774 = vld [vmem:[%s762 + $0x38] sm:$0xff]
      %v775 = vld [vmem:[%s762 + $0x40] sm:$0xff]
      %v776 = vld [vmem:[%s762 + $0x48] sm:$0xff]
      %v777 = vld [vmem:[%s762 + $0x50] sm:$0xff]
      %v778 = vld [vmem:[%s762 + $0x58] sm:$0xff]
      %v779 = vld [vmem:[%s762 + $0x60] sm:$0xff]
      %v780 = vld [vmem:[%s762 + $0x68] sm:$0xff]
      %v781 = vld [vmem:[%s762 + $0x70] sm:$0xff]
      %v782 = vld [vmem:[%s762 + $0x78] sm:$0xff]
      %v783 = vld [vmem:[%s762 + $0x80] sm:$0xff]
      %v784 = vld [vmem:[%s762 + $0x88] sm:$0xff]
      %v785 = vld [vmem:[%s762 + $0x90] sm:$0xff]
      %v786 = vld [vmem:[%s762 + $0x98] sm:$0xff]
      %v787 = vld [vmem:[%s1] sm:$0xff]
      %v788 = vld [vmem:[%s1 + $0x8] sm:$0xff]
      %v789 = vld [vmem:[%s1 + $0x10] sm:$0xff]
      %v790 = vld [vmem:[%s1 + $0x18] sm:$0xff]
      %v791 = vld [vmem:[%s1 + $0x20] sm:$0xff]
      %v792 = vld [vmem:[%s1 + $0x28] sm:$0xff]
      %v793 = vld [vmem:[%s1 + $0x30] sm:$0xff]
      %v794 = vld [vmem:[%s1 + $0x38] sm:$0xff]
      %v795 = vld [vmem:[%s1 + $0x40] sm:$0xff]
      %v796 = vld [vmem:[%s1 + $0x48] sm:$0xff]
      %v797 = vld [vmem:[%s1 + $0x50] sm:$0xff]
      %v798 = vld [vmem:[%s1 + $0x58] sm:$0xff]
      %v799 = vld [vmem:[%s1 + $0x60] sm:$0xff]
      %v800 = vld [vmem:[%s1 + $0x68] sm:$0xff]
      %v801 = vld [vmem:[%s1 + $0x70] sm:$0xff]
      %v802 = vld [vmem:[%s1 + $0x78] sm:$0xff]
      %v803 = vld [vmem:[%s1 + $0x80] sm:$0xff]
      %v804 = vld [vmem:[%s1 + $0x88] sm:$0xff]
      %v805 = vld [vmem:[%s1 + $0x90] sm:$0xff]
      %v806 = vld [vmem:[%s1 + $0x98] sm:$0xff]
      %v807 = vld [vmem:[%s1 + $0xa0] sm:$0xff]
      %v808 = vld [vmem:[%s1 + $0xa8] sm:$0xff]
      %v809 = vld [vmem:[%s1 + $0xb0] sm:$0xff]
      %v810 = vld [vmem:[%s1 + $0xb8] sm:$0xff]
      %v811 = vld [vmem:[%s1 + $0xc0] sm:$0xff]
      %v812 = vld [vmem:[%s1 + $0xc8] sm:$0xff]
      %v813 = vld [vmem:[%s1 + $0xd0] sm:$0xff]
      %v814 = vld [vmem:[%s1 + $0xd8] sm:$0xff]
      %v815 = vld [vmem:[%s1 + $0xe0] sm:$0xff]
      %v816 = vld [vmem:[%s1 + $0xe8] sm:$0xff]
      %v817 = vld [vmem:[%s1 + $0xf0] sm:$0xff]
      %v818 = vld [vmem:[%s1 + $0xf8] sm:$0xff]
      %v819 = vld [vmem:[%s1 + $0x100] sm:$0xff]
      %v820 = vld [vmem:[%s1 + $0x108] sm:$0xff]
      %v821 = vld [vmem:[%s1 + $0x110] sm:$0xff]
      %v822 = vld [vmem:[%s1 + $0x118] sm:$0xff]
      %v823 = vld [vmem:[%s1 + $0x120] sm:$0xff]
      %v824 = vld [vmem:[%s1 + $0x128] sm:$0xff]
      %v825 = vld [vmem:[%s1 + $0x130] sm:$0xff]
      %v826 = vld [vmem:[%s1 + $0x138] sm:$0xff]
      %v827 = vld [vmem:[%s1 + $0x140] sm:$0xff]
      %v828 = vld [vmem:[%s1 + $0x148] sm:$0xff]
      %v829 = vld [vmem:[%s1 + $0x150] sm:$0xff]
      %v830 = vld [vmem:[%s1 + $0x158] sm:$0xff]
      %v831 = vld [vmem:[%s1 + $0x160] sm:$0xff]
      %v832 = vld [vmem:[%s1 + $0x168] sm:$0xff]
      %v833 = vld [vmem:[%s1 + $0x170] sm:$0xff]
      %v834 = vld [vmem:[%s1 + $0x178] sm:$0xff]
      %v835 = vld [vmem:[%s1 + $0x180] sm:$0xff]
      %v836 = vld [vmem:[%s1 + $0x188] sm:$0xff]
      %v837 = vld [vmem:[%s1 + $0x190] sm:$0xff]
      %v838 = vld [vmem:[%s1 + $0x198] sm:$0xff]
      %v839 = vld [vmem:[%s1 + $0x1a0] sm:$0xff]
      %v840 = vld [vmem:[%s1 + $0x1a8] sm:$0xff]
      %v841 = vld [vmem:[%s1 + $0x1b0] sm:$0xff]
      %v842 = vld [vmem:[%s1 + $0x1b8] sm:$0xff]
      %v843 = vld [vmem:[%s1 + $0x1c0] sm:$0xff]
      %v844 = vld [vmem:[%s1 + $0x1c8] sm:$0xff]
      %v845 = vld [vmem:[%s1 + $0x1d0] sm:$0xff]
      %v846 = vld [vmem:[%s1 + $0x1d8] sm:$0xff]
      %v847 = vld [vmem:[%s1 + $0x1e0] sm:$0xff]
      %v848 = vld [vmem:[%s1 + $0x1e8] sm:$0xff]
      %v849 = vld [vmem:[%s1 + $0x1f0] sm:$0xff]
      %v850 = vld [vmem:[%s1 + $0x1f8] sm:$0xff]
      %v851 = vld [vmem:[%s1 + $0x200] sm:$0xff]
      %v852 = vld [vmem:[%s1 + $0x208] sm:$0xff]
      %v853 = vld [vmem:[%s1 + $0x210] sm:$0xff]
      %v854 = vld [vmem:[%s1 + $0x218] sm:$0xff]
      %v855 = vld [vmem:[%s1 + $0x220] sm:$0xff]
      %v856 = vld [vmem:[%s1 + $0x228] sm:$0xff]
      %v857 = vld [vmem:[%s1 + $0x230] sm:$0xff]
      %v858 = vld [vmem:[%s1 + $0x238] sm:$0xff]
      %v859 = vld [vmem:[%s1 + $0x240] sm:$0xff]
      %v860 = vld [vmem:[%s1 + $0x248] sm:$0xff]
      %v861 = vld [vmem:[%s1 + $0x250] sm:$0xff]
      %v862 = vld [vmem:[%s1 + $0x258] sm:$0xff]
      %v863 = vld [vmem:[%s1 + $0x260] sm:$0xff]
      %v864 = vld [vmem:[%s1 + $0x268] sm:$0xff]
      %v865 = vld [vmem:[%s1 + $0x270] sm:$0xff]
      %v866 = vld [vmem:[%s1 + $0x278] sm:$0xff]
      %v867 = vld [vmem:[%s1 + $0x280] sm:$0xff]
      %v868 = vld [vmem:[%s1 + $0x288] sm:$0xff]
      %v869 = vld [vmem:[%s1 + $0x290] sm:$0xff]
      %v870 = vld [vmem:[%s1 + $0x298] sm:$0xff]
      %v871 = vld [vmem:[%s1 + $0x2a0] sm:$0xff]
      %v872 = vld [vmem:[%s1 + $0x2a8] sm:$0xff]
      %v873 = vld [vmem:[%s1 + $0x2b0] sm:$0xff]
      %v874 = vld [vmem:[%s1 + $0x2b8] sm:$0xff]
      %v875 = vld [vmem:[%s1 + $0x2c0] sm:$0xff]
      %v876 = vld [vmem:[%s1 + $0x2c8] sm:$0xff]
      %v877 = vld [vmem:[%s1 + $0x2d0] sm:$0xff]
      %v878 = vld [vmem:[%s1 + $0x2d8] sm:$0xff]
      %v879 = vld [vmem:[%s1 + $0x2e0] sm:$0xff]
      %v880 = vld [vmem:[%s1 + $0x2e8] sm:$0xff]
      %v881 = vld [vmem:[%s1 + $0x2f0] sm:$0xff]
      %v882 = vld [vmem:[%s1 + $0x2f8] sm:$0xff]
      %v883 = vld [vmem:[%s1 + $0x300] sm:$0xff]
      %v884 = vld [vmem:[%s1 + $0x308] sm:$0xff]
      %v885 = vld [vmem:[%s1 + $0x310] sm:$0xff]
      %v886 = vld [vmem:[%s1 + $0x318] sm:$0xff]
      %v887 = vld [vmem:[%s1 + $0x320] sm:$0xff]
      %v888 = vld [vmem:[%s1 + $0x328] sm:$0xff]
      %v889 = vld [vmem:[%s1 + $0x330] sm:$0xff]
      %v890 = vld [vmem:[%s1 + $0x338] sm:$0xff]
      %v891 = vld [vmem:[%s1 + $0x340] sm:$0xff]
      %v892 = vld [vmem:[%s1 + $0x348] sm:$0xff]
      %v893 = vld [vmem:[%s1 + $0x350] sm:$0xff]
      %v894 = vld [vmem:[%s1 + $0x358] sm:$0xff]
      %v895 = vld [vmem:[%s1 + $0x360] sm:$0xff]
      %v896 = vld [vmem:[%s1 + $0x368] sm:$0xff]
      %v897 = vld [vmem:[%s1 + $0x370] sm:$0xff]
      %v898 = vld [vmem:[%s1 + $0x378] sm:$0xff]
      %v899 = vld [vmem:[%s1 + $0x380] sm:$0xff]
      %v900 = vld [vmem:[%s1 + $0x388] sm:$0xff]
      %v901 = vld [vmem:[%s1 + $0x390] sm:$0xff]
      %v902 = vld [vmem:[%s1 + $0x398] sm:$0xff]
      %v903 = vld [vmem:[%s1 + $0x3a0] sm:$0xff]
      %v904 = vld [vmem:[%s1 + $0x3a8] sm:$0xff]
      %v905 = vld [vmem:[%s1 + $0x3b0] sm:$0xff]
      %v906 = vld [vmem:[%s1 + $0x3b8] sm:$0xff]
      %v907 = vld [vmem:[%s1 + $0x3c0] sm:$0xff]
      %v908 = vld [vmem:[%s1 + $0x3c8] sm:$0xff]
      %v909 = vld [vmem:[%s1 + $0x3d0] sm:$0xff]
      %v910 = vld [vmem:[%s1 + $0x3d8] sm:$0xff]
      %v911 = vld [vmem:[%s1 + $0x3e0] sm:$0xff]
      %v912 = vld [vmem:[%s1 + $0x3e8] sm:$0xff]
      %v913 = vld [vmem:[%s1 + $0x3f0] sm:$0xff]
      %v914 = vld [vmem:[%s1 + $0x3f8] sm:$0xff]
      %v915 = vld [vmem:[%s1 + $0x400] sm:$0xff]
      %v916 = vld [vmem:[%s1 + $0x408] sm:$0xff]
      %v917 = vld [vmem:[%s1 + $0x410] sm:$0xff]
      %v918 = vld [vmem:[%s1 + $0x418] sm:$0xff]
      %v919 = vld [vmem:[%s1 + $0x420] sm:$0xff]
      %v920 = vld [vmem:[%s1 + $0x428] sm:$0xff]
      %v921 = vld [vmem:[%s1 + $0x430] sm:$0xff]
      %v922 = vld [vmem:[%s1 + $0x438] sm:$0xff]
      %v923 = vld [vmem:[%s1 + $0x440] sm:$0xff]
      %v924 = vld [vmem:[%s1 + $0x448] sm:$0xff]
      %v925 = vld [vmem:[%s1 + $0x450] sm:$0xff]
      %v926 = vld [vmem:[%s1 + $0x458] sm:$0xff]
      %v927 = vld [vmem:[%s1 + $0x460] sm:$0xff]
      %v928 = vld [vmem:[%s1 + $0x468] sm:$0xff]
      %v929 = vld [vmem:[%s1 + $0x470] sm:$0xff]
      %v930 = vld [vmem:[%s1 + $0x478] sm:$0xff]
      %v931 = vld [vmem:[%s1 + $0x480] sm:$0xff]
      %v932 = vld [vmem:[%s1 + $0x488] sm:$0xff]
      %v933 = vld [vmem:[%s1 + $0x490] sm:$0xff]
      %v934 = vld [vmem:[%s1 + $0x498] sm:$0xff]
      %v935 = vld [vmem:[%s1 + $0x4a0] sm:$0xff]
      %v936 = vld [vmem:[%s1 + $0x4a8] sm:$0xff]
      %v937 = vld [vmem:[%s1 + $0x4b0] sm:$0xff]
      %v938 = vld [vmem:[%s1 + $0x4b8] sm:$0xff]
      %v939 = vld [vmem:[%s1 + $0x4c0] sm:$0xff]
      %v940 = vld [vmem:[%s1 + $0x4c8] sm:$0xff]
      %v941 = vld [vmem:[%s1 + $0x4d0] sm:$0xff]
      %v942 = vld [vmem:[%s1 + $0x4d8] sm:$0xff]
      %v943 = vld [vmem:[%s1 + $0x4e0] sm:$0xff]
      %v944 = vld [vmem:[%s1 + $0x4e8] sm:$0xff]
      %v945 = vld [vmem:[%s1 + $0x4f0] sm:$0xff]
      %v946 = vld [vmem:[%s1 + $0x4f8] sm:$0xff]
      %v947 = vld [vmem:[%s1 + $0x500] sm:$0xff]
      %v948 = vld [vmem:[%s1 + $0x508] sm:$0xff]
      %v949 = vld [vmem:[%s1 + $0x510] sm:$0xff]
      %v950 = vld [vmem:[%s1 + $0x518] sm:$0xff]
      %v951 = vld [vmem:[%s1 + $0x520] sm:$0xff]
      %v952 = vld [vmem:[%s1 + $0x528] sm:$0xff]
      %v953 = vld [vmem:[%s1 + $0x530] sm:$0xff]
      %v954 = vld [vmem:[%s1 + $0x538] sm:$0xff]
      %v955 = vld [vmem:[%s1 + $0x540] sm:$0xff]
      %v956 = vld [vmem:[%s1 + $0x548] sm:$0xff]
      %v957 = vld [vmem:[%s1 + $0x550] sm:$0xff]
      %v958 = vld [vmem:[%s1 + $0x558] sm:$0xff]
      %v959 = vld [vmem:[%s1 + $0x560] sm:$0xff]
      %v960 = vld [vmem:[%s1 + $0x568] sm:$0xff]
      %v961 = vld [vmem:[%s1 + $0x570] sm:$0xff]
      %v962 = vld [vmem:[%s1 + $0x578] sm:$0xff]
      %v963 = vld [vmem:[%s1 + $0x580] sm:$0xff]
      %v964 = vld [vmem:[%s1 + $0x588] sm:$0xff]
      %v965 = vld [vmem:[%s1 + $0x590] sm:$0xff]
      %v966 = vld [vmem:[%s1 + $0x598] sm:$0xff]
      %v967 = vld [vmem:[%s1 + $0x5a0] sm:$0xff]
      %v968 = vld [vmem:[%s1 + $0x5a8] sm:$0xff]
      %v969 = vld [vmem:[%s1 + $0x5b0] sm:$0xff]
      %v970 = vld [vmem:[%s1 + $0x5b8] sm:$0xff]
      %v971 = vld [vmem:[%s1 + $0x5c0] sm:$0xff]
      %v972 = vld [vmem:[%s1 + $0x5c8] sm:$0xff]
      %v973 = vld [vmem:[%s1 + $0x5d0] sm:$0xff]
      %v974 = vld [vmem:[%s1 + $0x5d8] sm:$0xff]
      %v975 = vld [vmem:[%s1 + $0x5e0] sm:$0xff]
      %v976 = vld [vmem:[%s1 + $0x5e8] sm:$0xff]
      %v977 = vld [vmem:[%s1 + $0x5f0] sm:$0xff]
      %v978 = vld [vmem:[%s1 + $0x5f8] sm:$0xff]
      %v979 = vld [vmem:[%s1 + $0x600] sm:$0xff]
      %v980 = vld [vmem:[%s1 + $0x608] sm:$0xff]
      %v981 = vld [vmem:[%s1 + $0x610] sm:$0xff]
      %v982 = vld [vmem:[%s1 + $0x618] sm:$0xff]
      %v983 = vld [vmem:[%s1 + $0x620] sm:$0xff]
      %v984 = vld [vmem:[%s1 + $0x628] sm:$0xff]
      %v985 = vld [vmem:[%s1 + $0x630] sm:$0xff]
      %v986 = vld [vmem:[%s1 + $0x638] sm:$0xff]
      %v987 = vld [vmem:[%s1 + $0x640] sm:$0xff]
      %v988 = vld [vmem:[%s1 + $0x648] sm:$0xff]
      %v989 = vld [vmem:[%s1 + $0x650] sm:$0xff]
      %v990 = vld [vmem:[%s1 + $0x658] sm:$0xff]
      %v991 = vld [vmem:[%s1 + $0x660] sm:$0xff]
      %v992 = vld [vmem:[%s1 + $0x668] sm:$0xff]
      %v993 = vld [vmem:[%s1 + $0x670] sm:$0xff]
      %v994 = vld [vmem:[%s1 + $0x678] sm:$0xff]
      %v995 = vld [vmem:[%s1 + $0x680] sm:$0xff]
      %v996 = vld [vmem:[%s1 + $0x688] sm:$0xff]
      %v997 = vld [vmem:[%s1 + $0x690] sm:$0xff]
      %v998 = vld [vmem:[%s1 + $0x698] sm:$0xff]
      %v999 = vld [vmem:[%s1 + $0x6a0] sm:$0xff]
      %v1000 = vld [vmem:[%s1 + $0x6a8] sm:$0xff]
      %v1001 = vld [vmem:[%s1 + $0x6b0] sm:$0xff]
      %v1002 = vld [vmem:[%s1 + $0x6b8] sm:$0xff]
      %v1003 = vld [vmem:[%s1 + $0x6c0] sm:$0xff]
      %v1004 = vld [vmem:[%s1 + $0x6c8] sm:$0xff]
      %v1005 = vld [vmem:[%s1 + $0x6d0] sm:$0xff]
      %v1006 = vld [vmem:[%s1 + $0x6d8] sm:$0xff]
      %v1007 = vld [vmem:[%s1 + $0x6e0] sm:$0xff]
      %v1008 = vld [vmem:[%s1 + $0x6e8] sm:$0xff]
      %v1009 = vld [vmem:[%s1 + $0x6f0] sm:$0xff]
      %v1010 = vld [vmem:[%s1 + $0x6f8] sm:$0xff]
      %v1011 = vld [vmem:[%s1 + $0x700] sm:$0xff]
      %v1012 = vld [vmem:[%s1 + $0x708] sm:$0xff]
      %v1013 = vld [vmem:[%s1 + $0x710] sm:$0xff]
      %v1014 = vld [vmem:[%s1 + $0x718] sm:$0xff]
      %v1015 = vld [vmem:[%s1 + $0x720] sm:$0xff]
      %v1016 = vld [vmem:[%s1 + $0x728] sm:$0xff]
      %v1017 = vld [vmem:[%s1 + $0x730] sm:$0xff]
      %v1018 = vld [vmem:[%s1 + $0x738] sm:$0xff]
      %v1019 = vld [vmem:[%s1 + $0x740] sm:$0xff]
      %v1020 = vld [vmem:[%s1 + $0x748] sm:$0xff]
      %v1021 = vld [vmem:[%s1 + $0x750] sm:$0xff]
      %v1022 = vld [vmem:[%s1 + $0x758] sm:$0xff]
      %v1023 = vld [vmem:[%s1 + $0x760] sm:$0xff]
      %v1024 = vld [vmem:[%s1 + $0x768] sm:$0xff]
      %v1025 = vld [vmem:[%s1 + $0x770] sm:$0xff]
      %v1026 = vld [vmem:[%s1 + $0x778] sm:$0xff]
      %v1027 = vld [vmem:[%s1 + $0x780] sm:$0xff]
      %v1028 = vld [vmem:[%s1 + $0x788] sm:$0xff]
      %v1029 = vld [vmem:[%s1 + $0x790] sm:$0xff]
      %v1030 = vld [vmem:[%s1 + $0x798] sm:$0xff]
      %v1031 = vld [vmem:[%s1 + $0x7a0] sm:$0xff]
      %v1032 = vld [vmem:[%s1 + $0x7a8] sm:$0xff]
      %v1033 = vld [vmem:[%s1 + $0x7b0] sm:$0xff]
      %v1034 = vld [vmem:[%s1 + $0x7b8] sm:$0xff]
      %v1035 = vld [vmem:[%s1 + $0x7c0] sm:$0xff]
      %v1036 = vld [vmem:[%s1 + $0x7c8] sm:$0xff]
      %v1037 = vld [vmem:[%s1 + $0x7d0] sm:$0xff]
      %v1038 = vld [vmem:[%s1 + $0x7d8] sm:$0xff]
      %v1039 = vld [vmem:[%s1 + $0x7e0] sm:$0xff]
      %v1040 = vld [vmem:[%s1 + $0x7e8] sm:$0xff]
      %v1041 = vld [vmem:[%s1 + $0x7f0] sm:$0xff]
      %v1042 = vld [vmem:[%s1 + $0x7f8] sm:$0xff]
      %v1043 = vld [vmem:[%s1 + $0x800] sm:$0xff]
      %v1044 = vld [vmem:[%s1 + $0x808] sm:$0xff]
      %v1045 = vld [vmem:[%s1 + $0x810] sm:$0xff]
      %v1046 = vld [vmem:[%s1 + $0x818] sm:$0xff]
      %v1047 = vld [vmem:[%s1 + $0x820] sm:$0xff]
      %v1048 = vld [vmem:[%s1 + $0x828] sm:$0xff]
      %v1049 = vld [vmem:[%s1 + $0x830] sm:$0xff]
      %v1050 = vld [vmem:[%s1 + $0x838] sm:$0xff]
      %v1051 = vld [vmem:[%s1 + $0x840] sm:$0xff]
      %v1052 = vld [vmem:[%s1 + $0x848] sm:$0xff]
      %v1053 = vld [vmem:[%s1 + $0x850] sm:$0xff]
      %v1054 = vld [vmem:[%s1 + $0x858] sm:$0xff]
      %v1055 = vld [vmem:[%s1 + $0x860] sm:$0xff]
      %v1056 = vld [vmem:[%s1 + $0x868] sm:$0xff]
      %v1057 = vld [vmem:[%s1 + $0x870] sm:$0xff]
      %v1058 = vld [vmem:[%s1 + $0x878] sm:$0xff]
      %v1059 = vld [vmem:[%s1 + $0x880] sm:$0xff]
      %v1060 = vld [vmem:[%s1 + $0x888] sm:$0xff]
      %v1061 = vld [vmem:[%s1 + $0x890] sm:$0xff]
      %v1062 = vld [vmem:[%s1 + $0x898] sm:$0xff]
      %v1063 = vld [vmem:[%s1 + $0x8a0] sm:$0xff]
      %v1064 = vld [vmem:[%s1 + $0x8a8] sm:$0xff]
      %v1065 = vld [vmem:[%s1 + $0x8b0] sm:$0xff]
      %v1066 = vld [vmem:[%s1 + $0x8b8] sm:$0xff]
      %v1067 = vld [vmem:[%s1 + $0x8c0] sm:$0xff]
      %v1068 = vld [vmem:[%s1 + $0x8c8] sm:$0xff]
      %v1069 = vld [vmem:[%s1 + $0x8d0] sm:$0xff]
      %v1070 = vld [vmem:[%s1 + $0x8d8] sm:$0xff]
      %v1071 = vld [vmem:[%s1 + $0x8e0] sm:$0xff]
      %v1072 = vld [vmem:[%s1 + $0x8e8] sm:$0xff]
      %v1073 = vld [vmem:[%s1 + $0x8f0] sm:$0xff]
      %v1074 = vld [vmem:[%s1 + $0x8f8] sm:$0xff]
      %v1075 = vld [vmem:[%s1 + $0x900] sm:$0xff]
      %v1076 = vld [vmem:[%s1 + $0x908] sm:$0xff]
      %v1077 = vld [vmem:[%s1 + $0x910] sm:$0xff]
      %v1078 = vld [vmem:[%s1 + $0x918] sm:$0xff]
      %v1079 = vld [vmem:[%s1 + $0x920] sm:$0xff]
      %v1080 = vld [vmem:[%s1 + $0x928] sm:$0xff]
      %v1081 = vld [vmem:[%s1 + $0x930] sm:$0xff]
      %v1082 = vld [vmem:[%s1 + $0x938] sm:$0xff]
      %v1083 = vld [vmem:[%s1 + $0x940] sm:$0xff]
      %v1084 = vld [vmem:[%s1 + $0x948] sm:$0xff]
      %v1085 = vld [vmem:[%s1 + $0x950] sm:$0xff]
      %v1086 = vld [vmem:[%s1 + $0x958] sm:$0xff]
      %v1087 = vld [vmem:[%s1 + $0x960] sm:$0xff]
      %v1088 = vld [vmem:[%s1 + $0x968] sm:$0xff]
      %v1089 = vld [vmem:[%s1 + $0x970] sm:$0xff]
      %v1090 = vld [vmem:[%s1 + $0x978] sm:$0xff]
      %v1091 = vld [vmem:[%s1 + $0x980] sm:$0xff]
      %v1092 = vld [vmem:[%s1 + $0x988] sm:$0xff]
      %v1093 = vld [vmem:[%s1 + $0x990] sm:$0xff]
      %v1094 = vld [vmem:[%s1 + $0x998] sm:$0xff]
      %v1095 = vld [vmem:[%s1 + $0x9a0] sm:$0xff]
      %v1096 = vld [vmem:[%s1 + $0x9a8] sm:$0xff]
      %v1097 = vld [vmem:[%s1 + $0x9b0] sm:$0xff]
      %v1098 = vld [vmem:[%s1 + $0x9b8] sm:$0xff]
      %v1099 = vld [vmem:[%s1 + $0x9c0] sm:$0xff]
      %v1100 = vld [vmem:[%s1 + $0x9c8] sm:$0xff]
      %v1101 = vld [vmem:[%s1 + $0x9d0] sm:$0xff]
      %v1102 = vld [vmem:[%s1 + $0x9d8] sm:$0xff]
      %v1103 = vld [vmem:[%s1 + $0x9e0] sm:$0xff]
      %v1104 = vld [vmem:[%s1 + $0x9e8] sm:$0xff]
      %v1105 = vld [vmem:[%s1 + $0x9f0] sm:$0xff]
      %v1106 = vld [vmem:[%s1 + $0x9f8] sm:$0xff]
      %v1107 = vld [vmem:[%s2] sm:$0x3]
      %v1109 = vlaneseq
      %v1110 = vshrl.u32 %v1109, 7
      %v1111 = vsub.s32 0, %v1110
      %v1112 = vrot.slane %v1107, %v1111
      %v1113 = vlaneseq
      %v1114 = vshrl.u32 %v1113, 7
      %v1115 = vsub.s32 1, %v1114
      %v1116 = vrot.slane %v1107, %v1115
      %1119 = vmatprep.subr.mxu0 %v788
      %1120 = vmatpush1.msra.mxu0 %v787
      %1121 = vmatprep.subr.mxu0 %v790
      %1122 = vmatpush1.msra.mxu0 %v789
      %1123 = vmatprep.subr.mxu0 %v792
      %1124 = vmatpush1.msra.mxu0 %v791
      %1125 = vmatprep.subr.mxu0 %v794
      %1126 = vmatpush1.msra.mxu0 %v793
      %1127 = vmatprep.subr.mxu0 %v796
      %1128 = vmatpush1.msra.mxu0 %v795
      %1129 = vmatprep.subr.mxu0 %v798
      %1130 = vmatpush1.msra.mxu0 %v797
      %1131 = vmatprep.subr.mxu0 %v800
      %1132 = vmatpush1.msra.mxu0 %v799
      %1133 = vmatprep.subr.mxu0 %v802
      %1134 = vmatpush1.msra.mxu0 %v801
      %1135 = vmatprep.subr.mxu0 %v804
      %1136 = vmatpush1.msra.mxu0 %v803
      %1137 = vmatprep.subr.mxu0 %v806
      %1138 = vmatpush1.msra.mxu0 %v805
      %1139 = vmatprep.subr.mxu0 %v808
      %1140 = vmatpush1.msra.mxu0 %v807
      %1141 = vmatprep.subr.mxu0 %v810
      %1142 = vmatpush1.msra.mxu0 %v809
      %1143 = vmatprep.subr.mxu0 %v812
      %1144 = vmatpush1.msra.mxu0 %v811
      %1145 = vmatprep.subr.mxu0 %v814
      %1146 = vmatpush1.msra.mxu0 %v813
      %1147 = vmatprep.subr.mxu0 %v816
      %1148 = vmatpush1.msra.mxu0 %v815
      %1149 = vmatprep.subr.mxu0 %v818
      %1150 = vmatpush1.msra.mxu0 %v817
      %1151 = vmatprep.subr.mxu0 %v820
      %1152 = vmatpush1.msra.mxu0 %v819
      %1153 = vmatprep.subr.mxu0 %v822
      %1154 = vmatpush1.msra.mxu0 %v821
      %1155 = vmatprep.subr.mxu0 %v824
      %1156 = vmatpush1.msra.mxu0 %v823
      %1157 = vmatprep.subr.mxu0 %v826
      %1158 = vmatpush1.msra.mxu0 %v825
      %1159 = vmatprep.subr.mxu0 %v828
      %1160 = vmatpush1.msra.mxu0 %v827
      %1161 = vmatprep.subr.mxu0 %v830
      %1162 = vmatpush1.msra.mxu0 %v829
      %1163 = vmatprep.subr.mxu0 %v832
      %1164 = vmatpush1.msra.mxu0 %v831
      %1165 = vmatprep.subr.mxu0 %v834
      %1166 = vmatpush1.msra.mxu0 %v833
      %1167 = vmatprep.subr.mxu0 %v836
      %1168 = vmatpush1.msra.mxu0 %v835
      %1169 = vmatprep.subr.mxu0 %v838
      %1170 = vmatpush1.msra.mxu0 %v837
      %1171 = vmatprep.subr.mxu0 %v840
      %1172 = vmatpush1.msra.mxu0 %v839
      %1173 = vmatprep.subr.mxu0 %v842
      %1174 = vmatpush1.msra.mxu0 %v841
      %1175 = vmatprep.subr.mxu0 %v844
      %1176 = vmatpush1.msra.mxu0 %v843
      %1177 = vmatprep.subr.mxu0 %v846
      %1178 = vmatpush1.msra.mxu0 %v845
      %1179 = vmatprep.subr.mxu0 %v848
      %1180 = vmatpush1.msra.mxu0 %v847
      %1181 = vmatprep.subr.mxu0 %v850
      %1182 = vmatpush1.msra.mxu0 %v849
      %1183 = vmatprep.mubr.f32.mxu0 %v768
      %1184 = vmatmul.mubr.f32.gmra.mrb[0].mxu0 %v767
      %v1185 = vpop.f32.mrb[0].mxu0
      %v1186 = vadd.f32 %v1112, %v1185
      %v1187 = vpop.f32.mrb[0].mxu0
      %v1188 = vadd.f32 %v1116, %v1187
      %1189 = vmatprep.mubr.f32.mxu0 %v778
      %1190 = vmatmul.mubr.f32.gmra.mrb[0].mxu0 %v777
      %v1191 = vpop.f32.mrb[0].mxu0
      %v1192 = vadd.f32 %v1112, %v1191
      %v1193 = vpop.f32.mrb[0].mxu0
      %v1194 = vadd.f32 %v1116, %v1193
      %1195 = vdwg.mxu0
      %1196 = vmatprep.subr.mxu0 %v852
      %1197 = vmatpush1.msra.mxu0 %v851
      %1198 = vmatprep.subr.mxu0 %v854
      %1199 = vmatpush1.msra.mxu0 %v853
      %1200 = vmatprep.subr.mxu0 %v856
      %1201 = vmatpush1.msra.mxu0 %v855
      %1202 = vmatprep.subr.mxu0 %v858
      %1203 = vmatpush1.msra.mxu0 %v857
      %1204 = vmatprep.subr.mxu0 %v860
      %1205 = vmatpush1.msra.mxu0 %v859
      %1206 = vmatprep.subr.mxu0 %v862
      %1207 = vmatpush1.msra.mxu0 %v861
      %1208 = vmatprep.subr.mxu0 %v864
      %1209 = vmatpush1.msra.mxu0 %v863
      %1210 = vmatprep.subr.mxu0 %v866
      %1211 = vmatpush1.msra.mxu0 %v865
      %1212 = vmatprep.subr.mxu0 %v868
      %1213 = vmatpush1.msra.mxu0 %v867
      %1214 = vmatprep.subr.mxu0 %v870
      %1215 = vmatpush1.msra.mxu0 %v869
      %1216 = vmatprep.subr.mxu0 %v872
      %1217 = vmatpush1.msra.mxu0 %v871
      %1218 = vmatprep.subr.mxu0 %v874
      %1219 = vmatpush1.msra.mxu0 %v873
      %1220 = vmatprep.subr.mxu0 %v876
      %1221 = vmatpush1.msra.mxu0 %v875
      %1222 = vmatprep.subr.mxu0 %v878
      %1223 = vmatpush1.msra.mxu0 %v877
      %1224 = vmatprep.subr.mxu0 %v880
      %1225 = vmatpush1.msra.mxu0 %v879
      %1226 = vmatprep.subr.mxu0 %v882
      %1227 = vmatpush1.msra.mxu0 %v881
      %1228 = vmatprep.subr.mxu0 %v884
      %1229 = vmatpush1.msra.mxu0 %v883
      %1230 = vmatprep.subr.mxu0 %v886
      %1231 = vmatpush1.msra.mxu0 %v885
      %1232 = vmatprep.subr.mxu0 %v888
      %1233 = vmatpush1.msra.mxu0 %v887
      %1234 = vmatprep.subr.mxu0 %v890
      %1235 = vmatpush1.msra.mxu0 %v889
      %1236 = vmatprep.subr.mxu0 %v892
      %1237 = vmatpush1.msra.mxu0 %v891
      %1238 = vmatprep.subr.mxu0 %v894
      %1239 = vmatpush1.msra.mxu0 %v893
      %1240 = vmatprep.subr.mxu0 %v896
      %1241 = vmatpush1.msra.mxu0 %v895
      %1242 = vmatprep.subr.mxu0 %v898
      %1243 = vmatpush1.msra.mxu0 %v897
      %1244 = vmatprep.subr.mxu0 %v900
      %1245 = vmatpush1.msra.mxu0 %v899
      %1246 = vmatprep.subr.mxu0 %v902
      %1247 = vmatpush1.msra.mxu0 %v901
      %1248 = vmatprep.subr.mxu0 %v904
      %1249 = vmatpush1.msra.mxu0 %v903
      %1250 = vmatprep.subr.mxu0 %v906
      %1251 = vmatpush1.msra.mxu0 %v905
      %1252 = vmatprep.subr.mxu0 %v908
      %1253 = vmatpush1.msra.mxu0 %v907
      %1254 = vmatprep.subr.mxu0 %v910
      %1255 = vmatpush1.msra.mxu0 %v909
      %1256 = vmatprep.subr.mxu0 %v912
      %1257 = vmatpush1.msra.mxu0 %v911
      %1258 = vmatprep.subr.mxu0 %v914
      %1259 = vmatpush1.msra.mxu0 %v913
      %1260 = vmatprep.mubr.f32.mxu0 %v770
      %1261 = vmatmul.mubr.f32.gmra.mrb[0].mxu0 %v769
      %v1262 = vpop.f32.mrb[0].mxu0
      %v1263 = vadd.f32 %v1186, %v1262
      %v1264 = vpop.f32.mrb[0].mxu0
      %v1265 = vadd.f32 %v1188, %v1264
      %1266 = vmatprep.mubr.f32.mxu0 %v780
      %1267 = vmatmul.mubr.f32.gmra.mrb[0].mxu0 %v779
      %v1268 = vpop.f32.mrb[0].mxu0
      %v1269 = vadd.f32 %v1192, %v1268
      %v1270 = vpop.f32.mrb[0].mxu0
      %v1271 = vadd.f32 %v1194, %v1270
      %1272 = vdwg.mxu0
      %1273 = vmatprep.subr.mxu0 %v916
      %1274 = vmatpush1.msra.mxu0 %v915
      %1275 = vmatprep.subr.mxu0 %v918
      %1276 = vmatpush1.msra.mxu0 %v917
      %1277 = vmatprep.subr.mxu0 %v920
      %1278 = vmatpush1.msra.mxu0 %v919
      %1279 = vmatprep.subr.mxu0 %v922
      %1280 = vmatpush1.msra.mxu0 %v921
      %1281 = vmatprep.subr.mxu0 %v924
      %1282 = vmatpush1.msra.mxu0 %v923
      %1283 = vmatprep.subr.mxu0 %v926
      %1284 = vmatpush1.msra.mxu0 %v925
      %1285 = vmatprep.subr.mxu0 %v928
      %1286 = vmatpush1.msra.mxu0 %v927
      %1287 = vmatprep.subr.mxu0 %v930
      %1288 = vmatpush1.msra.mxu0 %v929
      %1289 = vmatprep.subr.mxu0 %v932
      %1290 = vmatpush1.msra.mxu0 %v931
      %1291 = vmatprep.subr.mxu0 %v934
      %1292 = vmatpush1.msra.mxu0 %v933
      %1293 = vmatprep.subr.mxu0 %v936
      %1294 = vmatpush1.msra.mxu0 %v935
      %1295 = vmatprep.subr.mxu0 %v938
      %1296 = vmatpush1.msra.mxu0 %v937
      %1297 = vmatprep.subr.mxu0 %v940
      %1298 = vmatpush1.msra.mxu0 %v939
      %1299 = vmatprep.subr.mxu0 %v942
      %1300 = vmatpush1.msra.mxu0 %v941
      %1301 = vmatprep.subr.mxu0 %v944
      %1302 = vmatpush1.msra.mxu0 %v943
      %1303 = vmatprep.subr.mxu0 %v946
      %1304 = vmatpush1.msra.mxu0 %v945
      %1305 = vmatprep.subr.mxu0 %v948
      %1306 = vmatpush1.msra.mxu0 %v947
      %1307 = vmatprep.subr.mxu0 %v950
      %1308 = vmatpush1.msra.mxu0 %v949
      %1309 = vmatprep.subr.mxu0 %v952
      %1310 = vmatpush1.msra.mxu0 %v951
      %1311 = vmatprep.subr.mxu0 %v954
      %1312 = vmatpush1.msra.mxu0 %v953
      %1313 = vmatprep.subr.mxu0 %v956
      %1314 = vmatpush1.msra.mxu0 %v955
      %1315 = vmatprep.subr.mxu0 %v958
      %1316 = vmatpush1.msra.mxu0 %v957
      %1317 = vmatprep.subr.mxu0 %v960
      %1318 = vmatpush1.msra.mxu0 %v959
      %1319 = vmatprep.subr.mxu0 %v962
      %1320 = vmatpush1.msra.mxu0 %v961
      %1321 = vmatprep.subr.mxu0 %v964
      %1322 = vmatpush1.msra.mxu0 %v963
      %1323 = vmatprep.subr.mxu0 %v966
      %1324 = vmatpush1.msra.mxu0 %v965
      %1325 = vmatprep.subr.mxu0 %v968
      %1326 = vmatpush1.msra.mxu0 %v967
      %1327 = vmatprep.subr.mxu0 %v970
      %1328 = vmatpush1.msra.mxu0 %v969
      %1329 = vmatprep.subr.mxu0 %v972
      %1330 = vmatpush1.msra.mxu0 %v971
      %1331 = vmatprep.subr.mxu0 %v974
      %1332 = vmatpush1.msra.mxu0 %v973
      %1333 = vmatprep.subr.mxu0 %v976
      %1334 = vmatpush1.msra.mxu0 %v975
      %1335 = vmatprep.subr.mxu0 %v978
      %1336 = vmatpush1.msra.mxu0 %v977
      %1337 = vmatprep.mubr.f32.mxu0 %v772
      %1338 = vmatmul.mubr.f32.gmra.mrb[0].mxu0 %v771
      %v1339 = vpop.f32.mrb[0].mxu0
      %v1340 = vadd.f32 %v1263, %v1339
      %v1341 = vpop.f32.mrb[0].mxu0
      %v1342 = vadd.f32 %v1265, %v1341
      %1343 = vmatprep.mubr.f32.mxu0 %v782
      %1344 = vmatmul.mubr.f32.gmra.mrb[0].mxu0 %v781
      %v1345 = vpop.f32.mrb[0].mxu0
      %v1346 = vadd.f32 %v1269, %v1345
      %v1347 = vpop.f32.mrb[0].mxu0
      %v1348 = vadd.f32 %v1271, %v1347
      %1349 = vdwg.mxu0
      %1350 = vmatprep.subr.mxu0 %v980
      %1351 = vmatpush1.msra.mxu0 %v979
      %1352 = vmatprep.subr.mxu0 %v982
      %1353 = vmatpush1.msra.mxu0 %v981
      %1354 = vmatprep.subr.mxu0 %v984
      %1355 = vmatpush1.msra.mxu0 %v983
      %1356 = vmatprep.subr.mxu0 %v986
      %1357 = vmatpush1.msra.mxu0 %v985
      %1358 = vmatprep.subr.mxu0 %v988
      %1359 = vmatpush1.msra.mxu0 %v987
      %1360 = vmatprep.subr.mxu0 %v990
      %1361 = vmatpush1.msra.mxu0 %v989
      %1362 = vmatprep.subr.mxu0 %v992
      %1363 = vmatpush1.msra.mxu0 %v991
      %1364 = vmatprep.subr.mxu0 %v994
      %1365 = vmatpush1.msra.mxu0 %v993
      %1366 = vmatprep.subr.mxu0 %v996
      %1367 = vmatpush1.msra.mxu0 %v995
      %1368 = vmatprep.subr.mxu0 %v998
      %1369 = vmatpush1.msra.mxu0 %v997
      %1370 = vmatprep.subr.mxu0 %v1000
      %1371 = vmatpush1.msra.mxu0 %v999
      %1372 = vmatprep.subr.mxu0 %v1002
      %1373 = vmatpush1.msra.mxu0 %v1001
      %1374 = vmatprep.subr.mxu0 %v1004
      %1375 = vmatpush1.msra.mxu0 %v1003
      %1376 = vmatprep.subr.mxu0 %v1006
      %1377 = vmatpush1.msra.mxu0 %v1005
      %1378 = vmatprep.subr.mxu0 %v1008
      %1379 = vmatpush1.msra.mxu0 %v1007
      %1380 = vmatprep.subr.mxu0 %v1010
      %1381 = vmatpush1.msra.mxu0 %v1009
      %1382 = vmatprep.subr.mxu0 %v1012
      %1383 = vmatpush1.msra.mxu0 %v1011
      %1384 = vmatprep.subr.mxu0 %v1014
      %1385 = vmatpush1.msra.mxu0 %v1013
      %1386 = vmatprep.subr.mxu0 %v1016
      %1387 = vmatpush1.msra.mxu0 %v1015
      %1388 = vmatprep.subr.mxu0 %v1018
      %1389 = vmatpush1.msra.mxu0 %v1017
      %1390 = vmatprep.subr.mxu0 %v1020
      %1391 = vmatpush1.msra.mxu0 %v1019
      %1392 = vmatprep.subr.mxu0 %v1022
      %1393 = vmatpush1.msra.mxu0 %v1021
      %1394 = vmatprep.subr.mxu0 %v1024
      %1395 = vmatpush1.msra.mxu0 %v1023
      %1396 = vmatprep.subr.mxu0 %v1026
      %1397 = vmatpush1.msra.mxu0 %v1025
      %1398 = vmatprep.subr.mxu0 %v1028
      %1399 = vmatpush1.msra.mxu0 %v1027
      %1400 = vmatprep.subr.mxu0 %v1030
      %1401 = vmatpush1.msra.mxu0 %v1029
      %1402 = vmatprep.subr.mxu0 %v1032
      %1403 = vmatpush1.msra.mxu0 %v1031
      %1404 = vmatprep.subr.mxu0 %v1034
      %1405 = vmatpush1.msra.mxu0 %v1033
      %1406 = vmatprep.subr.mxu0 %v1036
      %1407 = vmatpush1.msra.mxu0 %v1035
      %1408 = vmatprep.subr.mxu0 %v1038
      %1409 = vmatpush1.msra.mxu0 %v1037
      %1410 = vmatprep.subr.mxu0 %v1040
      %1411 = vmatpush1.msra.mxu0 %v1039
      %1412 = vmatprep.subr.mxu0 %v1042
      %1413 = vmatpush1.msra.mxu0 %v1041
      %1414 = vmatprep.mubr.f32.mxu0 %v774
      %1415 = vmatmul.mubr.f32.gmra.mrb[0].mxu0 %v773
      %v1416 = vpop.f32.mrb[0].mxu0
      %v1417 = vadd.f32 %v1340, %v1416
      %v1418 = vpop.f32.mrb[0].mxu0
      %v1419 = vadd.f32 %v1342, %v1418
      %1420 = vmatprep.mubr.f32.mxu0 %v784
      %1421 = vmatmul.mubr.f32.gmra.mrb[0].mxu0 %v783
      %v1422 = vpop.f32.mrb[0].mxu0
      %v1423 = vadd.f32 %v1346, %v1422
      %v1424 = vpop.f32.mrb[0].mxu0
      %v1425 = vadd.f32 %v1348, %v1424
      %1426 = vdwg.mxu0
      %1427 = vmatprep.subr.mxu0 %v1044
      %1428 = vmatpush1.msra.mxu0 %v1043
      %1429 = vmatprep.subr.mxu0 %v1046
      %1430 = vmatpush1.msra.mxu0 %v1045
      %1431 = vmatprep.subr.mxu0 %v1048
      %1432 = vmatpush1.msra.mxu0 %v1047
      %1433 = vmatprep.subr.mxu0 %v1050
      %1434 = vmatpush1.msra.mxu0 %v1049
      %1435 = vmatprep.subr.mxu0 %v1052
      %1436 = vmatpush1.msra.mxu0 %v1051
      %1437 = vmatprep.subr.mxu0 %v1054
      %1438 = vmatpush1.msra.mxu0 %v1053
      %1439 = vmatprep.subr.mxu0 %v1056
      %1440 = vmatpush1.msra.mxu0 %v1055
      %1441 = vmatprep.subr.mxu0 %v1058
      %1442 = vmatpush1.msra.mxu0 %v1057
      %1443 = vmatprep.subr.mxu0 %v1060
      %1444 = vmatpush1.msra.mxu0 %v1059
      %1445 = vmatprep.subr.mxu0 %v1062
      %1446 = vmatpush1.msra.mxu0 %v1061
      %1447 = vmatprep.subr.mxu0 %v1064
      %1448 = vmatpush1.msra.mxu0 %v1063
      %1449 = vmatprep.subr.mxu0 %v1066
      %1450 = vmatpush1.msra.mxu0 %v1065
      %1451 = vmatprep.subr.mxu0 %v1068
      %1452 = vmatpush1.msra.mxu0 %v1067
      %1453 = vmatprep.subr.mxu0 %v1070
      %1454 = vmatpush1.msra.mxu0 %v1069
      %1455 = vmatprep.subr.mxu0 %v1072
      %1456 = vmatpush1.msra.mxu0 %v1071
      %1457 = vmatprep.subr.mxu0 %v1074
      %1458 = vmatpush1.msra.mxu0 %v1073
      %1459 = vmatprep.subr.mxu0 %v1076
      %1460 = vmatpush1.msra.mxu0 %v1075
      %1461 = vmatprep.subr.mxu0 %v1078
      %1462 = vmatpush1.msra.mxu0 %v1077
      %1463 = vmatprep.subr.mxu0 %v1080
      %1464 = vmatpush1.msra.mxu0 %v1079
      %1465 = vmatprep.subr.mxu0 %v1082
      %1466 = vmatpush1.msra.mxu0 %v1081
      %1467 = vmatprep.subr.mxu0 %v1084
      %1468 = vmatpush1.msra.mxu0 %v1083
      %1469 = vmatprep.subr.mxu0 %v1086
      %1470 = vmatpush1.msra.mxu0 %v1085
      %1471 = vmatprep.subr.mxu0 %v1088
      %1472 = vmatpush1.msra.mxu0 %v1087
      %1473 = vmatprep.subr.mxu0 %v1090
      %1474 = vmatpush1.msra.mxu0 %v1089
      %1475 = vmatprep.subr.mxu0 %v1092
      %1476 = vmatpush1.msra.mxu0 %v1091
      %1477 = vmatprep.subr.mxu0 %v1094
      %1478 = vmatpush1.msra.mxu0 %v1093
      %1479 = vmatprep.subr.mxu0 %v1096
      %1480 = vmatpush1.msra.mxu0 %v1095
      %1481 = vmatprep.subr.mxu0 %v1098
      %1482 = vmatpush1.msra.mxu0 %v1097
      %1483 = vmatprep.subr.mxu0 %v1100
      %1484 = vmatpush1.msra.mxu0 %v1099
      %1485 = vmatprep.subr.mxu0 %v1102
      %1486 = vmatpush1.msra.mxu0 %v1101
      %1487 = vmatprep.subr.mxu0 %v1104
      %1488 = vmatpush1.msra.mxu0 %v1103
      %1489 = vmatprep.subr.mxu0 %v1106
      %1490 = vmatpush1.msra.mxu0 %v1105
      %1491 = vmatprep.mubr.f32.mxu0 %v776
      %1492 = vmatmul.mubr.f32.gmra.mrb[0].mxu0 %v775
      %v1493 = vpop.f32.mrb[0].mxu0
      %v1494 = vadd.f32 %v1417, %v1493
      %v1495 = vpop.f32.mrb[0].mxu0
      %v1496 = vadd.f32 %v1419, %v1495
      %1497 = vmatprep.mubr.f32.mxu0 %v786
      %1498 = vmatmul.mubr.f32.gmra.mrb[0].mxu0 %v785
      %v1499 = vpop.f32.mrb[0].mxu0
      %v1500 = vadd.f32 %v1423, %v1499
      %v1501 = vpop.f32.mrb[0].mxu0
      %v1502 = vadd.f32 %v1425, %v1501
      %1503 = vdwg.mxu0
      %v1504 = vld [vmem:[%s3] sm:$0x3]
      %v1505 = vld [vmem:[%s4] sm:$0x3]
      %v1506 = vadd.f32 %v1494, %v1496
      %1507 = vadd.xlane.f32.xlu0 %v1506
      %v1508 = vpop.xlane.xlu0 %1507
      %v1509 = vadd.f32 %v1500, %v1502
      %1510 = vadd.xlane.f32.xlu0 %v1509
      %v1511 = vpop.xlane.xlu0 %1510
      %v1512 = vrcp.pop 256.0
      %v1513 = vmul.f32 %v1508, %v1512
      %v1514 = vmul.f32 %v1511, %v1512
      %v1515 = vsub.f32 %v1494, %v1513
      %v1516 = vsub.f32 %v1496, %v1513
      %v1517 = vsub.f32 %v1500, %v1514
      %v1518 = vsub.f32 %v1502, %v1514
      %v1519 = vmul.f32 %v1515, %v1515
      %v1520 = vmul.f32 %v1516, %v1516
      %v1521 = vmul.f32 %v1517, %v1517
      %v1522 = vmul.f32 %v1518, %v1518
      %v1523 = vadd.f32 %v1519, %v1520
      %1524 = vadd.xlane.f32.xlu0 %v1523
      %v1525 = vpop.xlane.xlu0 %1524
      %v1526 = vadd.f32 %v1521, %v1522
      %1527 = vadd.xlane.f32.xlu0 %v1526
      %v1528 = vpop.xlane.xlu0 %1527
      %v1529 = vmul.f32 %v1525, 0.003921569
      %v1530 = vmul.f32 %v1528, 0.003921569
      %v1531 = vrsqrt.pop %v1529
      %v1532 = vmul.f32 %v1529, %v1531
      %vm1533 = vcmp.eq.f32.partialorder %v1529, inf
      %v1534 = vsel %vm1533, %v1529, %v1532
      %vm1535 = vcmp.eq.f32.partialorder %v1529, 0.0
      %v1536 = vand.u32 %v1529, 2147483648
      %v1537 = vsel %vm1535, %v1536, %v1534
      %v1538 = vrsqrt.pop %v1530
      %v1539 = vmul.f32 %v1530, %v1538
      %vm1540 = vcmp.eq.f32.partialorder %v1530, inf
      %v1541 = vsel %vm1540, %v1530, %v1539
      %vm1542 = vcmp.eq.f32.partialorder %v1530, 0.0
      %v1543 = vand.u32 %v1530, 2147483648
      %v1544 = vsel %vm1542, %v1543, %v1541
      %v1545 = vadd.f32 %v1537, 1e-09
      %v1546 = vadd.f32 %v1544, 1e-09
      %v1547 = vrcp.pop %v1545
      %v1548 = vrcp.pop %v1546
      %v1550 = vlaneseq
      %v1551 = vshrl.u32 %v1550, 7
      %v1552 = vsub.s32 0, %v1551
      %v1553 = vrot.slane %v1504, %v1552
      %v1554 = vlaneseq
      %v1555 = vshrl.u32 %v1554, 7
      %v1556 = vsub.s32 1, %v1555
      %v1557 = vrot.slane %v1504, %v1556
      %v1560 = vmul.f32 %v1553, %v1515
      %v1561 = vmul.f32 %v1557, %v1516
      %v1562 = vmul.f32 %v1553, %v1517
      %v1563 = vmul.f32 %v1557, %v1518
      %v1564 = vmul.f32 %v1560, %v1547
      %v1565 = vmul.f32 %v1561, %v1547
      %v1566 = vmul.f32 %v1562, %v1548
      %v1567 = vmul.f32 %v1563, %v1548
      %v1569 = vlaneseq
      %v1570 = vshrl.u32 %v1569, 7
      %v1571 = vsub.s32 0, %v1570
      %v1572 = vrot.slane %v1505, %v1571
      %v1573 = vlaneseq
      %v1574 = vshrl.u32 %v1573, 7
      %v1575 = vsub.s32 1, %v1574
      %v1576 = vrot.slane %v1505, %v1575
      %v1579 = vadd.f32 %v1564, %v1572
      %v1580 = vadd.f32 %v1565, %v1576
      %v1581 = vadd.f32 %v1566, %v1572
      %v1582 = vadd.f32 %v1567, %v1576
      %v1583 = vld [vmem:[%s5] sm:$0xff]
      %v1584 = vld [vmem:[%s5 + $0x8] sm:$0xff]
      %v1585 = vld [vmem:[%s5 + $0x10] sm:$0xff]
      %v1586 = vld [vmem:[%s5 + $0x18] sm:$0xff]
      %v1587 = vld [vmem:[%s5 + $0x20] sm:$0xff]
      %v1588 = vld [vmem:[%s5 + $0x28] sm:$0xff]
      %v1589 = vld [vmem:[%s5 + $0x30] sm:$0xff]
      %v1590 = vld [vmem:[%s5 + $0x38] sm:$0xff]
      %v1591 = vld [vmem:[%s5 + $0x40] sm:$0xff]
      %v1592 = vld [vmem:[%s5 + $0x48] sm:$0xff]
      %v1593 = vld [vmem:[%s5 + $0x50] sm:$0xff]
      %v1594 = vld [vmem:[%s5 + $0x58] sm:$0xff]
      %v1595 = vld [vmem:[%s5 + $0x60] sm:$0xff]
      %v1596 = vld [vmem:[%s5 + $0x68] sm:$0xff]
      %v1597 = vld [vmem:[%s5 + $0x70] sm:$0xff]
      %v1598 = vld [vmem:[%s5 + $0x78] sm:$0xff]
      %v1599 = vld [vmem:[%s5 + $0x80] sm:$0xff]
      %v1600 = vld [vmem:[%s5 + $0x88] sm:$0xff]
      %v1601 = vld [vmem:[%s5 + $0x90] sm:$0xff]
      %v1602 = vld [vmem:[%s5 + $0x98] sm:$0xff]
      %v1603 = vld [vmem:[%s5 + $0xa0] sm:$0xff]
      %v1604 = vld [vmem:[%s5 + $0xa8] sm:$0xff]
      %v1605 = vld [vmem:[%s5 + $0xb0] sm:$0xff]
      %v1606 = vld [vmem:[%s5 + $0xb8] sm:$0xff]
      %v1607 = vld [vmem:[%s5 + $0xc0] sm:$0xff]
      %v1608 = vld [vmem:[%s5 + $0xc8] sm:$0xff]
      %v1609 = vld [vmem:[%s5 + $0xd0] sm:$0xff]
      %v1610 = vld [vmem:[%s5 + $0xd8] sm:$0xff]
      %v1611 = vld [vmem:[%s5 + $0xe0] sm:$0xff]
      %v1612 = vld [vmem:[%s5 + $0xe8] sm:$0xff]
      %v1613 = vld [vmem:[%s5 + $0xf0] sm:$0xff]
      %v1614 = vld [vmem:[%s5 + $0xf8] sm:$0xff]
      %v1615 = vld [vmem:[%s5 + $0x100] sm:$0xff]
      %v1616 = vld [vmem:[%s5 + $0x108] sm:$0xff]
      %v1617 = vld [vmem:[%s5 + $0x110] sm:$0xff]
      %v1618 = vld [vmem:[%s5 + $0x118] sm:$0xff]
      %v1619 = vld [vmem:[%s5 + $0x120] sm:$0xff]
      %v1620 = vld [vmem:[%s5 + $0x128] sm:$0xff]
      %v1621 = vld [vmem:[%s5 + $0x130] sm:$0xff]
      %v1622 = vld [vmem:[%s5 + $0x138] sm:$0xff]
      %v1623 = vld [vmem:[%s5 + $0x140] sm:$0xff]
      %v1624 = vld [vmem:[%s5 + $0x148] sm:$0xff]
      %v1625 = vld [vmem:[%s5 + $0x150] sm:$0xff]
      %v1626 = vld [vmem:[%s5 + $0x158] sm:$0xff]
      %v1627 = vld [vmem:[%s5 + $0x160] sm:$0xff]
      %v1628 = vld [vmem:[%s5 + $0x168] sm:$0xff]
      %v1629 = vld [vmem:[%s5 + $0x170] sm:$0xff]
      %v1630 = vld [vmem:[%s5 + $0x178] sm:$0xff]
      %v1631 = vld [vmem:[%s5 + $0x180] sm:$0xff]
      %v1632 = vld [vmem:[%s5 + $0x188] sm:$0xff]
      %v1633 = vld [vmem:[%s5 + $0x190] sm:$0xff]
      %v1634 = vld [vmem:[%s5 + $0x198] sm:$0xff]
      %v1635 = vld [vmem:[%s5 + $0x1a0] sm:$0xff]
      %v1636 = vld [vmem:[%s5 + $0x1a8] sm:$0xff]
      %v1637 = vld [vmem:[%s5 + $0x1b0] sm:$0xff]
      %v1638 = vld [vmem:[%s5 + $0x1b8] sm:$0xff]
      %v1639 = vld [vmem:[%s5 + $0x1c0] sm:$0xff]
      %v1640 = vld [vmem:[%s5 + $0x1c8] sm:$0xff]
      %v1641 = vld [vmem:[%s5 + $0x1d0] sm:$0xff]
      %v1642 = vld [vmem:[%s5 + $0x1d8] sm:$0xff]
      %v1643 = vld [vmem:[%s5 + $0x1e0] sm:$0xff]
      %v1644 = vld [vmem:[%s5 + $0x1e8] sm:$0xff]
      %v1645 = vld [vmem:[%s5 + $0x1f0] sm:$0xff]
      %v1646 = vld [vmem:[%s5 + $0x1f8] sm:$0xff]
      %v1647 = vld [vmem:[%s5 + $0x200] sm:$0xff]
      %v1648 = vld [vmem:[%s5 + $0x208] sm:$0xff]
      %v1649 = vld [vmem:[%s5 + $0x210] sm:$0xff]
      %v1650 = vld [vmem:[%s5 + $0x218] sm:$0xff]
      %v1651 = vld [vmem:[%s5 + $0x220] sm:$0xff]
      %v1652 = vld [vmem:[%s5 + $0x228] sm:$0xff]
      %v1653 = vld [vmem:[%s5 + $0x230] sm:$0xff]
      %v1654 = vld [vmem:[%s5 + $0x238] sm:$0xff]
      %v1655 = vld [vmem:[%s5 + $0x240] sm:$0xff]
      %v1656 = vld [vmem:[%s5 + $0x248] sm:$0xff]
      %v1657 = vld [vmem:[%s5 + $0x250] sm:$0xff]
      %v1658 = vld [vmem:[%s5 + $0x258] sm:$0xff]
      %v1659 = vld [vmem:[%s5 + $0x260] sm:$0xff]
      %v1660 = vld [vmem:[%s5 + $0x268] sm:$0xff]
      %v1661 = vld [vmem:[%s5 + $0x270] sm:$0xff]
      %v1662 = vld [vmem:[%s5 + $0x278] sm:$0xff]
      %v1663 = vld [vmem:[%s5 + $0x280] sm:$0xff]
      %v1664 = vld [vmem:[%s5 + $0x288] sm:$0xff]
      %v1665 = vld [vmem:[%s5 + $0x290] sm:$0xff]
      %v1666 = vld [vmem:[%s5 + $0x298] sm:$0xff]
      %v1667 = vld [vmem:[%s5 + $0x2a0] sm:$0xff]
      %v1668 = vld [vmem:[%s5 + $0x2a8] sm:$0xff]
      %v1669 = vld [vmem:[%s5 + $0x2b0] sm:$0xff]
      %v1670 = vld [vmem:[%s5 + $0x2b8] sm:$0xff]
      %v1671 = vld [vmem:[%s5 + $0x2c0] sm:$0xff]
      %v1672 = vld [vmem:[%s5 + $0x2c8] sm:$0xff]
      %v1673 = vld [vmem:[%s5 + $0x2d0] sm:$0xff]
      %v1674 = vld [vmem:[%s5 + $0x2d8] sm:$0xff]
      %v1675 = vld [vmem:[%s5 + $0x2e0] sm:$0xff]
      %v1676 = vld [vmem:[%s5 + $0x2e8] sm:$0xff]
      %v1677 = vld [vmem:[%s5 + $0x2f0] sm:$0xff]
      %v1678 = vld [vmem:[%s5 + $0x2f8] sm:$0xff]
      %v1679 = vld [vmem:[%s5 + $0x300] sm:$0xff]
      %v1680 = vld [vmem:[%s5 + $0x308] sm:$0xff]
      %v1681 = vld [vmem:[%s5 + $0x310] sm:$0xff]
      %v1682 = vld [vmem:[%s5 + $0x318] sm:$0xff]
      %v1683 = vld [vmem:[%s5 + $0x320] sm:$0xff]
      %v1684 = vld [vmem:[%s5 + $0x328] sm:$0xff]
      %v1685 = vld [vmem:[%s5 + $0x330] sm:$0xff]
      %v1686 = vld [vmem:[%s5 + $0x338] sm:$0xff]
      %v1687 = vld [vmem:[%s5 + $0x340] sm:$0xff]
      %v1688 = vld [vmem:[%s5 + $0x348] sm:$0xff]
      %v1689 = vld [vmem:[%s5 + $0x350] sm:$0xff]
      %v1690 = vld [vmem:[%s5 + $0x358] sm:$0xff]
      %v1691 = vld [vmem:[%s5 + $0x360] sm:$0xff]
      %v1692 = vld [vmem:[%s5 + $0x368] sm:$0xff]
      %v1693 = vld [vmem:[%s5 + $0x370] sm:$0xff]
      %v1694 = vld [vmem:[%s5 + $0x378] sm:$0xff]
      %v1695 = vld [vmem:[%s5 + $0x380] sm:$0xff]
      %v1696 = vld [vmem:[%s5 + $0x388] sm:$0xff]
      %v1697 = vld [vmem:[%s5 + $0x390] sm:$0xff]
      %v1698 = vld [vmem:[%s5 + $0x398] sm:$0xff]
      %v1699 = vld [vmem:[%s5 + $0x3a0] sm:$0xff]
      %v1700 = vld [vmem:[%s5 + $0x3a8] sm:$0xff]
      %v1701 = vld [vmem:[%s5 + $0x3b0] sm:$0xff]
      %v1702 = vld [vmem:[%s5 + $0x3b8] sm:$0xff]
      %v1703 = vld [vmem:[%s5 + $0x3c0] sm:$0xff]
      %v1704 = vld [vmem:[%s5 + $0x3c8] sm:$0xff]
      %v1705 = vld [vmem:[%s5 + $0x3d0] sm:$0xff]
      %v1706 = vld [vmem:[%s5 + $0x3d8] sm:$0xff]
      %v1707 = vld [vmem:[%s5 + $0x3e0] sm:$0xff]
      %v1708 = vld [vmem:[%s5 + $0x3e8] sm:$0xff]
      %v1709 = vld [vmem:[%s5 + $0x3f0] sm:$0xff]
      %v1710 = vld [vmem:[%s5 + $0x3f8] sm:$0xff]
      %v1711 = vld [vmem:[%s5 + $0x400] sm:$0xff]
      %v1712 = vld [vmem:[%s5 + $0x408] sm:$0xff]
      %v1713 = vld [vmem:[%s5 + $0x410] sm:$0xff]
      %v1714 = vld [vmem:[%s5 + $0x418] sm:$0xff]
      %v1715 = vld [vmem:[%s5 + $0x420] sm:$0xff]
      %v1716 = vld [vmem:[%s5 + $0x428] sm:$0xff]
      %v1717 = vld [vmem:[%s5 + $0x430] sm:$0xff]
      %v1718 = vld [vmem:[%s5 + $0x438] sm:$0xff]
      %v1719 = vld [vmem:[%s5 + $0x440] sm:$0xff]
      %v1720 = vld [vmem:[%s5 + $0x448] sm:$0xff]
      %v1721 = vld [vmem:[%s5 + $0x450] sm:$0xff]
      %v1722 = vld [vmem:[%s5 + $0x458] sm:$0xff]
      %v1723 = vld [vmem:[%s5 + $0x460] sm:$0xff]
      %v1724 = vld [vmem:[%s5 + $0x468] sm:$0xff]
      %v1725 = vld [vmem:[%s5 + $0x470] sm:$0xff]
      %v1726 = vld [vmem:[%s5 + $0x478] sm:$0xff]
      %v1727 = vld [vmem:[%s5 + $0x480] sm:$0xff]
      %v1728 = vld [vmem:[%s5 + $0x488] sm:$0xff]
      %v1729 = vld [vmem:[%s5 + $0x490] sm:$0xff]
      %v1730 = vld [vmem:[%s5 + $0x498] sm:$0xff]
      %v1731 = vld [vmem:[%s5 + $0x4a0] sm:$0xff]
      %v1732 = vld [vmem:[%s5 + $0x4a8] sm:$0xff]
      %v1733 = vld [vmem:[%s5 + $0x4b0] sm:$0xff]
      %v1734 = vld [vmem:[%s5 + $0x4b8] sm:$0xff]
      %v1735 = vld [vmem:[%s5 + $0x4c0] sm:$0xff]
      %v1736 = vld [vmem:[%s5 + $0x4c8] sm:$0xff]
      %v1737 = vld [vmem:[%s5 + $0x4d0] sm:$0xff]
      %v1738 = vld [vmem:[%s5 + $0x4d8] sm:$0xff]
      %v1739 = vld [vmem:[%s5 + $0x4e0] sm:$0xff]
      %v1740 = vld [vmem:[%s5 + $0x4e8] sm:$0xff]
      %v1741 = vld [vmem:[%s5 + $0x4f0] sm:$0xff]
      %v1742 = vld [vmem:[%s5 + $0x4f8] sm:$0xff]
      %v1743 = vld [vmem:[%s5 + $0x500] sm:$0xff]
      %v1744 = vld [vmem:[%s5 + $0x508] sm:$0xff]
      %v1745 = vld [vmem:[%s5 + $0x510] sm:$0xff]
      %v1746 = vld [vmem:[%s5 + $0x518] sm:$0xff]
      %v1747 = vld [vmem:[%s5 + $0x520] sm:$0xff]
      %v1748 = vld [vmem:[%s5 + $0x528] sm:$0xff]
      %v1749 = vld [vmem:[%s5 + $0x530] sm:$0xff]
      %v1750 = vld [vmem:[%s5 + $0x538] sm:$0xff]
      %v1751 = vld [vmem:[%s5 + $0x540] sm:$0xff]
      %v1752 = vld [vmem:[%s5 + $0x548] sm:$0xff]
      %v1753 = vld [vmem:[%s5 + $0x550] sm:$0xff]
      %v1754 = vld [vmem:[%s5 + $0x558] sm:$0xff]
      %v1755 = vld [vmem:[%s5 + $0x560] sm:$0xff]
      %v1756 = vld [vmem:[%s5 + $0x568] sm:$0xff]
      %v1757 = vld [vmem:[%s5 + $0x570] sm:$0xff]
      %v1758 = vld [vmem:[%s5 + $0x578] sm:$0xff]
      %v1759 = vld [vmem:[%s5 + $0x580] sm:$0xff]
      %v1760 = vld [vmem:[%s5 + $0x588] sm:$0xff]
      %v1761 = vld [vmem:[%s5 + $0x590] sm:$0xff]
      %v1762 = vld [vmem:[%s5 + $0x598] sm:$0xff]
      %v1763 = vld [vmem:[%s5 + $0x5a0] sm:$0xff]
      %v1764 = vld [vmem:[%s5 + $0x5a8] sm:$0xff]
      %v1765 = vld [vmem:[%s5 + $0x5b0] sm:$0xff]
      %v1766 = vld [vmem:[%s5 + $0x5b8] sm:$0xff]
      %v1767 = vld [vmem:[%s5 + $0x5c0] sm:$0xff]
      %v1768 = vld [vmem:[%s5 + $0x5c8] sm:$0xff]
      %v1769 = vld [vmem:[%s5 + $0x5d0] sm:$0xff]
      %v1770 = vld [vmem:[%s5 + $0x5d8] sm:$0xff]
      %v1771 = vld [vmem:[%s5 + $0x5e0] sm:$0xff]
      %v1772 = vld [vmem:[%s5 + $0x5e8] sm:$0xff]
      %v1773 = vld [vmem:[%s5 + $0x5f0] sm:$0xff]
      %v1774 = vld [vmem:[%s5 + $0x5f8] sm:$0xff]
      %v1775 = vld [vmem:[%s6] sm:$0x3f]
      %v1777 = vlaneseq
      %v1778 = vshrl.u32 %v1777, 7
      %v1779 = vsub.s32 0, %v1778
      %v1780 = vrot.slane %v1775, %v1779
      %v1781 = vlaneseq
      %v1782 = vshrl.u32 %v1781, 7
      %v1783 = vsub.s32 1, %v1782
      %v1784 = vrot.slane %v1775, %v1783
      %v1785 = vlaneseq
      %v1786 = vshrl.u32 %v1785, 7
      %v1787 = vsub.s32 2, %v1786
      %v1788 = vrot.slane %v1775, %v1787
      %v1789 = vlaneseq
      %v1790 = vshrl.u32 %v1789, 7
      %v1791 = vsub.s32 3, %v1790
      %v1792 = vrot.slane %v1775, %v1791
      %v1793 = vlaneseq
      %v1794 = vshrl.u32 %v1793, 7
      %v1795 = vsub.s32 4, %v1794
      %v1796 = vrot.slane %v1775, %v1795
      %v1797 = vlaneseq
      %v1798 = vshrl.u32 %v1797, 7
      %v1799 = vsub.s32 5, %v1798
      %v1800 = vrot.slane %v1775, %v1799
      %1807 = vmatprep.subr.mxu0 %v1584
      %1808 = vmatpush1.msra.mxu0 %v1583
      %1809 = vmatprep.subr.mxu0 %v1590
      %1810 = vmatpush1.msra.mxu0 %v1589
      %1811 = vmatprep.subr.mxu0 %v1596
      %1812 = vmatpush1.msra.mxu0 %v1595
      %1813 = vmatprep.subr.mxu0 %v1602
      %1814 = vmatpush1.msra.mxu0 %v1601
      %1815 = vmatprep.subr.mxu0 %v1608
      %1816 = vmatpush1.msra.mxu0 %v1607
      %1817 = vmatprep.subr.mxu0 %v1614
      %1818 = vmatpush1.msra.mxu0 %v1613
      %1819 = vmatprep.subr.mxu0 %v1620
      %1820 = vmatpush1.msra.mxu0 %v1619
      %1821 = vmatprep.subr.mxu0 %v1626
      %1822 = vmatpush1.msra.mxu0 %v1625
      %1823 = vmatprep.subr.mxu0 %v1632
      %1824 = vmatpush1.msra.mxu0 %v1631
      %1825 = vmatprep.subr.mxu0 %v1638
      %1826 = vmatpush1.msra.mxu0 %v1637
      %1827 = vmatprep.subr.mxu0 %v1644
      %1828 = vmatpush1.msra.mxu0 %v1643
      %1829 = vmatprep.subr.mxu0 %v1650
      %1830 = vmatpush1.msra.mxu0 %v1649
      %1831 = vmatprep.subr.mxu0 %v1656
      %1832 = vmatpush1.msra.mxu0 %v1655
      %1833 = vmatprep.subr.mxu0 %v1662
      %1834 = vmatpush1.msra.mxu0 %v1661
      %1835 = vmatprep.subr.mxu0 %v1668
      %1836 = vmatpush1.msra.mxu0 %v1667
      %1837 = vmatprep.subr.mxu0 %v1674
      %1838 = vmatpush1.msra.mxu0 %v1673
      %1839 = vmatprep.subr.mxu0 %v1680
      %1840 = vmatpush1.msra.mxu0 %v1679
      %1841 = vmatprep.subr.mxu0 %v1686
      %1842 = vmatpush1.msra.mxu0 %v1685
      %1843 = vmatprep.subr.mxu0 %v1692
      %1844 = vmatpush1.msra.mxu0 %v1691
      %1845 = vmatprep.subr.mxu0 %v1698
      %1846 = vmatpush1.msra.mxu0 %v1697
      %1847 = vmatprep.subr.mxu0 %v1704
      %1848 = vmatpush1.msra.mxu0 %v1703
      %1849 = vmatprep.subr.mxu0 %v1710
      %1850 = vmatpush1.msra.mxu0 %v1709
      %1851 = vmatprep.subr.mxu0 %v1716
      %1852 = vmatpush1.msra.mxu0 %v1715
      %1853 = vmatprep.subr.mxu0 %v1722
      %1854 = vmatpush1.msra.mxu0 %v1721
      %1855 = vmatprep.subr.mxu0 %v1728
      %1856 = vmatpush1.msra.mxu0 %v1727
      %1857 = vmatprep.subr.mxu0 %v1734
      %1858 = vmatpush1.msra.mxu0 %v1733
      %1859 = vmatprep.subr.mxu0 %v1740
      %1860 = vmatpush1.msra.mxu0 %v1739
      %1861 = vmatprep.subr.mxu0 %v1746
      %1862 = vmatpush1.msra.mxu0 %v1745
      %1863 = vmatprep.subr.mxu0 %v1752
      %1864 = vmatpush1.msra.mxu0 %v1751
      %1865 = vmatprep.subr.mxu0 %v1758
      %1866 = vmatpush1.msra.mxu0 %v1757
      %1867 = vmatprep.subr.mxu0 %v1764
      %1868 = vmatpush1.msra.mxu0 %v1763
      %1869 = vmatprep.subr.mxu0 %v1770
      %1870 = vmatpush1.msra.mxu0 %v1769
      %1871 = vmatprep.mubr.f32.mxu0 %v1580
      %1872 = vmatmul.mubr.f32.gmra.mrb[0].mxu0 %v1579
      %v1873 = vpop.f32.mrb[0].mxu0
      %v1874 = vadd.f32 %v1780, %v1873
      %v1875 = vpop.f32.mrb[0].mxu0
      %v1876 = vadd.f32 %v1784, %v1875
      %1877 = vmatprep.mubr.f32.mxu0 %v1582
      %1878 = vmatmul.mubr.f32.gmra.mrb[0].mxu0 %v1581
      %v1879 = vpop.f32.mrb[0].mxu0
      %v1880 = vadd.f32 %v1780, %v1879
      %v1881 = vpop.f32.mrb[0].mxu0
      %v1882 = vadd.f32 %v1784, %v1881
      %1883 = vdwg.mxu0
      %1884 = vmatprep.subr.mxu0 %v1586
      %1885 = vmatpush1.msra.mxu0 %v1585
      %1886 = vmatprep.subr.mxu0 %v1592
      %1887 = vmatpush1.msra.mxu0 %v1591
      %1888 = vmatprep.subr.mxu0 %v1598
      %1889 = vmatpush1.msra.mxu0 %v1597
      %1890 = vmatprep.subr.mxu0 %v1604
      %1891 = vmatpush1.msra.mxu0 %v1603
      %1892 = vmatprep.subr.mxu0 %v1610
      %1893 = vmatpush1.msra.mxu0 %v1609
      %1894 = vmatprep.subr.mxu0 %v1616
      %1895 = vmatpush1.msra.mxu0 %v1615
      %1896 = vmatprep.subr.mxu0 %v1622
      %1897 = vmatpush1.msra.mxu0 %v1621
      %1898 = vmatprep.subr.mxu0 %v1628
      %1899 = vmatpush1.msra.mxu0 %v1627
      %1900 = vmatprep.subr.mxu0 %v1634
      %1901 = vmatpush1.msra.mxu0 %v1633
      %1902 = vmatprep.subr.mxu0 %v1640
      %1903 = vmatpush1.msra.mxu0 %v1639
      %1904 = vmatprep.subr.mxu0 %v1646
      %1905 = vmatpush1.msra.mxu0 %v1645
      %1906 = vmatprep.subr.mxu0 %v1652
      %1907 = vmatpush1.msra.mxu0 %v1651
      %1908 = vmatprep.subr.mxu0 %v1658
      %1909 = vmatpush1.msra.mxu0 %v1657
      %1910 = vmatprep.subr.mxu0 %v1664
      %1911 = vmatpush1.msra.mxu0 %v1663
      %1912 = vmatprep.subr.mxu0 %v1670
      %1913 = vmatpush1.msra.mxu0 %v1669
      %1914 = vmatprep.subr.mxu0 %v1676
      %1915 = vmatpush1.msra.mxu0 %v1675
      %1916 = vmatprep.subr.mxu0 %v1682
      %1917 = vmatpush1.msra.mxu0 %v1681
      %1918 = vmatprep.subr.mxu0 %v1688
      %1919 = vmatpush1.msra.mxu0 %v1687
      %1920 = vmatprep.subr.mxu0 %v1694
      %1921 = vmatpush1.msra.mxu0 %v1693
      %1922 = vmatprep.subr.mxu0 %v1700
      %1923 = vmatpush1.msra.mxu0 %v1699
      %1924 = vmatprep.subr.mxu0 %v1706
      %1925 = vmatpush1.msra.mxu0 %v1705
      %1926 = vmatprep.subr.mxu0 %v1712
      %1927 = vmatpush1.msra.mxu0 %v1711
      %1928 = vmatprep.subr.mxu0 %v1718
      %1929 = vmatpush1.msra.mxu0 %v1717
      %1930 = vmatprep.subr.mxu0 %v1724
      %1931 = vmatpush1.msra.mxu0 %v1723
      %1932 = vmatprep.subr.mxu0 %v1730
      %1933 = vmatpush1.msra.mxu0 %v1729
      %1934 = vmatprep.subr.mxu0 %v1736
      %1935 = vmatpush1.msra.mxu0 %v1735
      %1936 = vmatprep.subr.mxu0 %v1742
      %1937 = vmatpush1.msra.mxu0 %v1741
      %1938 = vmatprep.subr.mxu0 %v1748
      %1939 = vmatpush1.msra.mxu0 %v1747
      %1940 = vmatprep.subr.mxu0 %v1754
      %1941 = vmatpush1.msra.mxu0 %v1753
      %1942 = vmatprep.subr.mxu0 %v1760
      %1943 = vmatpush1.msra.mxu0 %v1759
      %1944 = vmatprep.subr.mxu0 %v1766
      %1945 = vmatpush1.msra.mxu0 %v1765
      %1946 = vmatprep.subr.mxu0 %v1772
      %1947 = vmatpush1.msra.mxu0 %v1771
      %1948 = vmatprep.mubr.f32.mxu0 %v1580
      %1949 = vmatmul.mubr.f32.gmra.mrb[0].mxu0 %v1579
      %v1950 = vpop.f32.mrb[0].mxu0
      %v1951 = vadd.f32 %v1788, %v1950
      %v1952 = vpop.f32.mrb[0].mxu0
      %v1953 = vadd.f32 %v1792, %v1952
      %1954 = vmatprep.mubr.f32.mxu0 %v1582
      %1955 = vmatmul.mubr.f32.gmra.mrb[0].mxu0 %v1581
      %v1956 = vpop.f32.mrb[0].mxu0
      %v1957 = vadd.f32 %v1788, %v1956
      %v1958 = vpop.f32.mrb[0].mxu0
      %v1959 = vadd.f32 %v1792, %v1958
      %1960 = vdwg.mxu0
      %1961 = vmatprep.subr.mxu0 %v1588
      %1962 = vmatpush1.msra.mxu0 %v1587
      %1963 = vmatprep.subr.mxu0 %v1594
      %1964 = vmatpush1.msra.mxu0 %v1593
      %1965 = vmatprep.subr.mxu0 %v1600
      %1966 = vmatpush1.msra.mxu0 %v1599
      %1967 = vmatprep.subr.mxu0 %v1606
      %1968 = vmatpush1.msra.mxu0 %v1605
      %1969 = vmatprep.subr.mxu0 %v1612
      %1970 = vmatpush1.msra.mxu0 %v1611
      %1971 = vmatprep.subr.mxu0 %v1618
      %1972 = vmatpush1.msra.mxu0 %v1617
      %1973 = vmatprep.subr.mxu0 %v1624
      %1974 = vmatpush1.msra.mxu0 %v1623
      %1975 = vmatprep.subr.mxu0 %v1630
      %1976 = vmatpush1.msra.mxu0 %v1629
      %1977 = vmatprep.subr.mxu0 %v1636
      %1978 = vmatpush1.msra.mxu0 %v1635
      %1979 = vmatprep.subr.mxu0 %v1642
      %1980 = vmatpush1.msra.mxu0 %v1641
      %1981 = vmatprep.subr.mxu0 %v1648
      %1982 = vmatpush1.msra.mxu0 %v1647
      %1983 = vmatprep.subr.mxu0 %v1654
      %1984 = vmatpush1.msra.mxu0 %v1653
      %1985 = vmatprep.subr.mxu0 %v1660
      %1986 = vmatpush1.msra.mxu0 %v1659
      %1987 = vmatprep.subr.mxu0 %v1666
      %1988 = vmatpush1.msra.mxu0 %v1665
      %1989 = vmatprep.subr.mxu0 %v1672
      %1990 = vmatpush1.msra.mxu0 %v1671
      %1991 = vmatprep.subr.mxu0 %v1678
      %1992 = vmatpush1.msra.mxu0 %v1677
      %1993 = vmatprep.subr.mxu0 %v1684
      %1994 = vmatpush1.msra.mxu0 %v1683
      %1995 = vmatprep.subr.mxu0 %v1690
      %1996 = vmatpush1.msra.mxu0 %v1689
      %1997 = vmatprep.subr.mxu0 %v1696
      %1998 = vmatpush1.msra.mxu0 %v1695
      %1999 = vmatprep.subr.mxu0 %v1702
      %2000 = vmatpush1.msra.mxu0 %v1701
      %2001 = vmatprep.subr.mxu0 %v1708
      %2002 = vmatpush1.msra.mxu0 %v1707
      %2003 = vmatprep.subr.mxu0 %v1714
      %2004 = vmatpush1.msra.mxu0 %v1713
      %2005 = vmatprep.subr.mxu0 %v1720
      %2006 = vmatpush1.msra.mxu0 %v1719
      %2007 = vmatprep.subr.mxu0 %v1726
      %2008 = vmatpush1.msra.mxu0 %v1725
      %2009 = vmatprep.subr.mxu0 %v1732
      %2010 = vmatpush1.msra.mxu0 %v1731
      %2011 = vmatprep.subr.mxu0 %v1738
      %2012 = vmatpush1.msra.mxu0 %v1737
      %2013 = vmatprep.subr.mxu0 %v1744
      %2014 = vmatpush1.msra.mxu0 %v1743
      %2015 = vmatprep.subr.mxu0 %v1750
      %2016 = vmatpush1.msra.mxu0 %v1749
      %2017 = vmatprep.subr.mxu0 %v1756
      %2018 = vmatpush1.msra.mxu0 %v1755
      %2019 = vmatprep.subr.mxu0 %v1762
      %2020 = vmatpush1.msra.mxu0 %v1761
      %2021 = vmatprep.subr.mxu0 %v1768
      %2022 = vmatpush1.msra.mxu0 %v1767
      %2023 = vmatprep.subr.mxu0 %v1774
      %2024 = vmatpush1.msra.mxu0 %v1773
      %2025 = vmatprep.mubr.f32.mxu0 %v1580
      %2026 = vmatmul.mubr.f32.gmra.mrb[0].mxu0 %v1579
      %v2027 = vpop.f32.mrb[0].mxu0
      %v2028 = vadd.f32 %v1796, %v2027
      %v2029 = vpop.f32.mrb[0].mxu0
      %v2030 = vadd.f32 %v1800, %v2029
      %2031 = vmatprep.mubr.f32.mxu0 %v1582
      %2032 = vmatmul.mubr.f32.gmra.mrb[0].mxu0 %v1581
      %v2033 = vpop.f32.mrb[0].mxu0
      %v2034 = vadd.f32 %v1796, %v2033
      %v2035 = vpop.f32.mrb[0].mxu0
      %v2036 = vadd.f32 %v1800, %v2035
      %2037 = vdwg.mxu0
      %v2038 = vld [vmem:[%s8] sm:$0x3]
      %2039 = vmatprep.subr.mxu0 0.0
      %2040 = vmatpush1.xpose.msra.mxu0 %v1951
      %2041 = vmatprep.subr.mxu0 0.0
      %2042 = vmatpush1.xpose.msra.mxu0 %v1957
      %2043 = vmatprep.subr.mxu0 0.0
      %2044 = vmatpush1.xpose.msra.mxu0 0.0
      %2045 = vmatprep.subr.mxu0 0.0
      %2046 = vmatpush1.xpose.msra.mxu0 0.0
      %2047 = vmatprep.subr.mxu0 0.0
      %2048 = vmatpush1.xpose.msra.mxu0 0.0
      %2049 = vmatprep.subr.mxu0 0.0
      %2050 = vmatpush1.xpose.msra.mxu0 0.0
      %2051 = vmatprep.subr.mxu0 0.0
      %2052 = vmatpush1.xpose.msra.mxu0 0.0
      %2053 = vmatprep.subr.mxu0 0.0
      %2054 = vmatpush1.xpose.msra.mxu0 0.0
      %2055 = vmatprep.subr.mxu0 0.0
      %2056 = vmatpush1.xpose.msra.mxu0 0.0
      %2057 = vmatprep.subr.mxu0 0.0
      %2058 = vmatpush1.xpose.msra.mxu0 0.0
      %2059 = vmatprep.subr.mxu0 0.0
      %2060 = vmatpush1.xpose.msra.mxu0 0.0
      %2061 = vmatprep.subr.mxu0 0.0
      %2062 = vmatpush1.xpose.msra.mxu0 0.0
      %2063 = vmatprep.subr.mxu0 0.0
      %2064 = vmatpush1.xpose.msra.mxu0 0.0
      %2065 = vmatprep.subr.mxu0 0.0
      %2066 = vmatpush1.xpose.msra.mxu0 0.0
      %2067 = vmatprep.subr.mxu0 0.0
      %2068 = vmatpush1.xpose.msra.mxu0 0.0
      %2069 = vmatprep.subr.mxu0 0.0
      %2070 = vmatpush1.xpose.msra.mxu0 0.0
      %2071 = vmatprep.subr.mxu0 0.0
      %2072 = vmatpush1.xpose.msra.mxu0 0.0
      %2073 = vmatprep.subr.mxu0 0.0
      %2074 = vmatpush1.xpose.msra.mxu0 0.0
      %2075 = vmatprep.subr.mxu0 0.0
      %2076 = vmatpush1.xpose.msra.mxu0 0.0
      %2077 = vmatprep.subr.mxu0 0.0
      %2078 = vmatpush1.xpose.msra.mxu0 0.0
      %2079 = vmatprep.subr.mxu0 0.0
      %2080 = vmatpush1.xpose.msra.mxu0 0.0
      %2081 = vmatprep.subr.mxu0 0.0
      %2082 = vmatpush1.xpose.msra.mxu0 0.0
      %2083 = vmatprep.subr.mxu0 0.0
      %2084 = vmatpush1.xpose.msra.mxu0 0.0
      %2085 = vmatprep.subr.mxu0 0.0
      %2086 = vmatpush1.xpose.msra.mxu0 0.0
      %2087 = vmatprep.subr.mxu0 0.0
      %2088 = vmatpush1.xpose.msra.mxu0 0.0
      %2089 = vmatprep.subr.mxu0 0.0
      %2090 = vmatpush1.xpose.msra.mxu0 0.0
      %2091 = vmatprep.subr.mxu0 0.0
      %2092 = vmatpush1.xpose.msra.mxu0 0.0
      %2093 = vmatprep.subr.mxu0 0.0
      %2094 = vmatpush1.xpose.msra.mxu0 0.0
      %2095 = vmatprep.subr.mxu0 0.0
      %2096 = vmatpush1.xpose.msra.mxu0 0.0
      %2097 = vmatprep.subr.mxu0 0.0
      %2098 = vmatpush1.xpose.msra.mxu0 0.0
      %2099 = vmatprep.subr.mxu0 0.0
      %2100 = vmatpush1.xpose.msra.mxu0 0.0
      %2101 = vmatprep.subr.mxu0 0.0
      %2102 = vmatpush1.xpose.msra.mxu0 0.0
      %2103 = vmatprep.mubr.f32.mxu0 0.0
      %2104 = vmatmul.mubr.f32.gmra.mrb[0].mxu0 %v1874
      %v2105 = vpop.f32.mrb[0].mxu0
      %v2106 = vadd.f32 0.0, %v2105
      %v2107 = vpop.f32.mrb[0].mxu0
      %2108 = vmatprep.mubr.f32.mxu0 0.0
      %2109 = vmatmul.mubr.f32.gmra.mrb[0].mxu0 %v1880
      %v2110 = vpop.f32.mrb[0].mxu0
      %v2111 = vadd.f32 0.0, %v2110
      %v2112 = vpop.f32.mrb[0].mxu0
      %2113 = vdwg.mxu0
      %v2114 = vmul.f32 %v2106, 0.088388346
      %v2115 = vmul.f32 %v2111, 0.088388346
      %vm2116 = vcmask 130048
      %v2117 = vsel %vm2116, %v2114, -inf
      %2118 = vmax.xlane.f32.xlu0 %v2117
      %v2119 = vpop.xlane.xlu0 %2118
      %v2120 = vsel %vm2116, %v2115, -inf
      %2121 = vmax.xlane.f32.xlu0 %v2120
      %v2122 = vpop.xlane.xlu0 %2121
      %v2123 = vsub.f32 %v2114, %v2119
      %v2124 = vsub.f32 %v2115, %v2122
      %v2125 = vmul.f32 %v2123, 1.442695
      %v2126 = vpow.pop %v2125
      %v2127 = vmul.f32 %v2124, 1.442695
      %v2128 = vpow.pop %v2127
      %v2129 = vsel %vm2116, %v2126, 0.0
      %2130 = vadd.xlane.f32.xlu0 %v2129
      %v2131 = vpop.xlane.xlu0 %2130
      %v2132 = vsel %vm2116, %v2128, 0.0
      %2133 = vadd.xlane.f32.xlu0 %v2132
      %v2134 = vpop.xlane.xlu0 %2133
      %v2135 = vrcp.pop %v2131
      %v2136 = vrcp.pop %v2134
      %v2137 = vmul.f32 %v2126, %v2135
      %v2138 = vmul.f32 %v2128, %v2136
      %v2140 = vsel %vm2116, %v2137, 0
      %v2143 = vsel %vm2116, %v2138, 0
      %2145 = vmatprep.subr.mxu0 0.0
      %2146 = vmatpush1.msra.mxu0 %v2028
      %2147 = vmatprep.subr.mxu0 0.0
      %2148 = vmatpush1.msra.mxu0 %v2034
      %2149 = vmatprep.subr.mxu0 0.0
      %2150 = vmatpush1.msra.mxu0 0.0
      %2151 = vmatprep.subr.mxu0 0.0
      %2152 = vmatpush1.msra.mxu0 0.0
      %2153 = vmatprep.subr.mxu0 0.0
      %2154 = vmatpush1.msra.mxu0 0.0
      %2155 = vmatprep.subr.mxu0 0.0
      %2156 = vmatpush1.msra.mxu0 0.0
      %2157 = vmatprep.subr.mxu0 0.0
      %2158 = vmatpush1.msra.mxu0 0.0
      %2159 = vmatprep.subr.mxu0 0.0
      %2160 = vmatpush1.msra.mxu0 0.0
      %2161 = vmatprep.subr.mxu0 0.0
      %2162 = vmatpush1.msra.mxu0 0.0
      %2163 = vmatprep.subr.mxu0 0.0
      %2164 = vmatpush1.msra.mxu0 0.0
      %2165 = vmatprep.subr.mxu0 0.0
      %2166 = vmatpush1.msra.mxu0 0.0
      %2167 = vmatprep.subr.mxu0 0.0
      %2168 = vmatpush1.msra.mxu0 0.0
      %2169 = vmatprep.subr.mxu0 0.0
      %2170 = vmatpush1.msra.mxu0 0.0
      %2171 = vmatprep.subr.mxu0 0.0
      %2172 = vmatpush1.msra.mxu0 0.0
      %2173 = vmatprep.subr.mxu0 0.0
      %2174 = vmatpush1.msra.mxu0 0.0
      %2175 = vmatprep.subr.mxu0 0.0
      %2176 = vmatpush1.msra.mxu0 0.0
      %2177 = vmatprep.subr.mxu0 0.0
      %2178 = vmatpush1.msra.mxu0 0.0
      %2179 = vmatprep.subr.mxu0 0.0
      %2180 = vmatpush1.msra.mxu0 0.0
      %2181 = vmatprep.subr.mxu0 0.0
      %2182 = vmatpush1.msra.mxu0 0.0
      %2183 = vmatprep.subr.mxu0 0.0
      %2184 = vmatpush1.msra.mxu0 0.0
      %2185 = vmatprep.subr.mxu0 0.0
      %2186 = vmatpush1.msra.mxu0 0.0
      %2187 = vmatprep.subr.mxu0 0.0
      %2188 = vmatpush1.msra.mxu0 0.0
      %2189 = vmatprep.subr.mxu0 0.0
      %2190 = vmatpush1.msra.mxu0 0.0
      %2191 = vmatprep.subr.mxu0 0.0
      %2192 = vmatpush1.msra.mxu0 0.0
      %2193 = vmatprep.subr.mxu0 0.0
      %2194 = vmatpush1.msra.mxu0 0.0
      %2195 = vmatprep.subr.mxu0 0.0
      %2196 = vmatpush1.msra.mxu0 0.0
      %2197 = vmatprep.subr.mxu0 0.0
      %2198 = vmatpush1.msra.mxu0 0.0
      %2199 = vmatprep.subr.mxu0 0.0
      %2200 = vmatpush1.msra.mxu0 0.0
      %2201 = vmatprep.subr.mxu0 0.0
      %2202 = vmatpush1.msra.mxu0 0.0
      %2203 = vmatprep.subr.mxu0 0.0
      %2204 = vmatpush1.msra.mxu0 0.0
      %2205 = vmatprep.subr.mxu0 0.0
      %2206 = vmatpush1.msra.mxu0 0.0
      %2207 = vmatprep.subr.mxu0 0.0
      %2208 = vmatpush1.msra.mxu0 0.0
      %2209 = vmatprep.mubr.f32.mxu0 0.0
      %2210 = vmatmul.mubr.f32.gmra.mrb[0].mxu0 %v2140
      %v2211 = vpop.f32.mrb[0].mxu0
      %v2212 = vadd.f32 0.0, %v2211
      %v2213 = vpop.f32.mrb[0].mxu0
      %2214 = vmatprep.mubr.f32.mxu0 0.0
      %2215 = vmatmul.mubr.f32.gmra.mrb[0].mxu0 %v2143
      %v2216 = vpop.f32.mrb[0].mxu0
      %v2217 = vadd.f32 0.0, %v2216
      %v2218 = vpop.f32.mrb[0].mxu0
      %2219 = vdwg.mxu0
      %v2220 = vld [vmem:[%s7] sm:$0xff]
      %v2221 = vld [vmem:[%s7 + $0x8] sm:$0xff]
      %v2222 = vld [vmem:[%s7 + $0x10] sm:$0xff]
      %v2223 = vld [vmem:[%s7 + $0x18] sm:$0xff]
      %v2224 = vld [vmem:[%s7 + $0x20] sm:$0xff]
      %v2225 = vld [vmem:[%s7 + $0x28] sm:$0xff]
      %v2226 = vld [vmem:[%s7 + $0x30] sm:$0xff]
      %v2227 = vld [vmem:[%s7 + $0x38] sm:$0xff]
      %v2228 = vld [vmem:[%s7 + $0x40] sm:$0xff]
      %v2229 = vld [vmem:[%s7 + $0x48] sm:$0xff]
      %v2230 = vld [vmem:[%s7 + $0x50] sm:$0xff]
      %v2231 = vld [vmem:[%s7 + $0x58] sm:$0xff]
      %v2232 = vld [vmem:[%s7 + $0x60] sm:$0xff]
      %v2233 = vld [vmem:[%s7 + $0x68] sm:$0xff]
      %v2234 = vld [vmem:[%s7 + $0x70] sm:$0xff]
      %v2235 = vld [vmem:[%s7 + $0x78] sm:$0xff]
      %v2236 = vld [vmem:[%s7 + $0x80] sm:$0xff]
      %v2237 = vld [vmem:[%s7 + $0x88] sm:$0xff]
      %v2238 = vld [vmem:[%s7 + $0x90] sm:$0xff]
      %v2239 = vld [vmem:[%s7 + $0x98] sm:$0xff]
      %v2240 = vld [vmem:[%s7 + $0xa0] sm:$0xff]
      %v2241 = vld [vmem:[%s7 + $0xa8] sm:$0xff]
      %v2242 = vld [vmem:[%s7 + $0xb0] sm:$0xff]
      %v2243 = vld [vmem:[%s7 + $0xb8] sm:$0xff]
      %v2244 = vld [vmem:[%s7 + $0xc0] sm:$0xff]
      %v2245 = vld [vmem:[%s7 + $0xc8] sm:$0xff]
      %v2246 = vld [vmem:[%s7 + $0xd0] sm:$0xff]
      %v2247 = vld [vmem:[%s7 + $0xd8] sm:$0xff]
      %v2248 = vld [vmem:[%s7 + $0xe0] sm:$0xff]
      %v2249 = vld [vmem:[%s7 + $0xe8] sm:$0xff]
      %v2250 = vld [vmem:[%s7 + $0xf0] sm:$0xff]
      %v2251 = vld [vmem:[%s7 + $0xf8] sm:$0xff]
      %2252 = vmatprep.subr.mxu0 %v2221
      %2253 = vmatpush1.msra.mxu0 %v2220
      %2254 = vmatprep.subr.mxu0 %v2223
      %2255 = vmatpush1.msra.mxu0 %v2222
      %2256 = vmatprep.subr.mxu0 %v2225
      %2257 = vmatpush1.msra.mxu0 %v2224
      %2258 = vmatprep.subr.mxu0 %v2227
      %2259 = vmatpush1.msra.mxu0 %v2226
      %2260 = vmatprep.subr.mxu0 %v2229
      %2261 = vmatpush1.msra.mxu0 %v2228
      %2262 = vmatprep.subr.mxu0 %v2231
      %2263 = vmatpush1.msra.mxu0 %v2230
      %2264 = vmatprep.subr.mxu0 %v2233
      %2265 = vmatpush1.msra.mxu0 %v2232
      %2266 = vmatprep.subr.mxu0 %v2235
      %2267 = vmatpush1.msra.mxu0 %v2234
      %2268 = vmatprep.subr.mxu0 %v2237
      %2269 = vmatpush1.msra.mxu0 %v2236
      %2270 = vmatprep.subr.mxu0 %v2239
      %2271 = vmatpush1.msra.mxu0 %v2238
      %2272 = vmatprep.subr.mxu0 %v2241
      %2273 = vmatpush1.msra.mxu0 %v2240
      %2274 = vmatprep.subr.mxu0 %v2243
      %2275 = vmatpush1.msra.mxu0 %v2242
      %2276 = vmatprep.subr.mxu0 %v2245
      %2277 = vmatpush1.msra.mxu0 %v2244
      %2278 = vmatprep.subr.mxu0 %v2247
      %2279 = vmatpush1.msra.mxu0 %v2246
      %2280 = vmatprep.subr.mxu0 %v2249
      %2281 = vmatpush1.msra.mxu0 %v2248
      %2282 = vmatprep.subr.mxu0 %v2251
      %2283 = vmatpush1.msra.mxu0 %v2250
      %2284 = vmatprep.subr.mxu0 0.0
      %2285 = vmatpush1.msra.mxu0 0.0
      %2286 = vmatprep.subr.mxu0 0.0
      %2287 = vmatpush1.msra.mxu0 0.0
      %2288 = vmatprep.subr.mxu0 0.0
      %2289 = vmatpush1.msra.mxu0 0.0
      %2290 = vmatprep.subr.mxu0 0.0
      %2291 = vmatpush1.msra.mxu0 0.0
      %2292 = vmatprep.subr.mxu0 0.0
      %2293 = vmatpush1.msra.mxu0 0.0
      %2294 = vmatprep.subr.mxu0 0.0
      %2295 = vmatpush1.msra.mxu0 0.0
      %2296 = vmatprep.subr.mxu0 0.0
      %2297 = vmatpush1.msra.mxu0 0.0
      %2298 = vmatprep.subr.mxu0 0.0
      %2299 = vmatpush1.msra.mxu0 0.0
      %2300 = vmatprep.subr.mxu0 0.0
      %2301 = vmatpush1.msra.mxu0 0.0
      %2302 = vmatprep.subr.mxu0 0.0
      %2303 = vmatpush1.msra.mxu0 0.0
      %2304 = vmatprep.subr.mxu0 0.0
      %2305 = vmatpush1.msra.mxu0 0.0
      %2306 = vmatprep.subr.mxu0 0.0
      %2307 = vmatpush1.msra.mxu0 0.0
      %2308 = vmatprep.subr.mxu0 0.0
      %2309 = vmatpush1.msra.mxu0 0.0
      %2310 = vmatprep.subr.mxu0 0.0
      %2311 = vmatpush1.msra.mxu0 0.0
      %2312 = vmatprep.subr.mxu0 0.0
      %2313 = vmatpush1.msra.mxu0 0.0
      %2314 = vmatprep.subr.mxu0 0.0
      %2315 = vmatpush1.msra.mxu0 0.0
      %2316 = vmatprep.mubr.f32.mxu0 0.0
      %2317 = vmatmul.mubr.f32.gmra.mrb[0].mxu0 %v2212
      %v2318 = vpop.f32.mrb[0].mxu0
      %v2319 = vadd.f32 0.0, %v2318
      %v2320 = vpop.f32.mrb[0].mxu0
      %v2321 = vadd.f32 0.0, %v2320
      %2322 = vmatprep.mubr.f32.mxu0 0.0
      %2323 = vmatmul.mubr.f32.gmra.mrb[0].mxu0 %v2217
      %v2324 = vpop.f32.mrb[0].mxu0
      %v2325 = vadd.f32 0.0, %v2324
      %v2326 = vpop.f32.mrb[0].mxu0
      %v2327 = vadd.f32 0.0, %v2326
      %2328 = vdwg.mxu0
      %v2330 = vlaneseq
      %v2331 = vshrl.u32 %v2330, 7
      %v2332 = vsub.s32 0, %v2331
      %v2333 = vrot.slane %v2038, %v2332
      %v2334 = vlaneseq
      %v2335 = vshrl.u32 %v2334, 7
      %v2336 = vsub.s32 1, %v2335
      %v2337 = vrot.slane %v2038, %v2336
      %v2340 = vadd.f32 %v2333, %v2319
      %v2341 = vadd.f32 %v2337, %v2321
      %v2342 = vadd.f32 %v2333, %v2325
      %v2343 = vadd.f32 %v2337, %v2327
      %2344 = vmatprep.subr.mxu0 0.0
      %2345 = vmatpush1.xpose.msra.mxu0 %v1953
      %2346 = vmatprep.subr.mxu0 0.0
      %2347 = vmatpush1.xpose.msra.mxu0 %v1959
      %2348 = vmatprep.subr.mxu0 0.0
      %2349 = vmatpush1.xpose.msra.mxu0 0.0
      %2350 = vmatprep.subr.mxu0 0.0
      %2351 = vmatpush1.xpose.msra.mxu0 0.0
      %2352 = vmatprep.subr.mxu0 0.0
      %2353 = vmatpush1.xpose.msra.mxu0 0.0
      %2354 = vmatprep.subr.mxu0 0.0
      %2355 = vmatpush1.xpose.msra.mxu0 0.0
      %2356 = vmatprep.subr.mxu0 0.0
      %2357 = vmatpush1.xpose.msra.mxu0 0.0
      %2358 = vmatprep.subr.mxu0 0.0
      %2359 = vmatpush1.xpose.msra.mxu0 0.0
      %2360 = vmatprep.subr.mxu0 0.0
      %2361 = vmatpush1.xpose.msra.mxu0 0.0
      %2362 = vmatprep.subr.mxu0 0.0
      %2363 = vmatpush1.xpose.msra.mxu0 0.0
      %2364 = vmatprep.subr.mxu0 0.0
      %2365 = vmatpush1.xpose.msra.mxu0 0.0
      %2366 = vmatprep.subr.mxu0 0.0
      %2367 = vmatpush1.xpose.msra.mxu0 0.0
      %2368 = vmatprep.subr.mxu0 0.0
      %2369 = vmatpush1.xpose.msra.mxu0 0.0
      %2370 = vmatprep.subr.mxu0 0.0
      %2371 = vmatpush1.xpose.msra.mxu0 0.0
      %2372 = vmatprep.subr.mxu0 0.0
      %2373 = vmatpush1.xpose.msra.mxu0 0.0
      %2374 = vmatprep.subr.mxu0 0.0
      %2375 = vmatpush1.xpose.msra.mxu0 0.0
      %2376 = vmatprep.subr.mxu0 0.0
      %2377 = vmatpush1.xpose.msra.mxu0 0.0
      %2378 = vmatprep.subr.mxu0 0.0
      %2379 = vmatpush1.xpose.msra.mxu0 0.0
      %2380 = vmatprep.subr.mxu0 0.0
      %2381 = vmatpush1.xpose.msra.mxu0 0.0
      %2382 = vmatprep.subr.mxu0 0.0
      %2383 = vmatpush1.xpose.msra.mxu0 0.0
      %2384 = vmatprep.subr.mxu0 0.0
      %2385 = vmatpush1.xpose.msra.mxu0 0.0
      %2386 = vmatprep.subr.mxu0 0.0
      %2387 = vmatpush1.xpose.msra.mxu0 0.0
      %2388 = vmatprep.subr.mxu0 0.0
      %2389 = vmatpush1.xpose.msra.mxu0 0.0
      %2390 = vmatprep.subr.mxu0 0.0
      %2391 = vmatpush1.xpose.msra.mxu0 0.0
      %2392 = vmatprep.subr.mxu0 0.0
      %2393 = vmatpush1.xpose.msra.mxu0 0.0
      %2394 = vmatprep.subr.mxu0 0.0
      %2395 = vmatpush1.xpose.msra.mxu0 0.0
      %2396 = vmatprep.subr.mxu0 0.0
      %2397 = vmatpush1.xpose.msra.mxu0 0.0
      %2398 = vmatprep.subr.mxu0 0.0
      %2399 = vmatpush1.xpose.msra.mxu0 0.0
      %2400 = vmatprep.subr.mxu0 0.0
      %2401 = vmatpush1.xpose.msra.mxu0 0.0
      %2402 = vmatprep.subr.mxu0 0.0
      %2403 = vmatpush1.xpose.msra.mxu0 0.0
      %2404 = vmatprep.subr.mxu0 0.0
      %2405 = vmatpush1.xpose.msra.mxu0 0.0
      %2406 = vmatprep.subr.mxu0 0.0
      %2407 = vmatpush1.xpose.msra.mxu0 0.0
      %2408 = vmatprep.mubr.f32.mxu0 0.0
      %2409 = vmatmul.mubr.f32.gmra.mrb[0].mxu0 %v1876
      %v2410 = vpop.f32.mrb[0].mxu0
      %v2411 = vadd.f32 0.0, %v2410
      %v2412 = vpop.f32.mrb[0].mxu0
      %2413 = vmatprep.mubr.f32.mxu0 0.0
      %2414 = vmatmul.mubr.f32.gmra.mrb[0].mxu0 %v1882
      %v2415 = vpop.f32.mrb[0].mxu0
      %v2416 = vadd.f32 0.0, %v2415
      %v2417 = vpop.f32.mrb[0].mxu0
      %2418 = vdwg.mxu0
      %v2419 = vmul.f32 %v2411, 0.088388346
      %v2420 = vmul.f32 %v2416, 0.088388346
      %v2421 = vsel %vm2116, %v2419, -inf
      %2422 = vmax.xlane.f32.xlu0 %v2421
      %v2423 = vpop.xlane.xlu0 %2422
      %v2424 = vsel %vm2116, %v2420, -inf
      %2425 = vmax.xlane.f32.xlu0 %v2424
      %v2426 = vpop.xlane.xlu0 %2425
      %v2427 = vsub.f32 %v2419, %v2423
      %v2428 = vsub.f32 %v2420, %v2426
      %v2429 = vmul.f32 %v2427, 1.442695
      %v2430 = vpow.pop %v2429
      %v2431 = vmul.f32 %v2428, 1.442695
      %v2432 = vpow.pop %v2431
      %v2433 = vsel %vm2116, %v2430, 0.0
      %2434 = vadd.xlane.f32.xlu0 %v2433
      %v2435 = vpop.xlane.xlu0 %2434
      %v2436 = vsel %vm2116, %v2432, 0.0
      %2437 = vadd.xlane.f32.xlu0 %v2436
      %v2438 = vpop.xlane.xlu0 %2437
      %v2439 = vrcp.pop %v2435
      %v2440 = vrcp.pop %v2438
      %v2441 = vmul.f32 %v2430, %v2439
      %v2442 = vmul.f32 %v2432, %v2440
      %v2444 = vsel %vm2116, %v2441, 0
      %v2447 = vsel %vm2116, %v2442, 0
      %2449 = vmatprep.subr.mxu0 0.0
      %2450 = vmatpush1.msra.mxu0 %v2030
      %2451 = vmatprep.subr.mxu0 0.0
      %2452 = vmatpush1.msra.mxu0 %v2036
      %2453 = vmatprep.subr.mxu0 0.0
      %2454 = vmatpush1.msra.mxu0 0.0
      %2455 = vmatprep.subr.mxu0 0.0
      %2456 = vmatpush1.msra.mxu0 0.0
      %2457 = vmatprep.subr.mxu0 0.0
      %2458 = vmatpush1.msra.mxu0 0.0
      %2459 = vmatprep.subr.mxu0 0.0
      %2460 = vmatpush1.msra.mxu0 0.0
      %2461 = vmatprep.subr.mxu0 0.0
      %2462 = vmatpush1.msra.mxu0 0.0
      %2463 = vmatprep.subr.mxu0 0.0
      %2464 = vmatpush1.msra.mxu0 0.0
      %2465 = vmatprep.subr.mxu0 0.0
      %2466 = vmatpush1.msra.mxu0 0.0
      %2467 = vmatprep.subr.mxu0 0.0
      %2468 = vmatpush1.msra.mxu0 0.0
      %2469 = vmatprep.subr.mxu0 0.0
      %2470 = vmatpush1.msra.mxu0 0.0
      %2471 = vmatprep.subr.mxu0 0.0
      %2472 = vmatpush1.msra.mxu0 0.0
      %2473 = vmatprep.subr.mxu0 0.0
      %2474 = vmatpush1.msra.mxu0 0.0
      %2475 = vmatprep.subr.mxu0 0.0
      %2476 = vmatpush1.msra.mxu0 0.0
      %2477 = vmatprep.subr.mxu0 0.0
      %2478 = vmatpush1.msra.mxu0 0.0
      %2479 = vmatprep.subr.mxu0 0.0
      %2480 = vmatpush1.msra.mxu0 0.0
      %2481 = vmatprep.subr.mxu0 0.0
      %2482 = vmatpush1.msra.mxu0 0.0
      %2483 = vmatprep.subr.mxu0 0.0
      %2484 = vmatpush1.msra.mxu0 0.0
      %2485 = vmatprep.subr.mxu0 0.0
      %2486 = vmatpush1.msra.mxu0 0.0
      %2487 = vmatprep.subr.mxu0 0.0
      %2488 = vmatpush1.msra.mxu0 0.0
      %2489 = vmatprep.subr.mxu0 0.0
      %2490 = vmatpush1.msra.mxu0 0.0
      %2491 = vmatprep.subr.mxu0 0.0
      %2492 = vmatpush1.msra.mxu0 0.0
      %2493 = vmatprep.subr.mxu0 0.0
      %2494 = vmatpush1.msra.mxu0 0.0
      %2495 = vmatprep.subr.mxu0 0.0
      %2496 = vmatpush1.msra.mxu0 0.0
      %2497 = vmatprep.subr.mxu0 0.0
      %2498 = vmatpush1.msra.mxu0 0.0
      %2499 = vmatprep.subr.mxu0 0.0
      %2500 = vmatpush1.msra.mxu0 0.0
      %2501 = vmatprep.subr.mxu0 0.0
      %2502 = vmatpush1.msra.mxu0 0.0
      %2503 = vmatprep.subr.mxu0 0.0
      %2504 = vmatpush1.msra.mxu0 0.0
      %2505 = vmatprep.subr.mxu0 0.0
      %2506 = vmatpush1.msra.mxu0 0.0
      %2507 = vmatprep.subr.mxu0 0.0
      %2508 = vmatpush1.msra.mxu0 0.0
      %2509 = vmatprep.subr.mxu0 0.0
      %2510 = vmatpush1.msra.mxu0 0.0
      %2511 = vmatprep.subr.mxu0 0.0
      %2512 = vmatpush1.msra.mxu0 0.0
      %2513 = vmatprep.mubr.f32.mxu0 0.0
      %2514 = vmatmul.mubr.f32.gmra.mrb[0].mxu0 %v2444
      %v2515 = vpop.f32.mrb[0].mxu0
      %v2516 = vadd.f32 0.0, %v2515
      %v2517 = vpop.f32.mrb[0].mxu0
      %2518 = vmatprep.mubr.f32.mxu0 0.0
      %2519 = vmatmul.mubr.f32.gmra.mrb[0].mxu0 %v2447
      %v2520 = vpop.f32.mrb[0].mxu0
      %v2521 = vadd.f32 0.0, %v2520
      %v2522 = vpop.f32.mrb[0].mxu0
      %2523 = vdwg.mxu0
      %v2524 = vld [vmem:[%s7 + $0x100] sm:$0xff]
      %v2525 = vld [vmem:[%s7 + $0x108] sm:$0xff]
      %v2526 = vld [vmem:[%s7 + $0x110] sm:$0xff]
      %v2527 = vld [vmem:[%s7 + $0x118] sm:$0xff]
      %v2528 = vld [vmem:[%s7 + $0x120] sm:$0xff]
      %v2529 = vld [vmem:[%s7 + $0x128] sm:$0xff]
      %v2530 = vld [vmem:[%s7 + $0x130] sm:$0xff]
      %v2531 = vld [vmem:[%s7 + $0x138] sm:$0xff]
      %v2532 = vld [vmem:[%s7 + $0x140] sm:$0xff]
      %v2533 = vld [vmem:[%s7 + $0x148] sm:$0xff]
      %v2534 = vld [vmem:[%s7 + $0x150] sm:$0xff]
      %v2535 = vld [vmem:[%s7 + $0x158] sm:$0xff]
      %v2536 = vld [vmem:[%s7 + $0x160] sm:$0xff]
      %v2537 = vld [vmem:[%s7 + $0x168] sm:$0xff]
      %v2538 = vld [vmem:[%s7 + $0x170] sm:$0xff]
      %v2539 = vld [vmem:[%s7 + $0x178] sm:$0xff]
      %v2540 = vld [vmem:[%s7 + $0x180] sm:$0xff]
      %v2541 = vld [vmem:[%s7 + $0x188] sm:$0xff]
      %v2542 = vld [vmem:[%s7 + $0x190] sm:$0xff]
      %v2543 = vld [vmem:[%s7 + $0x198] sm:$0xff]
      %v2544 = vld [vmem:[%s7 + $0x1a0] sm:$0xff]
      %v2545 = vld [vmem:[%s7 + $0x1a8] sm:$0xff]
      %v2546 = vld [vmem:[%s7 + $0x1b0] sm:$0xff]
      %v2547 = vld [vmem:[%s7 + $0x1b8] sm:$0xff]
      %v2548 = vld [vmem:[%s7 + $0x1c0] sm:$0xff]
      %v2549 = vld [vmem:[%s7 + $0x1c8] sm:$0xff]
      %v2550 = vld [vmem:[%s7 + $0x1d0] sm:$0xff]
      %v2551 = vld [vmem:[%s7 + $0x1d8] sm:$0xff]
      %v2552 = vld [vmem:[%s7 + $0x1e0] sm:$0xff]
      %v2553 = vld [vmem:[%s7 + $0x1e8] sm:$0xff]
      %v2554 = vld [vmem:[%s7 + $0x1f0] sm:$0xff]
      %v2555 = vld [vmem:[%s7 + $0x1f8] sm:$0xff]
      %2556 = vmatprep.subr.mxu0 %v2525
      %2557 = vmatpush1.msra.mxu0 %v2524
      %2558 = vmatprep.subr.mxu0 %v2527
      %2559 = vmatpush1.msra.mxu0 %v2526
      %2560 = vmatprep.subr.mxu0 %v2529
      %2561 = vmatpush1.msra.mxu0 %v2528
      %2562 = vmatprep.subr.mxu0 %v2531
      %2563 = vmatpush1.msra.mxu0 %v2530
      %2564 = vmatprep.subr.mxu0 %v2533
      %2565 = vmatpush1.msra.mxu0 %v2532
      %2566 = vmatprep.subr.mxu0 %v2535
      %2567 = vmatpush1.msra.mxu0 %v2534
      %2568 = vmatprep.subr.mxu0 %v2537
      %2569 = vmatpush1.msra.mxu0 %v2536
      %2570 = vmatprep.subr.mxu0 %v2539
      %2571 = vmatpush1.msra.mxu0 %v2538
      %2572 = vmatprep.subr.mxu0 %v2541
      %2573 = vmatpush1.msra.mxu0 %v2540
      %2574 = vmatprep.subr.mxu0 %v2543
      %2575 = vmatpush1.msra.mxu0 %v2542
      %2576 = vmatprep.subr.mxu0 %v2545
      %2577 = vmatpush1.msra.mxu0 %v2544
      %2578 = vmatprep.subr.mxu0 %v2547
      %2579 = vmatpush1.msra.mxu0 %v2546
      %2580 = vmatprep.subr.mxu0 %v2549
      %2581 = vmatpush1.msra.mxu0 %v2548
      %2582 = vmatprep.subr.mxu0 %v2551
      %2583 = vmatpush1.msra.mxu0 %v2550
      %2584 = vmatprep.subr.mxu0 %v2553
      %2585 = vmatpush1.msra.mxu0 %v2552
      %2586 = vmatprep.subr.mxu0 %v2555
      %2587 = vmatpush1.msra.mxu0 %v2554
      %2588 = vmatprep.subr.mxu0 0.0
      %2589 = vmatpush1.msra.mxu0 0.0
      %2590 = vmatprep.subr.mxu0 0.0
      %2591 = vmatpush1.msra.mxu0 0.0
      %2592 = vmatprep.subr.mxu0 0.0
      %2593 = vmatpush1.msra.mxu0 0.0
      %2594 = vmatprep.subr.mxu0 0.0
      %2595 = vmatpush1.msra.mxu0 0.0
      %2596 = vmatprep.subr.mxu0 0.0
      %2597 = vmatpush1.msra.mxu0 0.0
      %2598 = vmatprep.subr.mxu0 0.0
      %2599 = vmatpush1.msra.mxu0 0.0
      %2600 = vmatprep.subr.mxu0 0.0
      %2601 = vmatpush1.msra.mxu0 0.0
      %2602 = vmatprep.subr.mxu0 0.0
      %2603 = vmatpush1.msra.mxu0 0.0
      %2604 = vmatprep.subr.mxu0 0.0
      %2605 = vmatpush1.msra.mxu0 0.0
      %2606 = vmatprep.subr.mxu0 0.0
      %2607 = vmatpush1.msra.mxu0 0.0
      %2608 = vmatprep.subr.mxu0 0.0
      %2609 = vmatpush1.msra.mxu0 0.0
      %2610 = vmatprep.subr.mxu0 0.0
      %2611 = vmatpush1.msra.mxu0 0.0
      %2612 = vmatprep.subr.mxu0 0.0
      %2613 = vmatpush1.msra.mxu0 0.0
      %2614 = vmatprep.subr.mxu0 0.0
      %2615 = vmatpush1.msra.mxu0 0.0
      %2616 = vmatprep.subr.mxu0 0.0
      %2617 = vmatpush1.msra.mxu0 0.0
      %2618 = vmatprep.subr.mxu0 0.0
      %2619 = vmatpush1.msra.mxu0 0.0
      %2620 = vmatprep.mubr.f32.mxu0 0.0
      %2621 = vmatmul.mubr.f32.gmra.mrb[0].mxu0 %v2516
      %v2622 = vpop.f32.mrb[0].mxu0
      %v2623 = vadd.f32 0.0, %v2622
      %v2624 = vpop.f32.mrb[0].mxu0
      %v2625 = vadd.f32 0.0, %v2624
      %2626 = vmatprep.mubr.f32.mxu0 0.0
      %2627 = vmatmul.mubr.f32.gmra.mrb[0].mxu0 %v2521
      %v2628 = vpop.f32.mrb[0].mxu0
      %v2629 = vadd.f32 0.0, %v2628
      %v2630 = vpop.f32.mrb[0].mxu0
      %v2631 = vadd.f32 0.0, %v2630
      %2632 = vdwg.mxu0
      %v2633 = vadd.f32 %v2340, %v2623
      %v2634 = vadd.f32 %v2341, %v2625
      %v2635 = vadd.f32 %v2342, %v2629
      %v2636 = vadd.f32 %v2343, %v2631
      %v2637 = vadd.f32 %v1579, %v2633
      %v2638 = vadd.f32 %v1580, %v2634
      %v2639 = vadd.f32 %v1581, %v2635
      %v2640 = vadd.f32 %v1582, %v2636
      %v2641 = vld [vmem:[%s9] sm:$0x3]
      %v2642 = vld [vmem:[%s10] sm:$0x3]
      %v2643 = vadd.f32 %v2637, %v2638
      %2644 = vadd.xlane.f32.xlu0 %v2643
      %v2645 = vpop.xlane.xlu0 %2644
      %v2646 = vadd.f32 %v2639, %v2640
      %2647 = vadd.xlane.f32.xlu0 %v2646
      %v2648 = vpop.xlane.xlu0 %2647
      %v2649 = vmul.f32 %v2645, %v1512
      %v2650 = vmul.f32 %v2648, %v1512
      %v2651 = vsub.f32 %v2637, %v2649
      %v2652 = vsub.f32 %v2638, %v2649
      %v2653 = vsub.f32 %v2639, %v2650
      %v2654 = vsub.f32 %v2640, %v2650
      %v2655 = vmul.f32 %v2651, %v2651
      %v2656 = vmul.f32 %v2652, %v2652
      %v2657 = vmul.f32 %v2653, %v2653
      %v2658 = vmul.f32 %v2654, %v2654
      %v2659 = vadd.f32 %v2655, %v2656
      %2660 = vadd.xlane.f32.xlu0 %v2659
      %v2661 = vpop.xlane.xlu0 %2660
      %v2662 = vadd.f32 %v2657, %v2658
      %2663 = vadd.xlane.f32.xlu0 %v2662
      %v2664 = vpop.xlane.xlu0 %2663
      %v2665 = vmul.f32 %v2661, 0.003921569
      %v2666 = vmul.f32 %v2664, 0.003921569
      %v2667 = vrsqrt.pop %v2665
      %v2668 = vmul.f32 %v2665, %v2667
      %vm2669 = vcmp.eq.f32.partialorder %v2665, inf
      %v2670 = vsel %vm2669, %v2665, %v2668
      %vm2671 = vcmp.eq.f32.partialorder %v2665, 0.0
      %v2672 = vand.u32 %v2665, 2147483648
      %v2673 = vsel %vm2671, %v2672, %v2670
      %v2674 = vrsqrt.pop %v2666
      %v2675 = vmul.f32 %v2666, %v2674
      %vm2676 = vcmp.eq.f32.partialorder %v2666, inf
      %v2677 = vsel %vm2676, %v2666, %v2675
      %vm2678 = vcmp.eq.f32.partialorder %v2666, 0.0
      %v2679 = vand.u32 %v2666, 2147483648
      %v2680 = vsel %vm2678, %v2679, %v2677
      %v2681 = vadd.f32 %v2673, 1e-09
      %v2682 = vadd.f32 %v2680, 1e-09
      %v2683 = vrcp.pop %v2681
      %v2684 = vrcp.pop %v2682
      %v2686 = vlaneseq
      %v2687 = vshrl.u32 %v2686, 7
      %v2688 = vsub.s32 0, %v2687
      %v2689 = vrot.slane %v2641, %v2688
      %v2690 = vlaneseq
      %v2691 = vshrl.u32 %v2690, 7
      %v2692 = vsub.s32 1, %v2691
      %v2693 = vrot.slane %v2641, %v2692
      %v2696 = vmul.f32 %v2689, %v2651
      %v2697 = vmul.f32 %v2693, %v2652
      %v2698 = vmul.f32 %v2689, %v2653
      %v2699 = vmul.f32 %v2693, %v2654
      %v2700 = vmul.f32 %v2696, %v2683
      %v2701 = vmul.f32 %v2697, %v2683
      %v2702 = vmul.f32 %v2698, %v2684
      %v2703 = vmul.f32 %v2699, %v2684
      %v2705 = vlaneseq
      %v2706 = vshrl.u32 %v2705, 7
      %v2707 = vsub.s32 0, %v2706
      %v2708 = vrot.slane %v2642, %v2707
      %v2709 = vlaneseq
      %v2710 = vshrl.u32 %v2709, 7
      %v2711 = vsub.s32 1, %v2710
      %v2712 = vrot.slane %v2642, %v2711
      %v2715 = vadd.f32 %v2700, %v2708
      %v2716 = vadd.f32 %v2701, %v2712
      %v2717 = vadd.f32 %v2702, %v2708
      %v2718 = vadd.f32 %v2703, %v2712
      %v2719 = vld [vmem:[%s11] sm:$0xff]
      %v2720 = vld [vmem:[%s11 + $0x8] sm:$0xff]
      %v2721 = vld [vmem:[%s11 + $0x10] sm:$0xff]
      %v2722 = vld [vmem:[%s11 + $0x18] sm:$0xff]
      %v2723 = vld [vmem:[%s11 + $0x20] sm:$0xff]
      %v2724 = vld [vmem:[%s11 + $0x28] sm:$0xff]
      %v2725 = vld [vmem:[%s11 + $0x30] sm:$0xff]
      %v2726 = vld [vmem:[%s11 + $0x38] sm:$0xff]
      %v2727 = vld [vmem:[%s11 + $0x40] sm:$0xff]
      %v2728 = vld [vmem:[%s11 + $0x48] sm:$0xff]
      %v2729 = vld [vmem:[%s11 + $0x50] sm:$0xff]
      %v2730 = vld [vmem:[%s11 + $0x58] sm:$0xff]
      %v2731 = vld [vmem:[%s11 + $0x60] sm:$0xff]
      %v2732 = vld [vmem:[%s11 + $0x68] sm:$0xff]
      %v2733 = vld [vmem:[%s11 + $0x70] sm:$0xff]
      %v2734 = vld [vmem:[%s11 + $0x78] sm:$0xff]
      %v2735 = vld [vmem:[%s11 + $0x80] sm:$0xff]
      %v2736 = vld [vmem:[%s11 + $0x88] sm:$0xff]
      %v2737 = vld [vmem:[%s11 + $0x90] sm:$0xff]
      %v2738 = vld [vmem:[%s11 + $0x98] sm:$0xff]
      %v2739 = vld [vmem:[%s11 + $0xa0] sm:$0xff]
      %v2740 = vld [vmem:[%s11 + $0xa8] sm:$0xff]
      %v2741 = vld [vmem:[%s11 + $0xb0] sm:$0xff]
      %v2742 = vld [vmem:[%s11 + $0xb8] sm:$0xff]
      %v2743 = vld [vmem:[%s11 + $0xc0] sm:$0xff]
      %v2744 = vld [vmem:[%s11 + $0xc8] sm:$0xff]
      %v2745 = vld [vmem:[%s11 + $0xd0] sm:$0xff]
      %v2746 = vld [vmem:[%s11 + $0xd8] sm:$0xff]
      %v2747 = vld [vmem:[%s11 + $0xe0] sm:$0xff]
      %v2748 = vld [vmem:[%s11 + $0xe8] sm:$0xff]
      %v2749 = vld [vmem:[%s11 + $0xf0] sm:$0xff]
      %v2750 = vld [vmem:[%s11 + $0xf8] sm:$0xff]
      %v2751 = vld [vmem:[%s11 + $0x100] sm:$0xff]
      %v2752 = vld [vmem:[%s11 + $0x108] sm:$0xff]
      %v2753 = vld [vmem:[%s11 + $0x110] sm:$0xff]
      %v2754 = vld [vmem:[%s11 + $0x118] sm:$0xff]
      %v2755 = vld [vmem:[%s11 + $0x120] sm:$0xff]
      %v2756 = vld [vmem:[%s11 + $0x128] sm:$0xff]
      %v2757 = vld [vmem:[%s11 + $0x130] sm:$0xff]
      %v2758 = vld [vmem:[%s11 + $0x138] sm:$0xff]
      %v2759 = vld [vmem:[%s11 + $0x140] sm:$0xff]
      %v2760 = vld [vmem:[%s11 + $0x148] sm:$0xff]
      %v2761 = vld [vmem:[%s11 + $0x150] sm:$0xff]
      %v2762 = vld [vmem:[%s11 + $0x158] sm:$0xff]
      %v2763 = vld [vmem:[%s11 + $0x160] sm:$0xff]
      %v2764 = vld [vmem:[%s11 + $0x168] sm:$0xff]
      %v2765 = vld [vmem:[%s11 + $0x170] sm:$0xff]
      %v2766 = vld [vmem:[%s11 + $0x178] sm:$0xff]
      %v2767 = vld [vmem:[%s11 + $0x180] sm:$0xff]
      %v2768 = vld [vmem:[%s11 + $0x188] sm:$0xff]
      %v2769 = vld [vmem:[%s11 + $0x190] sm:$0xff]
      %v2770 = vld [vmem:[%s11 + $0x198] sm:$0xff]
      %v2771 = vld [vmem:[%s11 + $0x1a0] sm:$0xff]
      %v2772 = vld [vmem:[%s11 + $0x1a8] sm:$0xff]
      %v2773 = vld [vmem:[%s11 + $0x1b0] sm:$0xff]
      %v2774 = vld [vmem:[%s11 + $0x1b8] sm:$0xff]
      %v2775 = vld [vmem:[%s11 + $0x1c0] sm:$0xff]
      %v2776 = vld [vmem:[%s11 + $0x1c8] sm:$0xff]
      %v2777 = vld [vmem:[%s11 + $0x1d0] sm:$0xff]
      %v2778 = vld [vmem:[%s11 + $0x1d8] sm:$0xff]
      %v2779 = vld [vmem:[%s11 + $0x1e0] sm:$0xff]
      %v2780 = vld [vmem:[%s11 + $0x1e8] sm:$0xff]
      %v2781 = vld [vmem:[%s11 + $0x1f0] sm:$0xff]
      %v2782 = vld [vmem:[%s11 + $0x1f8] sm:$0xff]
      %v2783 = vld [vmem:[%s11 + $0x200] sm:$0xff]
      %v2784 = vld [vmem:[%s11 + $0x208] sm:$0xff]
      %v2785 = vld [vmem:[%s11 + $0x210] sm:$0xff]
      %v2786 = vld [vmem:[%s11 + $0x218] sm:$0xff]
      %v2787 = vld [vmem:[%s11 + $0x220] sm:$0xff]
      %v2788 = vld [vmem:[%s11 + $0x228] sm:$0xff]
      %v2789 = vld [vmem:[%s11 + $0x230] sm:$0xff]
      %v2790 = vld [vmem:[%s11 + $0x238] sm:$0xff]
      %v2791 = vld [vmem:[%s11 + $0x240] sm:$0xff]
      %v2792 = vld [vmem:[%s11 + $0x248] sm:$0xff]
      %v2793 = vld [vmem:[%s11 + $0x250] sm:$0xff]
      %v2794 = vld [vmem:[%s11 + $0x258] sm:$0xff]
      %v2795 = vld [vmem:[%s11 + $0x260] sm:$0xff]
      %v2796 = vld [vmem:[%s11 + $0x268] sm:$0xff]
      %v2797 = vld [vmem:[%s11 + $0x270] sm:$0xff]
      %v2798 = vld [vmem:[%s11 + $0x278] sm:$0xff]
      %v2799 = vld [vmem:[%s11 + $0x280] sm:$0xff]
      %v2800 = vld [vmem:[%s11 + $0x288] sm:$0xff]
      %v2801 = vld [vmem:[%s11 + $0x290] sm:$0xff]
      %v2802 = vld [vmem:[%s11 + $0x298] sm:$0xff]
      %v2803 = vld [vmem:[%s11 + $0x2a0] sm:$0xff]
      %v2804 = vld [vmem:[%s11 + $0x2a8] sm:$0xff]
      %v2805 = vld [vmem:[%s11 + $0x2b0] sm:$0xff]
      %v2806 = vld [vmem:[%s11 + $0x2b8] sm:$0xff]
      %v2807 = vld [vmem:[%s11 + $0x2c0] sm:$0xff]
      %v2808 = vld [vmem:[%s11 + $0x2c8] sm:$0xff]
      %v2809 = vld [vmem:[%s11 + $0x2d0] sm:$0xff]
      %v2810 = vld [vmem:[%s11 + $0x2d8] sm:$0xff]
      %v2811 = vld [vmem:[%s11 + $0x2e0] sm:$0xff]
      %v2812 = vld [vmem:[%s11 + $0x2e8] sm:$0xff]
      %v2813 = vld [vmem:[%s11 + $0x2f0] sm:$0xff]
      %v2814 = vld [vmem:[%s11 + $0x2f8] sm:$0xff]
      %v2815 = vld [vmem:[%s11 + $0x300] sm:$0xff]
      %v2816 = vld [vmem:[%s11 + $0x308] sm:$0xff]
      %v2817 = vld [vmem:[%s11 + $0x310] sm:$0xff]
      %v2818 = vld [vmem:[%s11 + $0x318] sm:$0xff]
      %v2819 = vld [vmem:[%s11 + $0x320] sm:$0xff]
      %v2820 = vld [vmem:[%s11 + $0x328] sm:$0xff]
      %v2821 = vld [vmem:[%s11 + $0x330] sm:$0xff]
      %v2822 = vld [vmem:[%s11 + $0x338] sm:$0xff]
      %v2823 = vld [vmem:[%s11 + $0x340] sm:$0xff]
      %v2824 = vld [vmem:[%s11 + $0x348] sm:$0xff]
      %v2825 = vld [vmem:[%s11 + $0x350] sm:$0xff]
      %v2826 = vld [vmem:[%s11 + $0x358] sm:$0xff]
      %v2827 = vld [vmem:[%s11 + $0x360] sm:$0xff]
      %v2828 = vld [vmem:[%s11 + $0x368] sm:$0xff]
      %v2829 = vld [vmem:[%s11 + $0x370] sm:$0xff]
      %v2830 = vld [vmem:[%s11 + $0x378] sm:$0xff]
      %v2831 = vld [vmem:[%s11 + $0x380] sm:$0xff]
      %v2832 = vld [vmem:[%s11 + $0x388] sm:$0xff]
      %v2833 = vld [vmem:[%s11 + $0x390] sm:$0xff]
      %v2834 = vld [vmem:[%s11 + $0x398] sm:$0xff]
      %v2835 = vld [vmem:[%s11 + $0x3a0] sm:$0xff]
      %v2836 = vld [vmem:[%s11 + $0x3a8] sm:$0xff]
      %v2837 = vld [vmem:[%s11 + $0x3b0] sm:$0xff]
      %v2838 = vld [vmem:[%s11 + $0x3b8] sm:$0xff]
      %v2839 = vld [vmem:[%s11 + $0x3c0] sm:$0xff]
      %v2840 = vld [vmem:[%s11 + $0x3c8] sm:$0xff]
      %v2841 = vld [vmem:[%s11 + $0x3d0] sm:$0xff]
      %v2842 = vld [vmem:[%s11 + $0x3d8] sm:$0xff]
      %v2843 = vld [vmem:[%s11 + $0x3e0] sm:$0xff]
      %v2844 = vld [vmem:[%s11 + $0x3e8] sm:$0xff]
      %v2845 = vld [vmem:[%s11 + $0x3f0] sm:$0xff]
      %v2846 = vld [vmem:[%s11 + $0x3f8] sm:$0xff]
      %v2847 = vld [vmem:[%s11 + $0x400] sm:$0xff]
      %v2848 = vld [vmem:[%s11 + $0x408] sm:$0xff]
      %v2849 = vld [vmem:[%s11 + $0x410] sm:$0xff]
      %v2850 = vld [vmem:[%s11 + $0x418] sm:$0xff]
      %v2851 = vld [vmem:[%s11 + $0x420] sm:$0xff]
      %v2852 = vld [vmem:[%s11 + $0x428] sm:$0xff]
      %v2853 = vld [vmem:[%s11 + $0x430] sm:$0xff]
      %v2854 = vld [vmem:[%s11 + $0x438] sm:$0xff]
      %v2855 = vld [vmem:[%s11 + $0x440] sm:$0xff]
      %v2856 = vld [vmem:[%s11 + $0x448] sm:$0xff]
      %v2857 = vld [vmem:[%s11 + $0x450] sm:$0xff]
      %v2858 = vld [vmem:[%s11 + $0x458] sm:$0xff]
      %v2859 = vld [vmem:[%s11 + $0x460] sm:$0xff]
      %v2860 = vld [vmem:[%s11 + $0x468] sm:$0xff]
      %v2861 = vld [vmem:[%s11 + $0x470] sm:$0xff]
      %v2862 = vld [vmem:[%s11 + $0x478] sm:$0xff]
      %v2863 = vld [vmem:[%s11 + $0x480] sm:$0xff]
      %v2864 = vld [vmem:[%s11 + $0x488] sm:$0xff]
      %v2865 = vld [vmem:[%s11 + $0x490] sm:$0xff]
      %v2866 = vld [vmem:[%s11 + $0x498] sm:$0xff]
      %v2867 = vld [vmem:[%s11 + $0x4a0] sm:$0xff]
      %v2868 = vld [vmem:[%s11 + $0x4a8] sm:$0xff]
      %v2869 = vld [vmem:[%s11 + $0x4b0] sm:$0xff]
      %v2870 = vld [vmem:[%s11 + $0x4b8] sm:$0xff]
      %v2871 = vld [vmem:[%s11 + $0x4c0] sm:$0xff]
      %v2872 = vld [vmem:[%s11 + $0x4c8] sm:$0xff]
      %v2873 = vld [vmem:[%s11 + $0x4d0] sm:$0xff]
      %v2874 = vld [vmem:[%s11 + $0x4d8] sm:$0xff]
      %v2875 = vld [vmem:[%s11 + $0x4e0] sm:$0xff]
      %v2876 = vld [vmem:[%s11 + $0x4e8] sm:$0xff]
      %v2877 = vld [vmem:[%s11 + $0x4f0] sm:$0xff]
      %v2878 = vld [vmem:[%s11 + $0x4f8] sm:$0xff]
      %v2879 = vld [vmem:[%s11 + $0x500] sm:$0xff]
      %v2880 = vld [vmem:[%s11 + $0x508] sm:$0xff]
      %v2881 = vld [vmem:[%s11 + $0x510] sm:$0xff]
      %v2882 = vld [vmem:[%s11 + $0x518] sm:$0xff]
      %v2883 = vld [vmem:[%s11 + $0x520] sm:$0xff]
      %v2884 = vld [vmem:[%s11 + $0x528] sm:$0xff]
      %v2885 = vld [vmem:[%s11 + $0x530] sm:$0xff]
      %v2886 = vld [vmem:[%s11 + $0x538] sm:$0xff]
      %v2887 = vld [vmem:[%s11 + $0x540] sm:$0xff]
      %v2888 = vld [vmem:[%s11 + $0x548] sm:$0xff]
      %v2889 = vld [vmem:[%s11 + $0x550] sm:$0xff]
      %v2890 = vld [vmem:[%s11 + $0x558] sm:$0xff]
      %v2891 = vld [vmem:[%s11 + $0x560] sm:$0xff]
      %v2892 = vld [vmem:[%s11 + $0x568] sm:$0xff]
      %v2893 = vld [vmem:[%s11 + $0x570] sm:$0xff]
      %v2894 = vld [vmem:[%s11 + $0x578] sm:$0xff]
      %v2895 = vld [vmem:[%s11 + $0x580] sm:$0xff]
      %v2896 = vld [vmem:[%s11 + $0x588] sm:$0xff]
      %v2897 = vld [vmem:[%s11 + $0x590] sm:$0xff]
      %v2898 = vld [vmem:[%s11 + $0x598] sm:$0xff]
      %v2899 = vld [vmem:[%s11 + $0x5a0] sm:$0xff]
      %v2900 = vld [vmem:[%s11 + $0x5a8] sm:$0xff]
      %v2901 = vld [vmem:[%s11 + $0x5b0] sm:$0xff]
      %v2902 = vld [vmem:[%s11 + $0x5b8] sm:$0xff]
      %v2903 = vld [vmem:[%s11 + $0x5c0] sm:$0xff]
      %v2904 = vld [vmem:[%s11 + $0x5c8] sm:$0xff]
      %v2905 = vld [vmem:[%s11 + $0x5d0] sm:$0xff]
      %v2906 = vld [vmem:[%s11 + $0x5d8] sm:$0xff]
      %v2907 = vld [vmem:[%s11 + $0x5e0] sm:$0xff]
      %v2908 = vld [vmem:[%s11 + $0x5e8] sm:$0xff]
      %v2909 = vld [vmem:[%s11 + $0x5f0] sm:$0xff]
      %v2910 = vld [vmem:[%s11 + $0x5f8] sm:$0xff]
      %v2911 = vld [vmem:[%s11 + $0x600] sm:$0xff]
      %v2912 = vld [vmem:[%s11 + $0x608] sm:$0xff]
      %v2913 = vld [vmem:[%s11 + $0x610] sm:$0xff]
      %v2914 = vld [vmem:[%s11 + $0x618] sm:$0xff]
      %v2915 = vld [vmem:[%s11 + $0x620] sm:$0xff]
      %v2916 = vld [vmem:[%s11 + $0x628] sm:$0xff]
      %v2917 = vld [vmem:[%s11 + $0x630] sm:$0xff]
      %v2918 = vld [vmem:[%s11 + $0x638] sm:$0xff]
      %v2919 = vld [vmem:[%s11 + $0x640] sm:$0xff]
      %v2920 = vld [vmem:[%s11 + $0x648] sm:$0xff]
      %v2921 = vld [vmem:[%s11 + $0x650] sm:$0xff]
      %v2922 = vld [vmem:[%s11 + $0x658] sm:$0xff]
      %v2923 = vld [vmem:[%s11 + $0x660] sm:$0xff]
      %v2924 = vld [vmem:[%s11 + $0x668] sm:$0xff]
      %v2925 = vld [vmem:[%s11 + $0x670] sm:$0xff]
      %v2926 = vld [vmem:[%s11 + $0x678] sm:$0xff]
      %v2927 = vld [vmem:[%s11 + $0x680] sm:$0xff]
      %v2928 = vld [vmem:[%s11 + $0x688] sm:$0xff]
      %v2929 = vld [vmem:[%s11 + $0x690] sm:$0xff]
      %v2930 = vld [vmem:[%s11 + $0x698] sm:$0xff]
      %v2931 = vld [vmem:[%s11 + $0x6a0] sm:$0xff]
      %v2932 = vld [vmem:[%s11 + $0x6a8] sm:$0xff]
      %v2933 = vld [vmem:[%s11 + $0x6b0] sm:$0xff]
      %v2934 = vld [vmem:[%s11 + $0x6b8] sm:$0xff]
      %v2935 = vld [vmem:[%s11 + $0x6c0] sm:$0xff]
      %v2936 = vld [vmem:[%s11 + $0x6c8] sm:$0xff]
      %v2937 = vld [vmem:[%s11 + $0x6d0] sm:$0xff]
      %v2938 = vld [vmem:[%s11 + $0x6d8] sm:$0xff]
      %v2939 = vld [vmem:[%s11 + $0x6e0] sm:$0xff]
      %v2940 = vld [vmem:[%s11 + $0x6e8] sm:$0xff]
      %v2941 = vld [vmem:[%s11 + $0x6f0] sm:$0xff]
      %v2942 = vld [vmem:[%s11 + $0x6f8] sm:$0xff]
      %v2943 = vld [vmem:[%s11 + $0x700] sm:$0xff]
      %v2944 = vld [vmem:[%s11 + $0x708] sm:$0xff]
      %v2945 = vld [vmem:[%s11 + $0x710] sm:$0xff]
      %v2946 = vld [vmem:[%s11 + $0x718] sm:$0xff]
      %v2947 = vld [vmem:[%s11 + $0x720] sm:$0xff]
      %v2948 = vld [vmem:[%s11 + $0x728] sm:$0xff]
      %v2949 = vld [vmem:[%s11 + $0x730] sm:$0xff]
      %v2950 = vld [vmem:[%s11 + $0x738] sm:$0xff]
      %v2951 = vld [vmem:[%s11 + $0x740] sm:$0xff]
      %v2952 = vld [vmem:[%s11 + $0x748] sm:$0xff]
      %v2953 = vld [vmem:[%s11 + $0x750] sm:$0xff]
      %v2954 = vld [vmem:[%s11 + $0x758] sm:$0xff]
      %v2955 = vld [vmem:[%s11 + $0x760] sm:$0xff]
      %v2956 = vld [vmem:[%s11 + $0x768] sm:$0xff]
      %v2957 = vld [vmem:[%s11 + $0x770] sm:$0xff]
      %v2958 = vld [vmem:[%s11 + $0x778] sm:$0xff]
      %v2959 = vld [vmem:[%s11 + $0x780] sm:$0xff]
      %v2960 = vld [vmem:[%s11 + $0x788] sm:$0xff]
      %v2961 = vld [vmem:[%s11 + $0x790] sm:$0xff]
      %v2962 = vld [vmem:[%s11 + $0x798] sm:$0xff]
      %v2963 = vld [vmem:[%s11 + $0x7a0] sm:$0xff]
      %v2964 = vld [vmem:[%s11 + $0x7a8] sm:$0xff]
      %v2965 = vld [vmem:[%s11 + $0x7b0] sm:$0xff]
      %v2966 = vld [vmem:[%s11 + $0x7b8] sm:$0xff]
      %v2967 = vld [vmem:[%s11 + $0x7c0] sm:$0xff]
      %v2968 = vld [vmem:[%s11 + $0x7c8] sm:$0xff]
      %v2969 = vld [vmem:[%s11 + $0x7d0] sm:$0xff]
      %v2970 = vld [vmem:[%s11 + $0x7d8] sm:$0xff]
      %v2971 = vld [vmem:[%s11 + $0x7e0] sm:$0xff]
      %v2972 = vld [vmem:[%s11 + $0x7e8] sm:$0xff]
      %v2973 = vld [vmem:[%s11 + $0x7f0] sm:$0xff]
      %v2974 = vld [vmem:[%s11 + $0x7f8] sm:$0xff]
      %v2975 = vld [vmem:[%s12] sm:$0xff]
      %v2977 = vlaneseq
      %v2978 = vshrl.u32 %v2977, 7
      %v2979 = vsub.s32 0, %v2978
      %v2980 = vrot.slane %v2975, %v2979
      %v2981 = vlaneseq
      %v2982 = vshrl.u32 %v2981, 7
      %v2983 = vsub.s32 1, %v2982
      %v2984 = vrot.slane %v2975, %v2983
      %v2985 = vlaneseq
      %v2986 = vshrl.u32 %v2985, 7
      %v2987 = vsub.s32 2, %v2986
      %v2988 = vrot.slane %v2975, %v2987
      %v2989 = vlaneseq
      %v2990 = vshrl.u32 %v2989, 7
      %v2991 = vsub.s32 3, %v2990
      %v2992 = vrot.slane %v2975, %v2991
      %v2993 = vlaneseq
      %v2994 = vshrl.u32 %v2993, 7
      %v2995 = vsub.s32 4, %v2994
      %v2996 = vrot.slane %v2975, %v2995
      %v2997 = vlaneseq
      %v2998 = vshrl.u32 %v2997, 7
      %v2999 = vsub.s32 5, %v2998
      %v3000 = vrot.slane %v2975, %v2999
      %v3001 = vlaneseq
      %v3002 = vshrl.u32 %v3001, 7
      %v3003 = vsub.s32 6, %v3002
      %v3004 = vrot.slane %v2975, %v3003
      %v3005 = vlaneseq
      %v3006 = vshrl.u32 %v3005, 7
      %v3007 = vsub.s32 7, %v3006
      %v3008 = vrot.slane %v2975, %v3007
      %3017 = vmatprep.subr.mxu0 %v2720
      %3018 = vmatpush1.msra.mxu0 %v2719
      %3019 = vmatprep.subr.mxu0 %v2728
      %3020 = vmatpush1.msra.mxu0 %v2727
      %3021 = vmatprep.subr.mxu0 %v2736
      %3022 = vmatpush1.msra.mxu0 %v2735
      %3023 = vmatprep.subr.mxu0 %v2744
      %3024 = vmatpush1.msra.mxu0 %v2743
      %3025 = vmatprep.subr.mxu0 %v2752
      %3026 = vmatpush1.msra.mxu0 %v2751
      %3027 = vmatprep.subr.mxu0 %v2760
      %3028 = vmatpush1.msra.mxu0 %v2759
      %3029 = vmatprep.subr.mxu0 %v2768
      %3030 = vmatpush1.msra.mxu0 %v2767
      %3031 = vmatprep.subr.mxu0 %v2776
      %3032 = vmatpush1.msra.mxu0 %v2775
      %3033 = vmatprep.subr.mxu0 %v2784
      %3034 = vmatpush1.msra.mxu0 %v2783
      %3035 = vmatprep.subr.mxu0 %v2792
      %3036 = vmatpush1.msra.mxu0 %v2791
      %3037 = vmatprep.subr.mxu0 %v2800
      %3038 = vmatpush1.msra.mxu0 %v2799
      %3039 = vmatprep.subr.mxu0 %v2808
      %3040 = vmatpush1.msra.mxu0 %v2807
      %3041 = vmatprep.subr.mxu0 %v2816
      %3042 = vmatpush1.msra.mxu0 %v2815
      %3043 = vmatprep.subr.mxu0 %v2824
      %3044 = vmatpush1.msra.mxu0 %v2823
      %3045 = vmatprep.subr.mxu0 %v2832
      %3046 = vmatpush1.msra.mxu0 %v2831
      %3047 = vmatprep.subr.mxu0 %v2840
      %3048 = vmatpush1.msra.mxu0 %v2839
      %3049 = vmatprep.subr.mxu0 %v2848
      %3050 = vmatpush1.msra.mxu0 %v2847
      %3051 = vmatprep.subr.mxu0 %v2856
      %3052 = vmatpush1.msra.mxu0 %v2855
      %3053 = vmatprep.subr.mxu0 %v2864
      %3054 = vmatpush1.msra.mxu0 %v2863
      %3055 = vmatprep.subr.mxu0 %v2872
      %3056 = vmatpush1.msra.mxu0 %v2871
      %3057 = vmatprep.subr.mxu0 %v2880
      %3058 = vmatpush1.msra.mxu0 %v2879
      %3059 = vmatprep.subr.mxu0 %v2888
      %3060 = vmatpush1.msra.mxu0 %v2887
      %3061 = vmatprep.subr.mxu0 %v2896
      %3062 = vmatpush1.msra.mxu0 %v2895
      %3063 = vmatprep.subr.mxu0 %v2904
      %3064 = vmatpush1.msra.mxu0 %v2903
      %3065 = vmatprep.subr.mxu0 %v2912
      %3066 = vmatpush1.msra.mxu0 %v2911
      %3067 = vmatprep.subr.mxu0 %v2920
      %3068 = vmatpush1.msra.mxu0 %v2919
      %3069 = vmatprep.subr.mxu0 %v2928
      %3070 = vmatpush1.msra.mxu0 %v2927
      %3071 = vmatprep.subr.mxu0 %v2936
      %3072 = vmatpush1.msra.mxu0 %v2935
      %3073 = vmatprep.subr.mxu0 %v2944
      %3074 = vmatpush1.msra.mxu0 %v2943
      %3075 = vmatprep.subr.mxu0 %v2952
      %3076 = vmatpush1.msra.mxu0 %v2951
      %3077 = vmatprep.subr.mxu0 %v2960
      %3078 = vmatpush1.msra.mxu0 %v2959
      %3079 = vmatprep.subr.mxu0 %v2968
      %3080 = vmatpush1.msra.mxu0 %v2967
      %3081 = vmatprep.mubr.f32.mxu0 %v2716
      %3082 = vmatmul.mubr.f32.gmra.mrb[0].mxu0 %v2715
      %v3083 = vpop.f32.mrb[0].mxu0
      %v3084 = vadd.f32 %v2980, %v3083
      %v3085 = vpop.f32.mrb[0].mxu0
      %v3086 = vadd.f32 %v2984, %v3085
      %3087 = vmatprep.mubr.f32.mxu0 %v2718
      %3088 = vmatmul.mubr.f32.gmra.mrb[0].mxu0 %v2717
      %v3089 = vpop.f32.mrb[0].mxu0
      %v3090 = vadd.f32 %v2980, %v3089
      %v3091 = vpop.f32.mrb[0].mxu0
      %v3092 = vadd.f32 %v2984, %v3091
      %3093 = vdwg.mxu0
      %3094 = vmatprep.subr.mxu0 %v2722
      %3095 = vmatpush1.msra.mxu0 %v2721
      %3096 = vmatprep.subr.mxu0 %v2730
      %3097 = vmatpush1.msra.mxu0 %v2729
      %3098 = vmatprep.subr.mxu0 %v2738
      %3099 = vmatpush1.msra.mxu0 %v2737
      %3100 = vmatprep.subr.mxu0 %v2746
      %3101 = vmatpush1.msra.mxu0 %v2745
      %3102 = vmatprep.subr.mxu0 %v2754
      %3103 = vmatpush1.msra.mxu0 %v2753
      %3104 = vmatprep.subr.mxu0 %v2762
      %3105 = vmatpush1.msra.mxu0 %v2761
      %3106 = vmatprep.subr.mxu0 %v2770
      %3107 = vmatpush1.msra.mxu0 %v2769
      %3108 = vmatprep.subr.mxu0 %v2778
      %3109 = vmatpush1.msra.mxu0 %v2777
      %3110 = vmatprep.subr.mxu0 %v2786
      %3111 = vmatpush1.msra.mxu0 %v2785
      %3112 = vmatprep.subr.mxu0 %v2794
      %3113 = vmatpush1.msra.mxu0 %v2793
      %3114 = vmatprep.subr.mxu0 %v2802
      %3115 = vmatpush1.msra.mxu0 %v2801
      %3116 = vmatprep.subr.mxu0 %v2810
      %3117 = vmatpush1.msra.mxu0 %v2809
      %3118 = vmatprep.subr.mxu0 %v2818
      %3119 = vmatpush1.msra.mxu0 %v2817
      %3120 = vmatprep.subr.mxu0 %v2826
      %3121 = vmatpush1.msra.mxu0 %v2825
      %3122 = vmatprep.subr.mxu0 %v2834
      %3123 = vmatpush1.msra.mxu0 %v2833
      %3124 = vmatprep.subr.mxu0 %v2842
      %3125 = vmatpush1.msra.mxu0 %v2841
      %3126 = vmatprep.subr.mxu0 %v2850
      %3127 = vmatpush1.msra.mxu0 %v2849
      %3128 = vmatprep.subr.mxu0 %v2858
      %3129 = vmatpush1.msra.mxu0 %v2857
      %3130 = vmatprep.subr.mxu0 %v2866
      %3131 = vmatpush1.msra.mxu0 %v2865
      %3132 = vmatprep.subr.mxu0 %v2874
      %3133 = vmatpush1.msra.mxu0 %v2873
      %3134 = vmatprep.subr.mxu0 %v2882
      %3135 = vmatpush1.msra.mxu0 %v2881
      %3136 = vmatprep.subr.mxu0 %v2890
      %3137 = vmatpush1.msra.mxu0 %v2889
      %3138 = vmatprep.subr.mxu0 %v2898
      %3139 = vmatpush1.msra.mxu0 %v2897
      %3140 = vmatprep.subr.mxu0 %v2906
      %3141 = vmatpush1.msra.mxu0 %v2905
      %3142 = vmatprep.subr.mxu0 %v2914
      %3143 = vmatpush1.msra.mxu0 %v2913
      %3144 = vmatprep.subr.mxu0 %v2922
      %3145 = vmatpush1.msra.mxu0 %v2921
      %3146 = vmatprep.subr.mxu0 %v2930
      %3147 = vmatpush1.msra.mxu0 %v2929
      %3148 = vmatprep.subr.mxu0 %v2938
      %3149 = vmatpush1.msra.mxu0 %v2937
      %3150 = vmatprep.subr.mxu0 %v2946
      %3151 = vmatpush1.msra.mxu0 %v2945
      %3152 = vmatprep.subr.mxu0 %v2954
      %3153 = vmatpush1.msra.mxu0 %v2953
      %3154 = vmatprep.subr.mxu0 %v2962
      %3155 = vmatpush1.msra.mxu0 %v2961
      %3156 = vmatprep.subr.mxu0 %v2970
      %3157 = vmatpush1.msra.mxu0 %v2969
      %3158 = vmatprep.mubr.f32.mxu0 %v2716
      %3159 = vmatmul.mubr.f32.gmra.mrb[0].mxu0 %v2715
      %v3160 = vpop.f32.mrb[0].mxu0
      %v3161 = vadd.f32 %v2988, %v3160
      %v3162 = vpop.f32.mrb[0].mxu0
      %v3163 = vadd.f32 %v2992, %v3162
      %3164 = vmatprep.mubr.f32.mxu0 %v2718
      %3165 = vmatmul.mubr.f32.gmra.mrb[0].mxu0 %v2717
      %v3166 = vpop.f32.mrb[0].mxu0
      %v3167 = vadd.f32 %v2988, %v3166
      %v3168 = vpop.f32.mrb[0].mxu0
      %v3169 = vadd.f32 %v2992, %v3168
      %3170 = vdwg.mxu0
      %3171 = vmatprep.subr.mxu0 %v2724
      %3172 = vmatpush1.msra.mxu0 %v2723
      %3173 = vmatprep.subr.mxu0 %v2732
      %3174 = vmatpush1.msra.mxu0 %v2731
      %3175 = vmatprep.subr.mxu0 %v2740
      %3176 = vmatpush1.msra.mxu0 %v2739
      %3177 = vmatprep.subr.mxu0 %v2748
      %3178 = vmatpush1.msra.mxu0 %v2747
      %3179 = vmatprep.subr.mxu0 %v2756
      %3180 = vmatpush1.msra.mxu0 %v2755
      %3181 = vmatprep.subr.mxu0 %v2764
      %3182 = vmatpush1.msra.mxu0 %v2763
      %3183 = vmatprep.subr.mxu0 %v2772
      %3184 = vmatpush1.msra.mxu0 %v2771
      %3185 = vmatprep.subr.mxu0 %v2780
      %3186 = vmatpush1.msra.mxu0 %v2779
      %3187 = vmatprep.subr.mxu0 %v2788
      %3188 = vmatpush1.msra.mxu0 %v2787
      %3189 = vmatprep.subr.mxu0 %v2796
      %3190 = vmatpush1.msra.mxu0 %v2795
      %3191 = vmatprep.subr.mxu0 %v2804
      %3192 = vmatpush1.msra.mxu0 %v2803
      %3193 = vmatprep.subr.mxu0 %v2812
      %3194 = vmatpush1.msra.mxu0 %v2811
      %3195 = vmatprep.subr.mxu0 %v2820
      %3196 = vmatpush1.msra.mxu0 %v2819
      %3197 = vmatprep.subr.mxu0 %v2828
      %3198 = vmatpush1.msra.mxu0 %v2827
      %3199 = vmatprep.subr.mxu0 %v2836
      %3200 = vmatpush1.msra.mxu0 %v2835
      %3201 = vmatprep.subr.mxu0 %v2844
      %3202 = vmatpush1.msra.mxu0 %v2843
      %3203 = vmatprep.subr.mxu0 %v2852
      %3204 = vmatpush1.msra.mxu0 %v2851
      %3205 = vmatprep.subr.mxu0 %v2860
      %3206 = vmatpush1.msra.mxu0 %v2859
      %3207 = vmatprep.subr.mxu0 %v2868
      %3208 = vmatpush1.msra.mxu0 %v2867
      %3209 = vmatprep.subr.mxu0 %v2876
      %3210 = vmatpush1.msra.mxu0 %v2875
      %3211 = vmatprep.subr.mxu0 %v2884
      %3212 = vmatpush1.msra.mxu0 %v2883
      %3213 = vmatprep.subr.mxu0 %v2892
      %3214 = vmatpush1.msra.mxu0 %v2891
      %3215 = vmatprep.subr.mxu0 %v2900
      %3216 = vmatpush1.msra.mxu0 %v2899
      %3217 = vmatprep.subr.mxu0 %v2908
      %3218 = vmatpush1.msra.mxu0 %v2907
      %3219 = vmatprep.subr.mxu0 %v2916
      %3220 = vmatpush1.msra.mxu0 %v2915
      %3221 = vmatprep.subr.mxu0 %v2924
      %3222 = vmatpush1.msra.mxu0 %v2923
      %3223 = vmatprep.subr.mxu0 %v2932
      %3224 = vmatpush1.msra.mxu0 %v2931
      %3225 = vmatprep.subr.mxu0 %v2940
      %3226 = vmatpush1.msra.mxu0 %v2939
      %3227 = vmatprep.subr.mxu0 %v2948
      %3228 = vmatpush1.msra.mxu0 %v2947
      %3229 = vmatprep.subr.mxu0 %v2956
      %3230 = vmatpush1.msra.mxu0 %v2955
      %3231 = vmatprep.subr.mxu0 %v2964
      %3232 = vmatpush1.msra.mxu0 %v2963
      %3233 = vmatprep.subr.mxu0 %v2972
      %3234 = vmatpush1.msra.mxu0 %v2971
      %3235 = vmatprep.mubr.f32.mxu0 %v2716
      %3236 = vmatmul.mubr.f32.gmra.mrb[0].mxu0 %v2715
      %v3237 = vpop.f32.mrb[0].mxu0
      %v3238 = vadd.f32 %v2996, %v3237
      %v3239 = vpop.f32.mrb[0].mxu0
      %v3240 = vadd.f32 %v3000, %v3239
      %3241 = vmatprep.mubr.f32.mxu0 %v2718
      %3242 = vmatmul.mubr.f32.gmra.mrb[0].mxu0 %v2717
      %v3243 = vpop.f32.mrb[0].mxu0
      %v3244 = vadd.f32 %v2996, %v3243
      %v3245 = vpop.f32.mrb[0].mxu0
      %v3246 = vadd.f32 %v3000, %v3245
      %3247 = vdwg.mxu0
      %3248 = vmatprep.subr.mxu0 %v2726
      %3249 = vmatpush1.msra.mxu0 %v2725
      %3250 = vmatprep.subr.mxu0 %v2734
      %3251 = vmatpush1.msra.mxu0 %v2733
      %3252 = vmatprep.subr.mxu0 %v2742
      %3253 = vmatpush1.msra.mxu0 %v2741
      %3254 = vmatprep.subr.mxu0 %v2750
      %3255 = vmatpush1.msra.mxu0 %v2749
      %3256 = vmatprep.subr.mxu0 %v2758
      %3257 = vmatpush1.msra.mxu0 %v2757
      %3258 = vmatprep.subr.mxu0 %v2766
      %3259 = vmatpush1.msra.mxu0 %v2765
      %3260 = vmatprep.subr.mxu0 %v2774
      %3261 = vmatpush1.msra.mxu0 %v2773
      %3262 = vmatprep.subr.mxu0 %v2782
      %3263 = vmatpush1.msra.mxu0 %v2781
      %3264 = vmatprep.subr.mxu0 %v2790
      %3265 = vmatpush1.msra.mxu0 %v2789
      %3266 = vmatprep.subr.mxu0 %v2798
      %3267 = vmatpush1.msra.mxu0 %v2797
      %3268 = vmatprep.subr.mxu0 %v2806
      %3269 = vmatpush1.msra.mxu0 %v2805
      %3270 = vmatprep.subr.mxu0 %v2814
      %3271 = vmatpush1.msra.mxu0 %v2813
      %3272 = vmatprep.subr.mxu0 %v2822
      %3273 = vmatpush1.msra.mxu0 %v2821
      %3274 = vmatprep.subr.mxu0 %v2830
      %3275 = vmatpush1.msra.mxu0 %v2829
      %3276 = vmatprep.subr.mxu0 %v2838
      %3277 = vmatpush1.msra.mxu0 %v2837
      %3278 = vmatprep.subr.mxu0 %v2846
      %3279 = vmatpush1.msra.mxu0 %v2845
      %3280 = vmatprep.subr.mxu0 %v2854
      %3281 = vmatpush1.msra.mxu0 %v2853
      %3282 = vmatprep.subr.mxu0 %v2862
      %3283 = vmatpush1.msra.mxu0 %v2861
      %3284 = vmatprep.subr.mxu0 %v2870
      %3285 = vmatpush1.msra.mxu0 %v2869
      %3286 = vmatprep.subr.mxu0 %v2878
      %3287 = vmatpush1.msra.mxu0 %v2877
      %3288 = vmatprep.subr.mxu0 %v2886
      %3289 = vmatpush1.msra.mxu0 %v2885
      %3290 = vmatprep.subr.mxu0 %v2894
      %3291 = vmatpush1.msra.mxu0 %v2893
      %3292 = vmatprep.subr.mxu0 %v2902
      %3293 = vmatpush1.msra.mxu0 %v2901
      %3294 = vmatprep.subr.mxu0 %v2910
      %3295 = vmatpush1.msra.mxu0 %v2909
      %3296 = vmatprep.subr.mxu0 %v2918
      %3297 = vmatpush1.msra.mxu0 %v2917
      %3298 = vmatprep.subr.mxu0 %v2926
      %3299 = vmatpush1.msra.mxu0 %v2925
      %3300 = vmatprep.subr.mxu0 %v2934
      %3301 = vmatpush1.msra.mxu0 %v2933
      %3302 = vmatprep.subr.mxu0 %v2942
      %3303 = vmatpush1.msra.mxu0 %v2941
      %3304 = vmatprep.subr.mxu0 %v2950
      %3305 = vmatpush1.msra.mxu0 %v2949
      %3306 = vmatprep.subr.mxu0 %v2958
      %3307 = vmatpush1.msra.mxu0 %v2957
      %3308 = vmatprep.subr.mxu0 %v2966
      %3309 = vmatpush1.msra.mxu0 %v2965
      %3310 = vmatprep.subr.mxu0 %v2974
      %3311 = vmatpush1.msra.mxu0 %v2973
      %3312 = vmatprep.mubr.f32.mxu0 %v2716
      %3313 = vmatmul.mubr.f32.gmra.mrb[0].mxu0 %v2715
      %v3314 = vpop.f32.mrb[0].mxu0
      %v3315 = vadd.f32 %v3004, %v3314
      %v3316 = vpop.f32.mrb[0].mxu0
      %v3317 = vadd.f32 %v3008, %v3316
      %3318 = vmatprep.mubr.f32.mxu0 %v2718
      %3319 = vmatmul.mubr.f32.gmra.mrb[0].mxu0 %v2717
      %v3320 = vpop.f32.mrb[0].mxu0
      %v3321 = vadd.f32 %v3004, %v3320
      %v3322 = vpop.f32.mrb[0].mxu0
      %v3323 = vadd.f32 %v3008, %v3322
      %3324 = vdwg.mxu0
      %v3325 = vmul.f32 %v3084, 0.5
      %v3326 = vmul.f32 %v3086, 0.5
      %v3327 = vmul.f32 %v3161, 0.5
      %v3328 = vmul.f32 %v3163, 0.5
      %v3329 = vmul.f32 %v3238, 0.5
      %v3330 = vmul.f32 %v3240, 0.5
      %v3331 = vmul.f32 %v3315, 0.5
      %v3332 = vmul.f32 %v3317, 0.5
      %v3333 = vmul.f32 %v3090, 0.5
      %v3334 = vmul.f32 %v3092, 0.5
      %v3335 = vmul.f32 %v3167, 0.5
      %v3336 = vmul.f32 %v3169, 0.5
      %v3337 = vmul.f32 %v3244, 0.5
      %v3338 = vmul.f32 %v3246, 0.5
      %v3339 = vmul.f32 %v3321, 0.5
      %v3340 = vmul.f32 %v3323, 0.5
      %v3341 = vmul.f32 %v3084, %v3084
      %v3342 = vmul.f32 %v3086, %v3086
      %v3343 = vmul.f32 %v3161, %v3161
      %v3344 = vmul.f32 %v3163, %v3163
      %v3345 = vmul.f32 %v3238, %v3238
      %v3346 = vmul.f32 %v3240, %v3240
      %v3347 = vmul.f32 %v3315, %v3315
      %v3348 = vmul.f32 %v3317, %v3317
      %v3349 = vmul.f32 %v3090, %v3090
      %v3350 = vmul.f32 %v3092, %v3092
      %v3351 = vmul.f32 %v3167, %v3167
      %v3352 = vmul.f32 %v3169, %v3169
      %v3353 = vmul.f32 %v3244, %v3244
      %v3354 = vmul.f32 %v3246, %v3246
      %v3355 = vmul.f32 %v3321, %v3321
      %v3356 = vmul.f32 %v3323, %v3323
      %v3357 = vmul.f32 %v3084, %v3341
      %v3358 = vmul.f32 %v3086, %v3342
      %v3359 = vmul.f32 %v3161, %v3343
      %v3360 = vmul.f32 %v3163, %v3344
      %v3361 = vmul.f32 %v3238, %v3345
      %v3362 = vmul.f32 %v3240, %v3346
      %v3363 = vmul.f32 %v3315, %v3347
      %v3364 = vmul.f32 %v3317, %v3348
      %v3365 = vmul.f32 %v3090, %v3349
      %v3366 = vmul.f32 %v3092, %v3350
      %v3367 = vmul.f32 %v3167, %v3351
      %v3368 = vmul.f32 %v3169, %v3352
      %v3369 = vmul.f32 %v3244, %v3353
      %v3370 = vmul.f32 %v3246, %v3354
      %v3371 = vmul.f32 %v3321, %v3355
      %v3372 = vmul.f32 %v3323, %v3356
      %v3373 = vmul.f32 %v3357, 0.044715
      %v3374 = vmul.f32 %v3358, 0.044715
      %v3375 = vmul.f32 %v3359, 0.044715
      %v3376 = vmul.f32 %v3360, 0.044715
      %v3377 = vmul.f32 %v3361, 0.044715
      %v3378 = vmul.f32 %v3362, 0.044715
      %v3379 = vmul.f32 %v3363, 0.044715
      %v3380 = vmul.f32 %v3364, 0.044715
      %v3381 = vmul.f32 %v3365, 0.044715
      %v3382 = vmul.f32 %v3366, 0.044715
      %v3383 = vmul.f32 %v3367, 0.044715
      %v3384 = vmul.f32 %v3368, 0.044715
      %v3385 = vmul.f32 %v3369, 0.044715
      %v3386 = vmul.f32 %v3370, 0.044715
      %v3387 = vmul.f32 %v3371, 0.044715
      %v3388 = vmul.f32 %v3372, 0.044715
      %v3389 = vadd.f32 %v3084, %v3373
      %v3390 = vadd.f32 %v3086, %v3374
      %v3391 = vadd.f32 %v3161, %v3375
      %v3392 = vadd.f32 %v3163, %v3376
      %v3393 = vadd.f32 %v3238, %v3377
      %v3394 = vadd.f32 %v3240, %v3378
      %v3395 = vadd.f32 %v3315, %v3379
      %v3396 = vadd.f32 %v3317, %v3380
      %v3397 = vadd.f32 %v3090, %v3381
      %v3398 = vadd.f32 %v3092, %v3382
      %v3399 = vadd.f32 %v3167, %v3383
      %v3400 = vadd.f32 %v3169, %v3384
      %v3401 = vadd.f32 %v3244, %v3385
      %v3402 = vadd.f32 %v3246, %v3386
      %v3403 = vadd.f32 %v3321, %v3387
      %v3404 = vadd.f32 %v3323, %v3388
      %v3405 = vmul.f32 %v3389, 0.7978846
      %v3406 = vmul.f32 %v3390, 0.7978846
      %v3407 = vmul.f32 %v3391, 0.7978846
      %v3408 = vmul.f32 %v3392, 0.7978846
      %v3409 = vmul.f32 %v3393, 0.7978846
      %v3410 = vmul.f32 %v3394, 0.7978846
      %v3411 = vmul.f32 %v3395, 0.7978846
      %v3412 = vmul.f32 %v3396, 0.7978846
      %v3413 = vmul.f32 %v3397, 0.7978846
      %v3414 = vmul.f32 %v3398, 0.7978846
      %v3415 = vmul.f32 %v3399, 0.7978846
      %v3416 = vmul.f32 %v3400, 0.7978846
      %v3417 = vmul.f32 %v3401, 0.7978846
      %v3418 = vmul.f32 %v3402, 0.7978846
      %v3419 = vmul.f32 %v3403, 0.7978846
      %v3420 = vmul.f32 %v3404, 0.7978846
      %v3421 = vtanh.pop %v3405
      %v3422 = vtanh.pop %v3406
      %v3423 = vtanh.pop %v3407
      %v3424 = vtanh.pop %v3408
      %v3425 = vtanh.pop %v3409
      %v3426 = vtanh.pop %v3410
      %v3427 = vtanh.pop %v3411
      %v3428 = vtanh.pop %v3412
      %v3429 = vtanh.pop %v3413
      %v3430 = vtanh.pop %v3414
      %v3431 = vtanh.pop %v3415
      %v3432 = vtanh.pop %v3416
      %v3433 = vtanh.pop %v3417
      %v3434 = vtanh.pop %v3418
      %v3435 = vtanh.pop %v3419
      %v3436 = vtanh.pop %v3420
      %v3437 = vadd.f32 %v3421, 1.0
      %v3438 = vadd.f32 %v3422, 1.0
      %v3439 = vadd.f32 %v3423, 1.0
      %v3440 = vadd.f32 %v3424, 1.0
      %v3441 = vadd.f32 %v3425, 1.0
      %v3442 = vadd.f32 %v3426, 1.0
      %v3443 = vadd.f32 %v3427, 1.0
      %v3444 = vadd.f32 %v3428, 1.0
      %v3445 = vadd.f32 %v3429, 1.0
      %v3446 = vadd.f32 %v3430, 1.0
      %v3447 = vadd.f32 %v3431, 1.0
      %v3448 = vadd.f32 %v3432, 1.0
      %v3449 = vadd.f32 %v3433, 1.0
      %v3450 = vadd.f32 %v3434, 1.0
      %v3451 = vadd.f32 %v3435, 1.0
      %v3452 = vadd.f32 %v3436, 1.0
      %v3453 = vmul.f32 %v3325, %v3437
      %v3454 = vmul.f32 %v3326, %v3438
      %v3455 = vmul.f32 %v3327, %v3439
      %v3456 = vmul.f32 %v3328, %v3440
      %v3457 = vmul.f32 %v3329, %v3441
      %v3458 = vmul.f32 %v3330, %v3442
      %v3459 = vmul.f32 %v3331, %v3443
      %v3460 = vmul.f32 %v3332, %v3444
      %v3461 = vmul.f32 %v3333, %v3445
      %v3462 = vmul.f32 %v3334, %v3446
      %v3463 = vmul.f32 %v3335, %v3447
      %v3464 = vmul.f32 %v3336, %v3448
      %v3465 = vmul.f32 %v3337, %v3449
      %v3466 = vmul.f32 %v3338, %v3450
      %v3467 = vmul.f32 %v3339, %v3451
      %v3468 = vmul.f32 %v3340, %v3452
      %v3469 = vld [vmem:[%s13] sm:$0xff]
      %v3470 = vld [vmem:[%s13 + $0x8] sm:$0xff]
      %v3471 = vld [vmem:[%s13 + $0x10] sm:$0xff]
      %v3472 = vld [vmem:[%s13 + $0x18] sm:$0xff]
      %v3473 = vld [vmem:[%s13 + $0x20] sm:$0xff]
      %v3474 = vld [vmem:[%s13 + $0x28] sm:$0xff]
      %v3475 = vld [vmem:[%s13 + $0x30] sm:$0xff]
      %v3476 = vld [vmem:[%s13 + $0x38] sm:$0xff]
      %v3477 = vld [vmem:[%s13 + $0x40] sm:$0xff]
      %v3478 = vld [vmem:[%s13 + $0x48] sm:$0xff]
      %v3479 = vld [vmem:[%s13 + $0x50] sm:$0xff]
      %v3480 = vld [vmem:[%s13 + $0x58] sm:$0xff]
      %v3481 = vld [vmem:[%s13 + $0x60] sm:$0xff]
      %v3482 = vld [vmem:[%s13 + $0x68] sm:$0xff]
      %v3483 = vld [vmem:[%s13 + $0x70] sm:$0xff]
      %v3484 = vld [vmem:[%s13 + $0x78] sm:$0xff]
      %v3485 = vld [vmem:[%s13 + $0x80] sm:$0xff]
      %v3486 = vld [vmem:[%s13 + $0x88] sm:$0xff]
      %v3487 = vld [vmem:[%s13 + $0x90] sm:$0xff]
      %v3488 = vld [vmem:[%s13 + $0x98] sm:$0xff]
      %v3489 = vld [vmem:[%s13 + $0xa0] sm:$0xff]
      %v3490 = vld [vmem:[%s13 + $0xa8] sm:$0xff]
      %v3491 = vld [vmem:[%s13 + $0xb0] sm:$0xff]
      %v3492 = vld [vmem:[%s13 + $0xb8] sm:$0xff]
      %v3493 = vld [vmem:[%s13 + $0xc0] sm:$0xff]
      %v3494 = vld [vmem:[%s13 + $0xc8] sm:$0xff]
      %v3495 = vld [vmem:[%s13 + $0xd0] sm:$0xff]
      %v3496 = vld [vmem:[%s13 + $0xd8] sm:$0xff]
      %v3497 = vld [vmem:[%s13 + $0xe0] sm:$0xff]
      %v3498 = vld [vmem:[%s13 + $0xe8] sm:$0xff]
      %v3499 = vld [vmem:[%s13 + $0xf0] sm:$0xff]
      %v3500 = vld [vmem:[%s13 + $0xf8] sm:$0xff]
      %v3501 = vld [vmem:[%s13 + $0x100] sm:$0xff]
      %v3502 = vld [vmem:[%s13 + $0x108] sm:$0xff]
      %v3503 = vld [vmem:[%s13 + $0x110] sm:$0xff]
      %v3504 = vld [vmem:[%s13 + $0x118] sm:$0xff]
      %v3505 = vld [vmem:[%s13 + $0x120] sm:$0xff]
      %v3506 = vld [vmem:[%s13 + $0x128] sm:$0xff]
      %v3507 = vld [vmem:[%s13 + $0x130] sm:$0xff]
      %v3508 = vld [vmem:[%s13 + $0x138] sm:$0xff]
      %v3509 = vld [vmem:[%s13 + $0x140] sm:$0xff]
      %v3510 = vld [vmem:[%s13 + $0x148] sm:$0xff]
      %v3511 = vld [vmem:[%s13 + $0x150] sm:$0xff]
      %v3512 = vld [vmem:[%s13 + $0x158] sm:$0xff]
      %v3513 = vld [vmem:[%s13 + $0x160] sm:$0xff]
      %v3514 = vld [vmem:[%s13 + $0x168] sm:$0xff]
      %v3515 = vld [vmem:[%s13 + $0x170] sm:$0xff]
      %v3516 = vld [vmem:[%s13 + $0x178] sm:$0xff]
      %v3517 = vld [vmem:[%s13 + $0x180] sm:$0xff]
      %v3518 = vld [vmem:[%s13 + $0x188] sm:$0xff]
      %v3519 = vld [vmem:[%s13 + $0x190] sm:$0xff]
      %v3520 = vld [vmem:[%s13 + $0x198] sm:$0xff]
      %v3521 = vld [vmem:[%s13 + $0x1a0] sm:$0xff]
      %v3522 = vld [vmem:[%s13 + $0x1a8] sm:$0xff]
      %v3523 = vld [vmem:[%s13 + $0x1b0] sm:$0xff]
      %v3524 = vld [vmem:[%s13 + $0x1b8] sm:$0xff]
      %v3525 = vld [vmem:[%s13 + $0x1c0] sm:$0xff]
      %v3526 = vld [vmem:[%s13 + $0x1c8] sm:$0xff]
      %v3527 = vld [vmem:[%s13 + $0x1d0] sm:$0xff]
      %v3528 = vld [vmem:[%s13 + $0x1d8] sm:$0xff]
      %v3529 = vld [vmem:[%s13 + $0x1e0] sm:$0xff]
      %v3530 = vld [vmem:[%s13 + $0x1e8] sm:$0xff]
      %v3531 = vld [vmem:[%s13 + $0x1f0] sm:$0xff]
      %v3532 = vld [vmem:[%s13 + $0x1f8] sm:$0xff]
      %v3533 = vld [vmem:[%s13 + $0x200] sm:$0xff]
      %v3534 = vld [vmem:[%s13 + $0x208] sm:$0xff]
      %v3535 = vld [vmem:[%s13 + $0x210] sm:$0xff]
      %v3536 = vld [vmem:[%s13 + $0x218] sm:$0xff]
      %v3537 = vld [vmem:[%s13 + $0x220] sm:$0xff]
      %v3538 = vld [vmem:[%s13 + $0x228] sm:$0xff]
      %v3539 = vld [vmem:[%s13 + $0x230] sm:$0xff]
      %v3540 = vld [vmem:[%s13 + $0x238] sm:$0xff]
      %v3541 = vld [vmem:[%s13 + $0x240] sm:$0xff]
      %v3542 = vld [vmem:[%s13 + $0x248] sm:$0xff]
      %v3543 = vld [vmem:[%s13 + $0x250] sm:$0xff]
      %v3544 = vld [vmem:[%s13 + $0x258] sm:$0xff]
      %v3545 = vld [vmem:[%s13 + $0x260] sm:$0xff]
      %v3546 = vld [vmem:[%s13 + $0x268] sm:$0xff]
      %v3547 = vld [vmem:[%s13 + $0x270] sm:$0xff]
      %v3548 = vld [vmem:[%s13 + $0x278] sm:$0xff]
      %v3549 = vld [vmem:[%s13 + $0x280] sm:$0xff]
      %v3550 = vld [vmem:[%s13 + $0x288] sm:$0xff]
      %v3551 = vld [vmem:[%s13 + $0x290] sm:$0xff]
      %v3552 = vld [vmem:[%s13 + $0x298] sm:$0xff]
      %v3553 = vld [vmem:[%s13 + $0x2a0] sm:$0xff]
      %v3554 = vld [vmem:[%s13 + $0x2a8] sm:$0xff]
      %v3555 = vld [vmem:[%s13 + $0x2b0] sm:$0xff]
      %v3556 = vld [vmem:[%s13 + $0x2b8] sm:$0xff]
      %v3557 = vld [vmem:[%s13 + $0x2c0] sm:$0xff]
      %v3558 = vld [vmem:[%s13 + $0x2c8] sm:$0xff]
      %v3559 = vld [vmem:[%s13 + $0x2d0] sm:$0xff]
      %v3560 = vld [vmem:[%s13 + $0x2d8] sm:$0xff]
      %v3561 = vld [vmem:[%s13 + $0x2e0] sm:$0xff]
      %v3562 = vld [vmem:[%s13 + $0x2e8] sm:$0xff]
      %v3563 = vld [vmem:[%s13 + $0x2f0] sm:$0xff]
      %v3564 = vld [vmem:[%s13 + $0x2f8] sm:$0xff]
      %v3565 = vld [vmem:[%s13 + $0x300] sm:$0xff]
      %v3566 = vld [vmem:[%s13 + $0x308] sm:$0xff]
      %v3567 = vld [vmem:[%s13 + $0x310] sm:$0xff]
      %v3568 = vld [vmem:[%s13 + $0x318] sm:$0xff]
      %v3569 = vld [vmem:[%s13 + $0x320] sm:$0xff]
      %v3570 = vld [vmem:[%s13 + $0x328] sm:$0xff]
      %v3571 = vld [vmem:[%s13 + $0x330] sm:$0xff]
      %v3572 = vld [vmem:[%s13 + $0x338] sm:$0xff]
      %v3573 = vld [vmem:[%s13 + $0x340] sm:$0xff]
      %v3574 = vld [vmem:[%s13 + $0x348] sm:$0xff]
      %v3575 = vld [vmem:[%s13 + $0x350] sm:$0xff]
      %v3576 = vld [vmem:[%s13 + $0x358] sm:$0xff]
      %v3577 = vld [vmem:[%s13 + $0x360] sm:$0xff]
      %v3578 = vld [vmem:[%s13 + $0x368] sm:$0xff]
      %v3579 = vld [vmem:[%s13 + $0x370] sm:$0xff]
      %v3580 = vld [vmem:[%s13 + $0x378] sm:$0xff]
      %v3581 = vld [vmem:[%s13 + $0x380] sm:$0xff]
      %v3582 = vld [vmem:[%s13 + $0x388] sm:$0xff]
      %v3583 = vld [vmem:[%s13 + $0x390] sm:$0xff]
      %v3584 = vld [vmem:[%s13 + $0x398] sm:$0xff]
      %v3585 = vld [vmem:[%s13 + $0x3a0] sm:$0xff]
      %v3586 = vld [vmem:[%s13 + $0x3a8] sm:$0xff]
      %v3587 = vld [vmem:[%s13 + $0x3b0] sm:$0xff]
      %v3588 = vld [vmem:[%s13 + $0x3b8] sm:$0xff]
      %v3589 = vld [vmem:[%s13 + $0x3c0] sm:$0xff]
      %v3590 = vld [vmem:[%s13 + $0x3c8] sm:$0xff]
      %v3591 = vld [vmem:[%s13 + $0x3d0] sm:$0xff]
      %v3592 = vld [vmem:[%s13 + $0x3d8] sm:$0xff]
      %v3593 = vld [vmem:[%s13 + $0x3e0] sm:$0xff]
      %v3594 = vld [vmem:[%s13 + $0x3e8] sm:$0xff]
      %v3595 = vld [vmem:[%s13 + $0x3f0] sm:$0xff]
      %v3596 = vld [vmem:[%s13 + $0x3f8] sm:$0xff]
      %v3597 = vld [vmem:[%s13 + $0x400] sm:$0xff]
      %v3598 = vld [vmem:[%s13 + $0x408] sm:$0xff]
      %v3599 = vld [vmem:[%s13 + $0x410] sm:$0xff]
      %v3600 = vld [vmem:[%s13 + $0x418] sm:$0xff]
      %v3601 = vld [vmem:[%s13 + $0x420] sm:$0xff]
      %v3602 = vld [vmem:[%s13 + $0x428] sm:$0xff]
      %v3603 = vld [vmem:[%s13 + $0x430] sm:$0xff]
      %v3604 = vld [vmem:[%s13 + $0x438] sm:$0xff]
      %v3605 = vld [vmem:[%s13 + $0x440] sm:$0xff]
      %v3606 = vld [vmem:[%s13 + $0x448] sm:$0xff]
      %v3607 = vld [vmem:[%s13 + $0x450] sm:$0xff]
      %v3608 = vld [vmem:[%s13 + $0x458] sm:$0xff]
      %v3609 = vld [vmem:[%s13 + $0x460] sm:$0xff]
      %v3610 = vld [vmem:[%s13 + $0x468] sm:$0xff]
      %v3611 = vld [vmem:[%s13 + $0x470] sm:$0xff]
      %v3612 = vld [vmem:[%s13 + $0x478] sm:$0xff]
      %v3613 = vld [vmem:[%s13 + $0x480] sm:$0xff]
      %v3614 = vld [vmem:[%s13 + $0x488] sm:$0xff]
      %v3615 = vld [vmem:[%s13 + $0x490] sm:$0xff]
      %v3616 = vld [vmem:[%s13 + $0x498] sm:$0xff]
      %v3617 = vld [vmem:[%s13 + $0x4a0] sm:$0xff]
      %v3618 = vld [vmem:[%s13 + $0x4a8] sm:$0xff]
      %v3619 = vld [vmem:[%s13 + $0x4b0] sm:$0xff]
      %v3620 = vld [vmem:[%s13 + $0x4b8] sm:$0xff]
      %v3621 = vld [vmem:[%s13 + $0x4c0] sm:$0xff]
      %v3622 = vld [vmem:[%s13 + $0x4c8] sm:$0xff]
      %v3623 = vld [vmem:[%s13 + $0x4d0] sm:$0xff]
      %v3624 = vld [vmem:[%s13 + $0x4d8] sm:$0xff]
      %v3625 = vld [vmem:[%s13 + $0x4e0] sm:$0xff]
      %v3626 = vld [vmem:[%s13 + $0x4e8] sm:$0xff]
      %v3627 = vld [vmem:[%s13 + $0x4f0] sm:$0xff]
      %v3628 = vld [vmem:[%s13 + $0x4f8] sm:$0xff]
      %v3629 = vld [vmem:[%s13 + $0x500] sm:$0xff]
      %v3630 = vld [vmem:[%s13 + $0x508] sm:$0xff]
      %v3631 = vld [vmem:[%s13 + $0x510] sm:$0xff]
      %v3632 = vld [vmem:[%s13 + $0x518] sm:$0xff]
      %v3633 = vld [vmem:[%s13 + $0x520] sm:$0xff]
      %v3634 = vld [vmem:[%s13 + $0x528] sm:$0xff]
      %v3635 = vld [vmem:[%s13 + $0x530] sm:$0xff]
      %v3636 = vld [vmem:[%s13 + $0x538] sm:$0xff]
      %v3637 = vld [vmem:[%s13 + $0x540] sm:$0xff]
      %v3638 = vld [vmem:[%s13 + $0x548] sm:$0xff]
      %v3639 = vld [vmem:[%s13 + $0x550] sm:$0xff]
      %v3640 = vld [vmem:[%s13 + $0x558] sm:$0xff]
      %v3641 = vld [vmem:[%s13 + $0x560] sm:$0xff]
      %v3642 = vld [vmem:[%s13 + $0x568] sm:$0xff]
      %v3643 = vld [vmem:[%s13 + $0x570] sm:$0xff]
      %v3644 = vld [vmem:[%s13 + $0x578] sm:$0xff]
      %v3645 = vld [vmem:[%s13 + $0x580] sm:$0xff]
      %v3646 = vld [vmem:[%s13 + $0x588] sm:$0xff]
      %v3647 = vld [vmem:[%s13 + $0x590] sm:$0xff]
      %v3648 = vld [vmem:[%s13 + $0x598] sm:$0xff]
      %v3649 = vld [vmem:[%s13 + $0x5a0] sm:$0xff]
      %v3650 = vld [vmem:[%s13 + $0x5a8] sm:$0xff]
      %v3651 = vld [vmem:[%s13 + $0x5b0] sm:$0xff]
      %v3652 = vld [vmem:[%s13 + $0x5b8] sm:$0xff]
      %v3653 = vld [vmem:[%s13 + $0x5c0] sm:$0xff]
      %v3654 = vld [vmem:[%s13 + $0x5c8] sm:$0xff]
      %v3655 = vld [vmem:[%s13 + $0x5d0] sm:$0xff]
      %v3656 = vld [vmem:[%s13 + $0x5d8] sm:$0xff]
      %v3657 = vld [vmem:[%s13 + $0x5e0] sm:$0xff]
      %v3658 = vld [vmem:[%s13 + $0x5e8] sm:$0xff]
      %v3659 = vld [vmem:[%s13 + $0x5f0] sm:$0xff]
      %v3660 = vld [vmem:[%s13 + $0x5f8] sm:$0xff]
      %v3661 = vld [vmem:[%s13 + $0x600] sm:$0xff]
      %v3662 = vld [vmem:[%s13 + $0x608] sm:$0xff]
      %v3663 = vld [vmem:[%s13 + $0x610] sm:$0xff]
      %v3664 = vld [vmem:[%s13 + $0x618] sm:$0xff]
      %v3665 = vld [vmem:[%s13 + $0x620] sm:$0xff]
      %v3666 = vld [vmem:[%s13 + $0x628] sm:$0xff]
      %v3667 = vld [vmem:[%s13 + $0x630] sm:$0xff]
      %v3668 = vld [vmem:[%s13 + $0x638] sm:$0xff]
      %v3669 = vld [vmem:[%s13 + $0x640] sm:$0xff]
      %v3670 = vld [vmem:[%s13 + $0x648] sm:$0xff]
      %v3671 = vld [vmem:[%s13 + $0x650] sm:$0xff]
      %v3672 = vld [vmem:[%s13 + $0x658] sm:$0xff]
      %v3673 = vld [vmem:[%s13 + $0x660] sm:$0xff]
      %v3674 = vld [vmem:[%s13 + $0x668] sm:$0xff]
      %v3675 = vld [vmem:[%s13 + $0x670] sm:$0xff]
      %v3676 = vld [vmem:[%s13 + $0x678] sm:$0xff]
      %v3677 = vld [vmem:[%s13 + $0x680] sm:$0xff]
      %v3678 = vld [vmem:[%s13 + $0x688] sm:$0xff]
      %v3679 = vld [vmem:[%s13 + $0x690] sm:$0xff]
      %v3680 = vld [vmem:[%s13 + $0x698] sm:$0xff]
      %v3681 = vld [vmem:[%s13 + $0x6a0] sm:$0xff]
      %v3682 = vld [vmem:[%s13 + $0x6a8] sm:$0xff]
      %v3683 = vld [vmem:[%s13 + $0x6b0] sm:$0xff]
      %v3684 = vld [vmem:[%s13 + $0x6b8] sm:$0xff]
      %v3685 = vld [vmem:[%s13 + $0x6c0] sm:$0xff]
      %v3686 = vld [vmem:[%s13 + $0x6c8] sm:$0xff]
      %v3687 = vld [vmem:[%s13 + $0x6d0] sm:$0xff]
      %v3688 = vld [vmem:[%s13 + $0x6d8] sm:$0xff]
      %v3689 = vld [vmem:[%s13 + $0x6e0] sm:$0xff]
      %v3690 = vld [vmem:[%s13 + $0x6e8] sm:$0xff]
      %v3691 = vld [vmem:[%s13 + $0x6f0] sm:$0xff]
      %v3692 = vld [vmem:[%s13 + $0x6f8] sm:$0xff]
      %v3693 = vld [vmem:[%s13 + $0x700] sm:$0xff]
      %v3694 = vld [vmem:[%s13 + $0x708] sm:$0xff]
      %v3695 = vld [vmem:[%s13 + $0x710] sm:$0xff]
      %v3696 = vld [vmem:[%s13 + $0x718] sm:$0xff]
      %v3697 = vld [vmem:[%s13 + $0x720] sm:$0xff]
      %v3698 = vld [vmem:[%s13 + $0x728] sm:$0xff]
      %v3699 = vld [vmem:[%s13 + $0x730] sm:$0xff]
      %v3700 = vld [vmem:[%s13 + $0x738] sm:$0xff]
      %v3701 = vld [vmem:[%s13 + $0x740] sm:$0xff]
      %v3702 = vld [vmem:[%s13 + $0x748] sm:$0xff]
      %v3703 = vld [vmem:[%s13 + $0x750] sm:$0xff]
      %v3704 = vld [vmem:[%s13 + $0x758] sm:$0xff]
      %v3705 = vld [vmem:[%s13 + $0x760] sm:$0xff]
      %v3706 = vld [vmem:[%s13 + $0x768] sm:$0xff]
      %v3707 = vld [vmem:[%s13 + $0x770] sm:$0xff]
      %v3708 = vld [vmem:[%s13 + $0x778] sm:$0xff]
      %v3709 = vld [vmem:[%s13 + $0x780] sm:$0xff]
      %v3710 = vld [vmem:[%s13 + $0x788] sm:$0xff]
      %v3711 = vld [vmem:[%s13 + $0x790] sm:$0xff]
      %v3712 = vld [vmem:[%s13 + $0x798] sm:$0xff]
      %v3713 = vld [vmem:[%s13 + $0x7a0] sm:$0xff]
      %v3714 = vld [vmem:[%s13 + $0x7a8] sm:$0xff]
      %v3715 = vld [vmem:[%s13 + $0x7b0] sm:$0xff]
      %v3716 = vld [vmem:[%s13 + $0x7b8] sm:$0xff]
      %v3717 = vld [vmem:[%s13 + $0x7c0] sm:$0xff]
      %v3718 = vld [vmem:[%s13 + $0x7c8] sm:$0xff]
      %v3719 = vld [vmem:[%s13 + $0x7d0] sm:$0xff]
      %v3720 = vld [vmem:[%s13 + $0x7d8] sm:$0xff]
      %v3721 = vld [vmem:[%s13 + $0x7e0] sm:$0xff]
      %v3722 = vld [vmem:[%s13 + $0x7e8] sm:$0xff]
      %v3723 = vld [vmem:[%s13 + $0x7f0] sm:$0xff]
      %v3724 = vld [vmem:[%s13 + $0x7f8] sm:$0xff]
      %v3725 = vld [vmem:[%s14] sm:$0x3]
      %v3727 = vlaneseq
      %v3728 = vshrl.u32 %v3727, 7
      %v3729 = vsub.s32 0, %v3728
      %v3730 = vrot.slane %v3725, %v3729
      %v3731 = vlaneseq
      %v3732 = vshrl.u32 %v3731, 7
      %v3733 = vsub.s32 1, %v3732
      %v3734 = vrot.slane %v3725, %v3733
      %3737 = vmatprep.subr.mxu0 %v3470
      %3738 = vmatpush1.msra.mxu0 %v3469
      %3739 = vmatprep.subr.mxu0 %v3472
      %3740 = vmatpush1.msra.mxu0 %v3471
      %3741 = vmatprep.subr.mxu0 %v3474
      %3742 = vmatpush1.msra.mxu0 %v3473
      %3743 = vmatprep.subr.mxu0 %v3476
      %3744 = vmatpush1.msra.mxu0 %v3475
      %3745 = vmatprep.subr.mxu0 %v3478
      %3746 = vmatpush1.msra.mxu0 %v3477
      %3747 = vmatprep.subr.mxu0 %v3480
      %3748 = vmatpush1.msra.mxu0 %v3479
      %3749 = vmatprep.subr.mxu0 %v3482
      %3750 = vmatpush1.msra.mxu0 %v3481
      %3751 = vmatprep.subr.mxu0 %v3484
      %3752 = vmatpush1.msra.mxu0 %v3483
      %3753 = vmatprep.subr.mxu0 %v3486
      %3754 = vmatpush1.msra.mxu0 %v3485
      %3755 = vmatprep.subr.mxu0 %v3488
      %3756 = vmatpush1.msra.mxu0 %v3487
      %3757 = vmatprep.subr.mxu0 %v3490
      %3758 = vmatpush1.msra.mxu0 %v3489
      %3759 = vmatprep.subr.mxu0 %v3492
      %3760 = vmatpush1.msra.mxu0 %v3491
      %3761 = vmatprep.subr.mxu0 %v3494
      %3762 = vmatpush1.msra.mxu0 %v3493
      %3763 = vmatprep.subr.mxu0 %v3496
      %3764 = vmatpush1.msra.mxu0 %v3495
      %3765 = vmatprep.subr.mxu0 %v3498
      %3766 = vmatpush1.msra.mxu0 %v3497
      %3767 = vmatprep.subr.mxu0 %v3500
      %3768 = vmatpush1.msra.mxu0 %v3499
      %3769 = vmatprep.subr.mxu0 %v3502
      %3770 = vmatpush1.msra.mxu0 %v3501
      %3771 = vmatprep.subr.mxu0 %v3504
      %3772 = vmatpush1.msra.mxu0 %v3503
      %3773 = vmatprep.subr.mxu0 %v3506
      %3774 = vmatpush1.msra.mxu0 %v3505
      %3775 = vmatprep.subr.mxu0 %v3508
      %3776 = vmatpush1.msra.mxu0 %v3507
      %3777 = vmatprep.subr.mxu0 %v3510
      %3778 = vmatpush1.msra.mxu0 %v3509
      %3779 = vmatprep.subr.mxu0 %v3512
      %3780 = vmatpush1.msra.mxu0 %v3511
      %3781 = vmatprep.subr.mxu0 %v3514
      %3782 = vmatpush1.msra.mxu0 %v3513
      %3783 = vmatprep.subr.mxu0 %v3516
      %3784 = vmatpush1.msra.mxu0 %v3515
      %3785 = vmatprep.subr.mxu0 %v3518
      %3786 = vmatpush1.msra.mxu0 %v3517
      %3787 = vmatprep.subr.mxu0 %v3520
      %3788 = vmatpush1.msra.mxu0 %v3519
      %3789 = vmatprep.subr.mxu0 %v3522
      %3790 = vmatpush1.msra.mxu0 %v3521
      %3791 = vmatprep.subr.mxu0 %v3524
      %3792 = vmatpush1.msra.mxu0 %v3523
      %3793 = vmatprep.subr.mxu0 %v3526
      %3794 = vmatpush1.msra.mxu0 %v3525
      %3795 = vmatprep.subr.mxu0 %v3528
      %3796 = vmatpush1.msra.mxu0 %v3527
      %3797 = vmatprep.subr.mxu0 %v3530
      %3798 = vmatpush1.msra.mxu0 %v3529
      %3799 = vmatprep.subr.mxu0 %v3532
      %3800 = vmatpush1.msra.mxu0 %v3531
      %3801 = vmatprep.mubr.f32.mxu0 %v3454
      %3802 = vmatmul.mubr.f32.gmra.mrb[0].mxu0 %v3453
      %v3803 = vpop.f32.mrb[0].mxu0
      %v3804 = vadd.f32 %v3730, %v3803
      %v3805 = vpop.f32.mrb[0].mxu0
      %v3806 = vadd.f32 %v3734, %v3805
      %3807 = vmatprep.mubr.f32.mxu0 %v3462
      %3808 = vmatmul.mubr.f32.gmra.mrb[0].mxu0 %v3461
      %v3809 = vpop.f32.mrb[0].mxu0
      %v3810 = vadd.f32 %v3730, %v3809
      %v3811 = vpop.f32.mrb[0].mxu0
      %v3812 = vadd.f32 %v3734, %v3811
      %3813 = vdwg.mxu0
      %3814 = vmatprep.subr.mxu0 %v3534
      %3815 = vmatpush1.msra.mxu0 %v3533
      %3816 = vmatprep.subr.mxu0 %v3536
      %3817 = vmatpush1.msra.mxu0 %v3535
      %3818 = vmatprep.subr.mxu0 %v3538
      %3819 = vmatpush1.msra.mxu0 %v3537
      %3820 = vmatprep.subr.mxu0 %v3540
      %3821 = vmatpush1.msra.mxu0 %v3539
      %3822 = vmatprep.subr.mxu0 %v3542
      %3823 = vmatpush1.msra.mxu0 %v3541
      %3824 = vmatprep.subr.mxu0 %v3544
      %3825 = vmatpush1.msra.mxu0 %v3543
      %3826 = vmatprep.subr.mxu0 %v3546
      %3827 = vmatpush1.msra.mxu0 %v3545
      %3828 = vmatprep.subr.mxu0 %v3548
      %3829 = vmatpush1.msra.mxu0 %v3547
      %3830 = vmatprep.subr.mxu0 %v3550
      %3831 = vmatpush1.msra.mxu0 %v3549
      %3832 = vmatprep.subr.mxu0 %v3552
      %3833 = vmatpush1.msra.mxu0 %v3551
      %3834 = vmatprep.subr.mxu0 %v3554
      %3835 = vmatpush1.msra.mxu0 %v3553
      %3836 = vmatprep.subr.mxu0 %v3556
      %3837 = vmatpush1.msra.mxu0 %v3555
      %3838 = vmatprep.subr.mxu0 %v3558
      %3839 = vmatpush1.msra.mxu0 %v3557
      %3840 = vmatprep.subr.mxu0 %v3560
      %3841 = vmatpush1.msra.mxu0 %v3559
      %3842 = vmatprep.subr.mxu0 %v3562
      %3843 = vmatpush1.msra.mxu0 %v3561
      %3844 = vmatprep.subr.mxu0 %v3564
      %3845 = vmatpush1.msra.mxu0 %v3563
      %3846 = vmatprep.subr.mxu0 %v3566
      %3847 = vmatpush1.msra.mxu0 %v3565
      %3848 = vmatprep.subr.mxu0 %v3568
      %3849 = vmatpush1.msra.mxu0 %v3567
      %3850 = vmatprep.subr.mxu0 %v3570
      %3851 = vmatpush1.msra.mxu0 %v3569
      %3852 = vmatprep.subr.mxu0 %v3572
      %3853 = vmatpush1.msra.mxu0 %v3571
      %3854 = vmatprep.subr.mxu0 %v3574
      %3855 = vmatpush1.msra.mxu0 %v3573
      %3856 = vmatprep.subr.mxu0 %v3576
      %3857 = vmatpush1.msra.mxu0 %v3575
      %3858 = vmatprep.subr.mxu0 %v3578
      %3859 = vmatpush1.msra.mxu0 %v3577
      %3860 = vmatprep.subr.mxu0 %v3580
      %3861 = vmatpush1.msra.mxu0 %v3579
      %3862 = vmatprep.subr.mxu0 %v3582
      %3863 = vmatpush1.msra.mxu0 %v3581
      %3864 = vmatprep.subr.mxu0 %v3584
      %3865 = vmatpush1.msra.mxu0 %v3583
      %3866 = vmatprep.subr.mxu0 %v3586
      %3867 = vmatpush1.msra.mxu0 %v3585
      %3868 = vmatprep.subr.mxu0 %v3588
      %3869 = vmatpush1.msra.mxu0 %v3587
      %3870 = vmatprep.subr.mxu0 %v3590
      %3871 = vmatpush1.msra.mxu0 %v3589
      %3872 = vmatprep.subr.mxu0 %v3592
      %3873 = vmatpush1.msra.mxu0 %v3591
      %3874 = vmatprep.subr.mxu0 %v3594
      %3875 = vmatpush1.msra.mxu0 %v3593
      %3876 = vmatprep.subr.mxu0 %v3596
      %3877 = vmatpush1.msra.mxu0 %v3595
      %3878 = vmatprep.mubr.f32.mxu0 %v3456
      %3879 = vmatmul.mubr.f32.gmra.mrb[0].mxu0 %v3455
      %v3880 = vpop.f32.mrb[0].mxu0
      %v3881 = vadd.f32 %v3804, %v3880
      %v3882 = vpop.f32.mrb[0].mxu0
      %v3883 = vadd.f32 %v3806, %v3882
      %3884 = vmatprep.mubr.f32.mxu0 %v3464
      %3885 = vmatmul.mubr.f32.gmra.mrb[0].mxu0 %v3463
      %v3886 = vpop.f32.mrb[0].mxu0
      %v3887 = vadd.f32 %v3810, %v3886
      %v3888 = vpop.f32.mrb[0].mxu0
      %v3889 = vadd.f32 %v3812, %v3888
      %3890 = vdwg.mxu0
      %3891 = vmatprep.subr.mxu0 %v3598
      %3892 = vmatpush1.msra.mxu0 %v3597
      %3893 = vmatprep.subr.mxu0 %v3600
      %3894 = vmatpush1.msra.mxu0 %v3599
      %3895 = vmatprep.subr.mxu0 %v3602
      %3896 = vmatpush1.msra.mxu0 %v3601
      %3897 = vmatprep.subr.mxu0 %v3604
      %3898 = vmatpush1.msra.mxu0 %v3603
      %3899 = vmatprep.subr.mxu0 %v3606
      %3900 = vmatpush1.msra.mxu0 %v3605
      %3901 = vmatprep.subr.mxu0 %v3608
      %3902 = vmatpush1.msra.mxu0 %v3607
      %3903 = vmatprep.subr.mxu0 %v3610
      %3904 = vmatpush1.msra.mxu0 %v3609
      %3905 = vmatprep.subr.mxu0 %v3612
      %3906 = vmatpush1.msra.mxu0 %v3611
      %3907 = vmatprep.subr.mxu0 %v3614
      %3908 = vmatpush1.msra.mxu0 %v3613
      %3909 = vmatprep.subr.mxu0 %v3616
      %3910 = vmatpush1.msra.mxu0 %v3615
      %3911 = vmatprep.subr.mxu0 %v3618
      %3912 = vmatpush1.msra.mxu0 %v3617
      %3913 = vmatprep.subr.mxu0 %v3620
      %3914 = vmatpush1.msra.mxu0 %v3619
      %3915 = vmatprep.subr.mxu0 %v3622
      %3916 = vmatpush1.msra.mxu0 %v3621
      %3917 = vmatprep.subr.mxu0 %v3624
      %3918 = vmatpush1.msra.mxu0 %v3623
      %3919 = vmatprep.subr.mxu0 %v3626
      %3920 = vmatpush1.msra.mxu0 %v3625
      %3921 = vmatprep.subr.mxu0 %v3628
      %3922 = vmatpush1.msra.mxu0 %v3627
      %3923 = vmatprep.subr.mxu0 %v3630
      %3924 = vmatpush1.msra.mxu0 %v3629
      %3925 = vmatprep.subr.mxu0 %v3632
      %3926 = vmatpush1.msra.mxu0 %v3631
      %3927 = vmatprep.subr.mxu0 %v3634
      %3928 = vmatpush1.msra.mxu0 %v3633
      %3929 = vmatprep.subr.mxu0 %v3636
      %3930 = vmatpush1.msra.mxu0 %v3635
      %3931 = vmatprep.subr.mxu0 %v3638
      %3932 = vmatpush1.msra.mxu0 %v3637
      %3933 = vmatprep.subr.mxu0 %v3640
      %3934 = vmatpush1.msra.mxu0 %v3639
      %3935 = vmatprep.subr.mxu0 %v3642
      %3936 = vmatpush1.msra.mxu0 %v3641
      %3937 = vmatprep.subr.mxu0 %v3644
      %3938 = vmatpush1.msra.mxu0 %v3643
      %3939 = vmatprep.subr.mxu0 %v3646
      %3940 = vmatpush1.msra.mxu0 %v3645
      %3941 = vmatprep.subr.mxu0 %v3648
      %3942 = vmatpush1.msra.mxu0 %v3647
      %3943 = vmatprep.subr.mxu0 %v3650
      %3944 = vmatpush1.msra.mxu0 %v3649
      %3945 = vmatprep.subr.mxu0 %v3652
      %3946 = vmatpush1.msra.mxu0 %v3651
      %3947 = vmatprep.subr.mxu0 %v3654
      %3948 = vmatpush1.msra.mxu0 %v3653
      %3949 = vmatprep.subr.mxu0 %v3656
      %3950 = vmatpush1.msra.mxu0 %v3655
      %3951 = vmatprep.subr.mxu0 %v3658
      %3952 = vmatpush1.msra.mxu0 %v3657
      %3953 = vmatprep.subr.mxu0 %v3660
      %3954 = vmatpush1.msra.mxu0 %v3659
      %3955 = vmatprep.mubr.f32.mxu0 %v3458
      %3956 = vmatmul.mubr.f32.gmra.mrb[0].mxu0 %v3457
      %v3957 = vpop.f32.mrb[0].mxu0
      %v3958 = vadd.f32 %v3881, %v3957
      %v3959 = vpop.f32.mrb[0].mxu0
      %v3960 = vadd.f32 %v3883, %v3959
      %3961 = vmatprep.mubr.f32.mxu0 %v3466
      %3962 = vmatmul.mubr.f32.gmra.mrb[0].mxu0 %v3465
      %v3963 = vpop.f32.mrb[0].mxu0
      %v3964 = vadd.f32 %v3887, %v3963
      %v3965 = vpop.f32.mrb[0].mxu0
      %v3966 = vadd.f32 %v3889, %v3965
      %3967 = vdwg.mxu0
      %3968 = vmatprep.subr.mxu0 %v3662
      %3969 = vmatpush1.msra.mxu0 %v3661
      %3970 = vmatprep.subr.mxu0 %v3664
      %3971 = vmatpush1.msra.mxu0 %v3663
      %3972 = vmatprep.subr.mxu0 %v3666
      %3973 = vmatpush1.msra.mxu0 %v3665
      %3974 = vmatprep.subr.mxu0 %v3668
      %3975 = vmatpush1.msra.mxu0 %v3667
      %3976 = vmatprep.subr.mxu0 %v3670
      %3977 = vmatpush1.msra.mxu0 %v3669
      %3978 = vmatprep.subr.mxu0 %v3672
      %3979 = vmatpush1.msra.mxu0 %v3671
      %3980 = vmatprep.subr.mxu0 %v3674
      %3981 = vmatpush1.msra.mxu0 %v3673
      %3982 = vmatprep.subr.mxu0 %v3676
      %3983 = vmatpush1.msra.mxu0 %v3675
      %3984 = vmatprep.subr.mxu0 %v3678
      %3985 = vmatpush1.msra.mxu0 %v3677
      %3986 = vmatprep.subr.mxu0 %v3680
      %3987 = vmatpush1.msra.mxu0 %v3679
      %3988 = vmatprep.subr.mxu0 %v3682
      %3989 = vmatpush1.msra.mxu0 %v3681
      %3990 = vmatprep.subr.mxu0 %v3684
      %3991 = vmatpush1.msra.mxu0 %v3683
      %3992 = vmatprep.subr.mxu0 %v3686
      %3993 = vmatpush1.msra.mxu0 %v3685
      %3994 = vmatprep.subr.mxu0 %v3688
      %3995 = vmatpush1.msra.mxu0 %v3687
      %3996 = vmatprep.subr.mxu0 %v3690
      %3997 = vmatpush1.msra.mxu0 %v3689
      %3998 = vmatprep.subr.mxu0 %v3692
      %3999 = vmatpush1.msra.mxu0 %v3691
      %4000 = vmatprep.subr.mxu0 %v3694
      %4001 = vmatpush1.msra.mxu0 %v3693
      %4002 = vmatprep.subr.mxu0 %v3696
      %4003 = vmatpush1.msra.mxu0 %v3695
      %4004 = vmatprep.subr.mxu0 %v3698
      %4005 = vmatpush1.msra.mxu0 %v3697
      %4006 = vmatprep.subr.mxu0 %v3700
      %4007 = vmatpush1.msra.mxu0 %v3699
      %4008 = vmatprep.subr.mxu0 %v3702
      %4009 = vmatpush1.msra.mxu0 %v3701
      %4010 = vmatprep.subr.mxu0 %v3704
      %4011 = vmatpush1.msra.mxu0 %v3703
      %4012 = vmatprep.subr.mxu0 %v3706
      %4013 = vmatpush1.msra.mxu0 %v3705
      %4014 = vmatprep.subr.mxu0 %v3708
      %4015 = vmatpush1.msra.mxu0 %v3707
      %4016 = vmatprep.subr.mxu0 %v3710
      %4017 = vmatpush1.msra.mxu0 %v3709
      %4018 = vmatprep.subr.mxu0 %v3712
      %4019 = vmatpush1.msra.mxu0 %v3711
      %4020 = vmatprep.subr.mxu0 %v3714
      %4021 = vmatpush1.msra.mxu0 %v3713
      %4022 = vmatprep.subr.mxu0 %v3716
      %4023 = vmatpush1.msra.mxu0 %v3715
      %4024 = vmatprep.subr.mxu0 %v3718
      %4025 = vmatpush1.msra.mxu0 %v3717
      %4026 = vmatprep.subr.mxu0 %v3720
      %4027 = vmatpush1.msra.mxu0 %v3719
      %4028 = vmatprep.subr.mxu0 %v3722
      %4029 = vmatpush1.msra.mxu0 %v3721
      %4030 = vmatprep.subr.mxu0 %v3724
      %4031 = vmatpush1.msra.mxu0 %v3723
      %4032 = vmatprep.mubr.f32.mxu0 %v3460
      %4033 = vmatmul.mubr.f32.gmra.mrb[0].mxu0 %v3459
      %v4034 = vpop.f32.mrb[0].mxu0
      %v4035 = vadd.f32 %v3958, %v4034
      %v4036 = vpop.f32.mrb[0].mxu0
      %v4037 = vadd.f32 %v3960, %v4036
      %4038 = vmatprep.mubr.f32.mxu0 %v3468
      %4039 = vmatmul.mubr.f32.gmra.mrb[0].mxu0 %v3467
      %v4040 = vpop.f32.mrb[0].mxu0
      %v4041 = vadd.f32 %v3964, %v4040
      %v4042 = vpop.f32.mrb[0].mxu0
      %v4043 = vadd.f32 %v3966, %v4042
      %4044 = vdwg.mxu0
      %v4045 = vadd.f32 %v2715, %v4035
      %v4046 = vadd.f32 %v2716, %v4037
      %v4047 = vadd.f32 %v2717, %v4041
      %v4048 = vadd.f32 %v2718, %v4043
      %v4049 = vld [vmem:[%s15] sm:$0x3]
      %v4050 = vld [vmem:[%s16] sm:$0x3]
      %v4051 = vadd.f32 %v4045, %v4046
      %4052 = vadd.xlane.f32.xlu0 %v4051
      %v4053 = vpop.xlane.xlu0 %4052
      %v4054 = vadd.f32 %v4047, %v4048
      %4055 = vadd.xlane.f32.xlu0 %v4054
      %v4056 = vpop.xlane.xlu0 %4055
      %v4057 = vmul.f32 %v4053, %v1512
      %v4058 = vmul.f32 %v4056, %v1512
      %v4059 = vsub.f32 %v4045, %v4057
      %v4060 = vsub.f32 %v4046, %v4057
      %v4061 = vsub.f32 %v4047, %v4058
      %v4062 = vsub.f32 %v4048, %v4058
      %v4063 = vmul.f32 %v4059, %v4059
      %v4064 = vmul.f32 %v4060, %v4060
      %v4065 = vmul.f32 %v4061, %v4061
      %v4066 = vmul.f32 %v4062, %v4062
      %v4067 = vadd.f32 %v4063, %v4064
      %4068 = vadd.xlane.f32.xlu0 %v4067
      %v4069 = vpop.xlane.xlu0 %4068
      %v4070 = vadd.f32 %v4065, %v4066
      %4071 = vadd.xlane.f32.xlu0 %v4070
      %v4072 = vpop.xlane.xlu0 %4071
      %v4073 = vmul.f32 %v4069, 0.003921569
      %v4074 = vmul.f32 %v4072, 0.003921569
      %v4075 = vrsqrt.pop %v4073
      %v4076 = vmul.f32 %v4073, %v4075
      %vm4077 = vcmp.eq.f32.partialorder %v4073, inf
      %v4078 = vsel %vm4077, %v4073, %v4076
      %vm4079 = vcmp.eq.f32.partialorder %v4073, 0.0
      %v4080 = vand.u32 %v4073, 2147483648
      %v4081 = vsel %vm4079, %v4080, %v4078
      %v4082 = vrsqrt.pop %v4074
      %v4083 = vmul.f32 %v4074, %v4082
      %vm4084 = vcmp.eq.f32.partialorder %v4074, inf
      %v4085 = vsel %vm4084, %v4074, %v4083
      %vm4086 = vcmp.eq.f32.partialorder %v4074, 0.0
      %v4087 = vand.u32 %v4074, 2147483648
      %v4088 = vsel %vm4086, %v4087, %v4085
      %v4089 = vadd.f32 %v4081, 1e-09
      %v4090 = vadd.f32 %v4088, 1e-09
      %v4091 = vrcp.pop %v4089
      %v4092 = vrcp.pop %v4090
      %v4094 = vlaneseq
      %v4095 = vshrl.u32 %v4094, 7
      %v4096 = vsub.s32 0, %v4095
      %v4097 = vrot.slane %v4049, %v4096
      %v4098 = vlaneseq
      %v4099 = vshrl.u32 %v4098, 7
      %v4100 = vsub.s32 1, %v4099
      %v4101 = vrot.slane %v4049, %v4100
      %v4104 = vmul.f32 %v4097, %v4059
      %v4105 = vmul.f32 %v4101, %v4060
      %v4106 = vmul.f32 %v4097, %v4061
      %v4107 = vmul.f32 %v4101, %v4062
      %v4108 = vmul.f32 %v4104, %v4091
      %v4109 = vmul.f32 %v4105, %v4091
      %v4110 = vmul.f32 %v4106, %v4092
      %v4111 = vmul.f32 %v4107, %v4092
      %v4113 = vlaneseq
      %v4114 = vshrl.u32 %v4113, 7
      %v4115 = vsub.s32 0, %v4114
      %v4116 = vrot.slane %v4050, %v4115
      %v4117 = vlaneseq
      %v4118 = vshrl.u32 %v4117, 7
      %v4119 = vsub.s32 1, %v4118
      %v4120 = vrot.slane %v4050, %v4119
      %v4123 = vadd.f32 %v4108, %v4116
      %v4124 = vadd.f32 %v4109, %v4120
      %v4125 = vadd.f32 %v4110, %v4116
      %v4126 = vadd.f32 %v4111, %v4120
      %v4127 = vld [vmem:[%s17] sm:$0x3]
      %v4128 = vld [vmem:[%s18] sm:$0x3]
      %v4129 = vadd.f32 %v4123, %v4124
      %4130 = vadd.xlane.f32.xlu0 %v4129
      %v4131 = vpop.xlane.xlu0 %4130
      %v4132 = vadd.f32 %v4125, %v4126
      %4133 = vadd.xlane.f32.xlu0 %v4132
      %v4134 = vpop.xlane.xlu0 %4133
      %v4135 = vmul.f32 %v4131, %v1512
      %v4136 = vmul.f32 %v4134, %v1512
      %v4137 = vsub.f32 %v4123, %v4135
      %v4138 = vsub.f32 %v4124, %v4135
      %v4139 = vsub.f32 %v4125, %v4136
      %v4140 = vsub.f32 %v4126, %v4136
      %v4141 = vmul.f32 %v4137, %v4137
      %v4142 = vmul.f32 %v4138, %v4138
      %v4143 = vmul.f32 %v4139, %v4139
      %v4144 = vmul.f32 %v4140, %v4140
      %v4145 = vadd.f32 %v4141, %v4142
      %4146 = vadd.xlane.f32.xlu0 %v4145
      %v4147 = vpop.xlane.xlu0 %4146
      %v4148 = vadd.f32 %v4143, %v4144
      %4149 = vadd.xlane.f32.xlu0 %v4148
      %v4150 = vpop.xlane.xlu0 %4149
      %v4151 = vmul.f32 %v4147, 0.003921569
      %v4152 = vmul.f32 %v4150, 0.003921569
      %v4153 = vrsqrt.pop %v4151
      %v4154 = vmul.f32 %v4151, %v4153
      %vm4155 = vcmp.eq.f32.partialorder %v4151, inf
      %v4156 = vsel %vm4155, %v4151, %v4154
      %vm4157 = vcmp.eq.f32.partialorder %v4151, 0.0
      %v4158 = vand.u32 %v4151, 2147483648
      %v4159 = vsel %vm4157, %v4158, %v4156
      %v4160 = vrsqrt.pop %v4152
      %v4161 = vmul.f32 %v4152, %v4160
      %vm4162 = vcmp.eq.f32.partialorder %v4152, inf
      %v4163 = vsel %vm4162, %v4152, %v4161
      %vm4164 = vcmp.eq.f32.partialorder %v4152, 0.0
      %v4165 = vand.u32 %v4152, 2147483648
      %v4166 = vsel %vm4164, %v4165, %v4163
      %v4167 = vadd.f32 %v4159, 1e-09
      %v4168 = vadd.f32 %v4166, 1e-09
      %v4169 = vrcp.pop %v4167
      %v4170 = vrcp.pop %v4168
      %v4172 = vlaneseq
      %v4173 = vshrl.u32 %v4172, 7
      %v4174 = vsub.s32 0, %v4173
      %v4175 = vrot.slane %v4127, %v4174
      %v4176 = vlaneseq
      %v4177 = vshrl.u32 %v4176, 7
      %v4178 = vsub.s32 1, %v4177
      %v4179 = vrot.slane %v4127, %v4178
      %v4182 = vmul.f32 %v4175, %v4137
      %v4183 = vmul.f32 %v4179, %v4138
      %v4184 = vmul.f32 %v4175, %v4139
      %v4185 = vmul.f32 %v4179, %v4140
      %v4186 = vmul.f32 %v4182, %v4169
      %v4187 = vmul.f32 %v4183, %v4169
      %v4188 = vmul.f32 %v4184, %v4170
      %v4189 = vmul.f32 %v4185, %v4170
      %v4191 = vlaneseq
      %v4192 = vshrl.u32 %v4191, 7
      %v4193 = vsub.s32 0, %v4192
      %v4194 = vrot.slane %v4128, %v4193
      %v4195 = vlaneseq
      %v4196 = vshrl.u32 %v4195, 7
      %v4197 = vsub.s32 1, %v4196
      %v4198 = vrot.slane %v4128, %v4197
      %v4201 = vadd.f32 %v4186, %v4194
      %v4202 = vadd.f32 %v4187, %v4198
      %v4203 = vadd.f32 %v4188, %v4194
      %v4204 = vadd.f32 %v4189, %v4198
      %v4205 = vld [vmem:[%s19] sm:$0xff]
      %v4206 = vld [vmem:[%s19 + $0x8] sm:$0xff]
      %v4207 = vld [vmem:[%s19 + $0x10] sm:$0xff]
      %v4208 = vld [vmem:[%s19 + $0x18] sm:$0xff]
      %v4209 = vld [vmem:[%s19 + $0x20] sm:$0xff]
      %v4210 = vld [vmem:[%s19 + $0x28] sm:$0xff]
      %v4211 = vld [vmem:[%s19 + $0x30] sm:$0xff]
      %v4212 = vld [vmem:[%s19 + $0x38] sm:$0xff]
      %v4213 = vld [vmem:[%s19 + $0x40] sm:$0xff]
      %v4214 = vld [vmem:[%s19 + $0x48] sm:$0xff]
      %v4215 = vld [vmem:[%s19 + $0x50] sm:$0xff]
      %v4216 = vld [vmem:[%s19 + $0x58] sm:$0xff]
      %v4217 = vld [vmem:[%s19 + $0x60] sm:$0xff]
      %v4218 = vld [vmem:[%s19 + $0x68] sm:$0xff]
      %v4219 = vld [vmem:[%s19 + $0x70] sm:$0xff]
      %v4220 = vld [vmem:[%s19 + $0x78] sm:$0xff]
      %v4221 = vld [vmem:[%s19 + $0x80] sm:$0xff]
      %v4222 = vld [vmem:[%s19 + $0x88] sm:$0xff]
      %v4223 = vld [vmem:[%s19 + $0x90] sm:$0xff]
      %v4224 = vld [vmem:[%s19 + $0x98] sm:$0xff]
      %v4225 = vld [vmem:[%s19 + $0xa0] sm:$0xff]
      %v4226 = vld [vmem:[%s19 + $0xa8] sm:$0xff]
      %v4227 = vld [vmem:[%s19 + $0xb0] sm:$0xff]
      %v4228 = vld [vmem:[%s19 + $0xb8] sm:$0xff]
      %v4229 = vld [vmem:[%s19 + $0xc0] sm:$0xff]
      %v4230 = vld [vmem:[%s19 + $0xc8] sm:$0xff]
      %v4231 = vld [vmem:[%s19 + $0xd0] sm:$0xff]
      %v4232 = vld [vmem:[%s19 + $0xd8] sm:$0xff]
      %v4233 = vld [vmem:[%s19 + $0xe0] sm:$0xff]
      %v4234 = vld [vmem:[%s19 + $0xe8] sm:$0xff]
      %v4235 = vld [vmem:[%s19 + $0xf0] sm:$0xff]
      %v4236 = vld [vmem:[%s19 + $0xf8] sm:$0xff]
      %v4237 = vld [vmem:[%s19 + $0x100] sm:$0xff]
      %v4238 = vld [vmem:[%s19 + $0x108] sm:$0xff]
      %v4239 = vld [vmem:[%s19 + $0x110] sm:$0xff]
      %v4240 = vld [vmem:[%s19 + $0x118] sm:$0xff]
      %v4241 = vld [vmem:[%s19 + $0x120] sm:$0xff]
      %v4242 = vld [vmem:[%s19 + $0x128] sm:$0xff]
      %v4243 = vld [vmem:[%s19 + $0x130] sm:$0xff]
      %v4244 = vld [vmem:[%s19 + $0x138] sm:$0xff]
      %v4245 = vld [vmem:[%s19 + $0x140] sm:$0xff]
      %v4246 = vld [vmem:[%s19 + $0x148] sm:$0xff]
      %v4247 = vld [vmem:[%s19 + $0x150] sm:$0xff]
      %v4248 = vld [vmem:[%s19 + $0x158] sm:$0xff]
      %v4249 = vld [vmem:[%s19 + $0x160] sm:$0xff]
      %v4250 = vld [vmem:[%s19 + $0x168] sm:$0xff]
      %v4251 = vld [vmem:[%s19 + $0x170] sm:$0xff]
      %v4252 = vld [vmem:[%s19 + $0x178] sm:$0xff]
      %v4253 = vld [vmem:[%s19 + $0x180] sm:$0xff]
      %v4254 = vld [vmem:[%s19 + $0x188] sm:$0xff]
      %v4255 = vld [vmem:[%s19 + $0x190] sm:$0xff]
      %v4256 = vld [vmem:[%s19 + $0x198] sm:$0xff]
      %v4257 = vld [vmem:[%s19 + $0x1a0] sm:$0xff]
      %v4258 = vld [vmem:[%s19 + $0x1a8] sm:$0xff]
      %v4259 = vld [vmem:[%s19 + $0x1b0] sm:$0xff]
      %v4260 = vld [vmem:[%s19 + $0x1b8] sm:$0xff]
      %v4261 = vld [vmem:[%s19 + $0x1c0] sm:$0xff]
      %v4262 = vld [vmem:[%s19 + $0x1c8] sm:$0xff]
      %v4263 = vld [vmem:[%s19 + $0x1d0] sm:$0xff]
      %v4264 = vld [vmem:[%s19 + $0x1d8] sm:$0xff]
      %v4265 = vld [vmem:[%s19 + $0x1e0] sm:$0xff]
      %v4266 = vld [vmem:[%s19 + $0x1e8] sm:$0xff]
      %v4267 = vld [vmem:[%s19 + $0x1f0] sm:$0xff]
      %v4268 = vld [vmem:[%s19 + $0x1f8] sm:$0xff]
      %v4269 = vld [vmem:[%s20] sm:$0x3]
      %v4271 = vlaneseq
      %v4272 = vshrl.u32 %v4271, 7
      %v4273 = vsub.s32 0, %v4272
      %v4274 = vrot.slane %v4269, %v4273
      %v4275 = vlaneseq
      %v4276 = vshrl.u32 %v4275, 7
      %v4277 = vsub.s32 1, %v4276
      %v4278 = vrot.slane %v4269, %v4277
      %4281 = vmatprep.subr.mxu0 %v4206
      %4282 = vmatpush1.msra.mxu0 %v4205
      %4283 = vmatprep.subr.mxu0 %v4208
      %4284 = vmatpush1.msra.mxu0 %v4207
      %4285 = vmatprep.subr.mxu0 %v4210
      %4286 = vmatpush1.msra.mxu0 %v4209
      %4287 = vmatprep.subr.mxu0 %v4212
      %4288 = vmatpush1.msra.mxu0 %v4211
      %4289 = vmatprep.subr.mxu0 %v4214
      %4290 = vmatpush1.msra.mxu0 %v4213
      %4291 = vmatprep.subr.mxu0 %v4216
      %4292 = vmatpush1.msra.mxu0 %v4215
      %4293 = vmatprep.subr.mxu0 %v4218
      %4294 = vmatpush1.msra.mxu0 %v4217
      %4295 = vmatprep.subr.mxu0 %v4220
      %4296 = vmatpush1.msra.mxu0 %v4219
      %4297 = vmatprep.subr.mxu0 %v4222
      %4298 = vmatpush1.msra.mxu0 %v4221
      %4299 = vmatprep.subr.mxu0 %v4224
      %4300 = vmatpush1.msra.mxu0 %v4223
      %4301 = vmatprep.subr.mxu0 %v4226
      %4302 = vmatpush1.msra.mxu0 %v4225
      %4303 = vmatprep.subr.mxu0 %v4228
      %4304 = vmatpush1.msra.mxu0 %v4227
      %4305 = vmatprep.subr.mxu0 %v4230
      %4306 = vmatpush1.msra.mxu0 %v4229
      %4307 = vmatprep.subr.mxu0 %v4232
      %4308 = vmatpush1.msra.mxu0 %v4231
      %4309 = vmatprep.subr.mxu0 %v4234
      %4310 = vmatpush1.msra.mxu0 %v4233
      %4311 = vmatprep.subr.mxu0 %v4236
      %4312 = vmatpush1.msra.mxu0 %v4235
      %4313 = vmatprep.subr.mxu0 %v4238
      %4314 = vmatpush1.msra.mxu0 %v4237
      %4315 = vmatprep.subr.mxu0 %v4240
      %4316 = vmatpush1.msra.mxu0 %v4239
      %4317 = vmatprep.subr.mxu0 %v4242
      %4318 = vmatpush1.msra.mxu0 %v4241
      %4319 = vmatprep.subr.mxu0 %v4244
      %4320 = vmatpush1.msra.mxu0 %v4243
      %4321 = vmatprep.subr.mxu0 %v4246
      %4322 = vmatpush1.msra.mxu0 %v4245
      %4323 = vmatprep.subr.mxu0 %v4248
      %4324 = vmatpush1.msra.mxu0 %v4247
      %4325 = vmatprep.subr.mxu0 %v4250
      %4326 = vmatpush1.msra.mxu0 %v4249
      %4327 = vmatprep.subr.mxu0 %v4252
      %4328 = vmatpush1.msra.mxu0 %v4251
      %4329 = vmatprep.subr.mxu0 %v4254
      %4330 = vmatpush1.msra.mxu0 %v4253
      %4331 = vmatprep.subr.mxu0 %v4256
      %4332 = vmatpush1.msra.mxu0 %v4255
      %4333 = vmatprep.subr.mxu0 %v4258
      %4334 = vmatpush1.msra.mxu0 %v4257
      %4335 = vmatprep.subr.mxu0 %v4260
      %4336 = vmatpush1.msra.mxu0 %v4259
      %4337 = vmatprep.subr.mxu0 %v4262
      %4338 = vmatpush1.msra.mxu0 %v4261
      %4339 = vmatprep.subr.mxu0 %v4264
      %4340 = vmatpush1.msra.mxu0 %v4263
      %4341 = vmatprep.subr.mxu0 %v4266
      %4342 = vmatpush1.msra.mxu0 %v4265
      %4343 = vmatprep.subr.mxu0 %v4268
      %4344 = vmatpush1.msra.mxu0 %v4267
      %4345 = vmatprep.mubr.f32.mxu0 %v4202
      %4346 = vmatmul.mubr.f32.gmra.mrb[0].mxu0 %v4201
      %v4347 = vpop.f32.mrb[0].mxu0
      %v4348 = vadd.f32 %v4274, %v4347
      %v4349 = vpop.f32.mrb[0].mxu0
      %v4350 = vadd.f32 %v4278, %v4349
      %4351 = vmatprep.mubr.f32.mxu0 %v4204
      %4352 = vmatmul.mubr.f32.gmra.mrb[0].mxu0 %v4203
      %v4353 = vpop.f32.mrb[0].mxu0
      %v4354 = vadd.f32 %v4274, %v4353
      %v4355 = vpop.f32.mrb[0].mxu0
      %v4356 = vadd.f32 %v4278, %v4355
      %4357 = vdwg.mxu0
      %v4358 = vmax.f32 %v4348, 0.0
      %v4359 = vmax.f32 %v4354, 0.0
      %v4360 = vtanh.pop %v4350
      %v4361 = vtanh.pop %v4356
      %v4362 = vld [vmem:[%s21] sm:$0x1]
      %v4363 = vld [vmem:[#allocation2] sm:$0x1]
      %4365 = vset.pattern.permute.xlu0 0
      %4366 = vperm.xlu0 %4365, %v4363
      %v4367 = vpop.permute.xlu0 %4366
      %v4369 = vlaneseq
      %v4370 = vshrl.u32 %v4369, 7
      %v4371 = vsub.s32 0, %v4370
      %v4372 = vrot.slane %v4367, %v4371
      %4373 = vmatprep.subr.mxu0 0.0
      %4374 = vmatpush1.xpose.msra.mxu0 %v4358
      %4375 = vmatprep.subr.mxu0 0.0
      %4376 = vmatpush1.xpose.msra.mxu0 %v4359
      %4377 = vmatprep.subr.mxu0 0.0
      %4378 = vmatpush1.xpose.msra.mxu0 0.0
      %4379 = vmatprep.subr.mxu0 0.0
      %4380 = vmatpush1.xpose.msra.mxu0 0.0
      %4381 = vmatprep.subr.mxu0 0.0
      %4382 = vmatpush1.xpose.msra.mxu0 0.0
      %4383 = vmatprep.subr.mxu0 0.0
      %4384 = vmatpush1.xpose.msra.mxu0 0.0
      %4385 = vmatprep.subr.mxu0 0.0
      %4386 = vmatpush1.xpose.msra.mxu0 0.0
      %4387 = vmatprep.subr.mxu0 0.0
      %4388 = vmatpush1.xpose.msra.mxu0 0.0
      %4389 = vmatprep.subr.mxu0 0.0
      %4390 = vmatpush1.xpose.msra.mxu0 0.0
      %4391 = vmatprep.subr.mxu0 0.0
      %4392 = vmatpush1.xpose.msra.mxu0 0.0
      %4393 = vmatprep.subr.mxu0 0.0
      %4394 = vmatpush1.xpose.msra.mxu0 0.0
      %4395 = vmatprep.subr.mxu0 0.0
      %4396 = vmatpush1.xpose.msra.mxu0 0.0
      %4397 = vmatprep.subr.mxu0 0.0
      %4398 = vmatpush1.xpose.msra.mxu0 0.0
      %4399 = vmatprep.subr.mxu0 0.0
      %4400 = vmatpush1.xpose.msra.mxu0 0.0
      %4401 = vmatprep.subr.mxu0 0.0
      %4402 = vmatpush1.xpose.msra.mxu0 0.0
      %4403 = vmatprep.subr.mxu0 0.0
      %4404 = vmatpush1.xpose.msra.mxu0 0.0
      %4405 = vmatprep.subr.mxu0 0.0
      %4406 = vmatpush1.xpose.msra.mxu0 0.0
      %4407 = vmatprep.subr.mxu0 0.0
      %4408 = vmatpush1.xpose.msra.mxu0 0.0
      %4409 = vmatprep.subr.mxu0 0.0
      %4410 = vmatpush1.xpose.msra.mxu0 0.0
      %4411 = vmatprep.subr.mxu0 0.0
      %4412 = vmatpush1.xpose.msra.mxu0 0.0
      %4413 = vmatprep.subr.mxu0 0.0
      %4414 = vmatpush1.xpose.msra.mxu0 0.0
      %4415 = vmatprep.subr.mxu0 0.0
      %4416 = vmatpush1.xpose.msra.mxu0 0.0
      %4417 = vmatprep.subr.mxu0 0.0
      %4418 = vmatpush1.xpose.msra.mxu0 0.0
      %4419 = vmatprep.subr.mxu0 0.0
      %4420 = vmatpush1.xpose.msra.mxu0 0.0
      %4421 = vmatprep.subr.mxu0 0.0
      %4422 = vmatpush1.xpose.msra.mxu0 0.0
      %4423 = vmatprep.subr.mxu0 0.0
      %4424 = vmatpush1.xpose.msra.mxu0 0.0
      %4425 = vmatprep.subr.mxu0 0.0
      %4426 = vmatpush1.xpose.msra.mxu0 0.0
      %4427 = vmatprep.subr.mxu0 0.0
      %4428 = vmatpush1.xpose.msra.mxu0 0.0
      %4429 = vmatprep.subr.mxu0 0.0
      %4430 = vmatpush1.xpose.msra.mxu0 0.0
      %4431 = vmatprep.subr.mxu0 0.0
      %4432 = vmatpush1.xpose.msra.mxu0 0.0
      %4433 = vmatprep.subr.mxu0 0.0
      %4434 = vmatpush1.xpose.msra.mxu0 0.0
      %4435 = vmatprep.subr.mxu0 0.0
      %4436 = vmatpush1.xpose.msra.mxu0 0.0
      %4437 = vmatprep.mubr.f32.mxu0 0.0
      %4438 = vmatmul.mubr.f32.gmra.mrb[0].mxu0 %v4362
      %v4439 = vpop.f32.mrb[0].mxu0
      %v4440 = vadd.f32 %v4372, %v4439
      %v4441 = vpop.f32.mrb[0].mxu0
      %4442 = vdwg.mxu0
      %v4443 = vxor.u32 %v4440, 2147483648
      %v4444 = vmul.f32 %v4443, 1.442695
      %v4445 = vpow.pop %v4444
      %v4446 = vadd.f32 %v4445, 1.0
      %v4447 = vrcp.pop %v4446
      %v4448 = vmul.f32 1.0, %v4447
      %v4449 = vld [vmem:[%s23] sm:$0x1]
      %v4450 = vld [vmem:[#allocation3] sm:$0x1]
      %4452 = vset.pattern.permute.xlu0 0
      %4453 = vperm.xlu0 %4452, %v4450
      %v4454 = vpop.permute.xlu0 %4453
      %v4456 = vlaneseq
      %v4457 = vshrl.u32 %v4456, 7
      %v4458 = vsub.s32 0, %v4457
      %v4459 = vrot.slane %v4454, %v4458
      %4460 = vmatprep.subr.mxu0 0.0
      %4461 = vmatpush1.xpose.msra.mxu0 %v4360
      %4462 = vmatprep.subr.mxu0 0.0
      %4463 = vmatpush1.xpose.msra.mxu0 %v4361
      %4464 = vmatprep.subr.mxu0 0.0
      %4465 = vmatpush1.xpose.msra.mxu0 0.0
      %4466 = vmatprep.subr.mxu0 0.0
      %4467 = vmatpush1.xpose.msra.mxu0 0.0
      %4468 = vmatprep.subr.mxu0 0.0
      %4469 = vmatpush1.xpose.msra.mxu0 0.0
      %4470 = vmatprep.subr.mxu0 0.0
      %4471 = vmatpush1.xpose.msra.mxu0 0.0
      %4472 = vmatprep.subr.mxu0 0.0
      %4473 = vmatpush1.xpose.msra.mxu0 0.0
      %4474 = vmatprep.subr.mxu0 0.0
      %4475 = vmatpush1.xpose.msra.mxu0 0.0
      %4476 = vmatprep.subr.mxu0 0.0
      %4477 = vmatpush1.xpose.msra.mxu0 0.0
      %4478 = vmatprep.subr.mxu0 0.0
      %4479 = vmatpush1.xpose.msra.mxu0 0.0
      %4480 = vmatprep.subr.mxu0 0.0
      %4481 = vmatpush1.xpose.msra.mxu0 0.0
      %4482 = vmatprep.subr.mxu0 0.0
      %4483 = vmatpush1.xpose.msra.mxu0 0.0
      %4484 = vmatprep.subr.mxu0 0.0
      %4485 = vmatpush1.xpose.msra.mxu0 0.0
      %4486 = vmatprep.subr.mxu0 0.0
      %4487 = vmatpush1.xpose.msra.mxu0 0.0
      %4488 = vmatprep.subr.mxu0 0.0
      %4489 = vmatpush1.xpose.msra.mxu0 0.0
      %4490 = vmatprep.subr.mxu0 0.0
      %4491 = vmatpush1.xpose.msra.mxu0 0.0
      %4492 = vmatprep.subr.mxu0 0.0
      %4493 = vmatpush1.xpose.msra.mxu0 0.0
      %4494 = vmatprep.subr.mxu0 0.0
      %4495 = vmatpush1.xpose.msra.mxu0 0.0
      %4496 = vmatprep.subr.mxu0 0.0
      %4497 = vmatpush1.xpose.msra.mxu0 0.0
      %4498 = vmatprep.subr.mxu0 0.0
      %4499 = vmatpush1.xpose.msra.mxu0 0.0
      %4500 = vmatprep.subr.mxu0 0.0
      %4501 = vmatpush1.xpose.msra.mxu0 0.0
      %4502 = vmatprep.subr.mxu0 0.0
      %4503 = vmatpush1.xpose.msra.mxu0 0.0
      %4504 = vmatprep.subr.mxu0 0.0
      %4505 = vmatpush1.xpose.msra.mxu0 0.0
      %4506 = vmatprep.subr.mxu0 0.0
      %4507 = vmatpush1.xpose.msra.mxu0 0.0
      %4508 = vmatprep.subr.mxu0 0.0
      %4509 = vmatpush1.xpose.msra.mxu0 0.0
      %4510 = vmatprep.subr.mxu0 0.0
      %4511 = vmatpush1.xpose.msra.mxu0 0.0
      %4512 = vmatprep.subr.mxu0 0.0
      %4513 = vmatpush1.xpose.msra.mxu0 0.0
      %4514 = vmatprep.subr.mxu0 0.0
      %4515 = vmatpush1.xpose.msra.mxu0 0.0
      %4516 = vmatprep.subr.mxu0 0.0
      %4517 = vmatpush1.xpose.msra.mxu0 0.0
      %4518 = vmatprep.subr.mxu0 0.0
      %4519 = vmatpush1.xpose.msra.mxu0 0.0
      %4520 = vmatprep.subr.mxu0 0.0
      %4521 = vmatpush1.xpose.msra.mxu0 0.0
      %4522 = vmatprep.subr.mxu0 0.0
      %4523 = vmatpush1.xpose.msra.mxu0 0.0
      %4524 = vmatprep.mubr.f32.mxu0 0.0
      %4525 = vmatmul.mubr.f32.gmra.mrb[0].mxu0 %v4449
      %v4526 = vpop.f32.mrb[0].mxu0
      %v4527 = vadd.f32 %v4459, %v4526
      %v4528 = vpop.f32.mrb[0].mxu0
      %4529 = vdwg.mxu0
      %v4530 = vmul.f32 %v4527, %v4448
      %v4532 = vrot.slane %v4448, 7
      %vm4534 = vcmask 1040384
      %v4535 = vsel %vm4534, %v4530, %v4532
      %vm4536 = vcmask 123904
      %4537 = vst.msk [vmem:[%s766] sm:$0x3] %vm4536, %v4535
      %p4538 = scmp.lt.s32.totalorder %s40, 1
      %s4539 = scalar_select %p4538, %s40, 1
      %s4540 = smul.addr %s4539, 2
      %s4541 = scalar_lea.vmem %s25, %s4540
      // Predicated region
      $region121: #{cnn_network_forward.1} parent=119 // pred_check
        %p4542 = pneg %p588
      $region122: #{cnn_network_forward.1} parent=119 // pred_check_branch
        %4544 = sbr.rel (%p4542) target = $region124
      $region123: #{cnn_network_forward.1} parent=119 // pred_region
        _
      $region124: #{cnn_network_forward.1} parent=119 // pred_fallthru
        _
    $region120: #{cnn_network_forward.1} parent=5 // pred_fallthru
      _
    %p4545 = scmp.le.s32.totalorder 2, %s35
    // Predicated region
    $region125: #{cnn_network_forward.1} parent=5 // pred_check
      %p4546 = pneg %p4545
    $region126: #{cnn_network_forward.1} parent=5 // pred_check_branch
      %4548 = sbr.rel (%p4546) target = $region128
    $region127: #{cnn_network_forward.1} parent=5 // pred_region
      %s4549 = ssub.s32 %s35, 2
      // Predicated region
      $region129: #{cnn_network_forward.1} parent=127 // pred_check
        %p4550 = pneg %p594
      $region130: #{cnn_network_forward.1} parent=127 // pred_check_branch
        %4552 = sbr.rel (%p4550) target = $region132
      $region131: #{cnn_network_forward.1} parent=127 // pred_region
        %p4553 = scmp.lt.s32.totalorder %s41, 1
        %s4554 = scalar_select %p4553, %s41, 1
        %s4555 = smul.addr %s4554, 2
        %s4556 = scalar_lea.vmem %s25, %s4555
      $region132: #{cnn_network_forward.1} parent=127 // pred_fallthru
        _
    $region128: #{cnn_network_forward.1} parent=5 // pred_fallthru
      _
  $region6: #{cnn_network_forward.1} parent=0 // loop_footer
    %s39 = sadd.s32 1, %s35
  $region7: #{cnn_network_forward.1} parent=0 // loop_footer_branch
    %34 = sbr.rel target = $region3
  $region8: #{cnn_network_forward.1} parent=0 // loop_exit
    _

</llo_original>
